<compile_context>
chip_gen: v6e
topology: v6e:2x2x1
jax: 0.10.0
libtpu: 0.0.40
codegen_flags: <defaults>
</compile_context>

<pallas_src>
import jax
import jax.numpy as jnp
from jax.experimental import pallas as pl
from jax.experimental.pallas import tpu as pltpu


def _default_bf16_silu():
    """Enable bf16 SiLU only on chips with a bf16 EUP/VPU path (v6e/v7x)."""
    try:
        kind = jax.devices()[0].device_kind.lower()
    except Exception:
        return False
    for old in ("v2", "v3", "v4", "v5"):
        if old in kind:
            return False
    return True


def _make_kernel(tile_graphs, n_nodes, bf16_silu, use_seg_matmul):
    bf = jnp.bfloat16

    def kernel(h_ref, mask_ref, *refs):
        if use_seg_matmul:
            (seg_ref, w1_ref, b1_ref, w2_ref, b2_ref,
             w3_ref, b3_ref, w4_ref, b4_ref, o_ref) = refs
        else:
            seg_ref = None
            (w1_ref, b1_ref, w2_ref, b2_ref,
             w3_ref, b3_ref, w4_ref, b4_ref, o_ref) = refs

        # ---- node_dec: Linear -> SiLU -> Linear (rows = tile_graphs * n_nodes) ----
        x = jnp.dot(h_ref[...], w1_ref[...],
                    preferred_element_type=jnp.float32) + b1_ref[...]
        if bf16_silu:
            # bf16 transcendental path (v6e/v7x EUP); feeds the next bf16 matmul
            # with no extra cast.
            xa = x.astype(bf)
            xa = xa * jax.nn.sigmoid(xa)
        else:
            xa = (x * jax.nn.sigmoid(x)).astype(bf)
        x = jnp.dot(xa, w2_ref[...],
                    preferred_element_type=jnp.float32) + b2_ref[...]      # (R, hid) f32

        # ---- node mask folded into the activations (per-row multiply) ----
        x = x * mask_ref[...]                                              # (R, hid) * (R, 1)

        # ---- per-graph sum over nodes ----
        if use_seg_matmul:
            # bf16 0/1 segment matmul (exact 0/1 operands), f32 accumulation.
            g = jnp.dot(seg_ref[...], x.astype(bf),
                        preferred_element_type=jnp.float32)                # (G, hid)
        else:
            # Sublane-aligned reshape + sum: no MXU work at all.
            hid = x.shape[-1]
            g = x.reshape(tile_graphs, n_nodes, hid).sum(axis=1)           # (G, hid) f32

        # ---- graph_dec: Linear -> SiLU -> Linear(hid -> 1) ----
        g = jnp.dot(g.astype(bf), w3_ref[...],
                    preferred_element_type=jnp.float32) + b3_ref[...]
        g = g * jax.nn.sigmoid(g)                                          # tiny: keep f32
        # hid->1 projection on VPU/XLU: elementwise mul by the (1, hid) weight
        # row and a lane reduce instead of a 1-lane-wide MXU matmul.
        pred = jnp.sum(g * w4_ref[...], axis=-1)                           # (G,)
        o_ref[...] = (pred[None, :] + b4_ref[...]).astype(o_ref.dtype)     # (1, G) lane-dense

    return kernel


def readout_forward(h, node_mask, n_nodes, params, *, tile_graphs=128,
                    bf16_silu=None, vmem_limit_bytes=48 * 1024 * 1024,
                    h_buffer_count=None):
    """Fused Readout forward.

    h: (N, in_nf) f32, node_mask: (N, 1) f32, N = batch * n_nodes.
    Returns (batch,) f32.
    """
    w1, b1, w2, b2, w3, b3, w4, b4 = params
    N, in_nf = h.shape
    hidden_nf = w1.shape[1]
    assert N % n_nodes == 0, "h must have batch * n_nodes rows"
    batch = N // n_nodes

    if bf16_silu is None:
        bf16_silu = _default_bf16_silu()
    # n_nodes % 8 == 0 -> per-graph sum is a clean sublane-aligned reshape+sum;
    # otherwise fall back to the bf16 segment matmul.
    use_seg_matmul = (n_nodes % 8 != 0)

    num_tiles = pl.cdiv(batch, tile_graphs)
    b_pad = num_tiles * tile_graphs          # graphs padded to a tile multiple
    n_pad = b_pad * n_nodes                  # node rows after padding
    rows_per_tile = tile_graphs * n_nodes    # >= 1024 rows/step at the default

    bf = jnp.bfloat16
    h_p = h.astype(bf)
    m_p = node_mask.reshape(N, 1).astype(jnp.float32)
    if n_pad != N:
        h_p = jnp.pad(h_p, ((0, n_pad - N), (0, 0)))
        m_p = jnp.pad(m_p, ((0, n_pad - N), (0, 0)))   # padded nodes masked out

    # biases / final weight as rows so they broadcast cleanly in the kernel
    b1r = b1.reshape(1, hidden_nf).astype(jnp.float32)
    b2r = b2.reshape(1, hidden_nf).astype(jnp.float32)
    b3r = b3.reshape(1, hidden_nf).astype(jnp.float32)
    w4r = w4.reshape(1, hidden_nf).astype(jnp.float32)   # (hid, 1) -> (1, hid)
    b4r = b4.reshape(1, 1).astype(jnp.float32)

    if h_buffer_count is None:
        h_spec = pl.BlockSpec((rows_per_tile, in_nf), lambda i: (i, 0))
    else:
        # Optional deeper pipelining of the only streamed input (v6e headroom).
        h_spec = pl.BlockSpec((rows_per_tile, in_nf), lambda i: (i, 0),
                              pipeline_mode=pl.Buffered(h_buffer_count))

    in_specs = [
        h_spec,                                                  # h tile (bf16)
        pl.BlockSpec((rows_per_tile, 1), lambda i: (i, 0)),      # node mask column
    ]
    inputs = [h_p, m_p]

    if use_seg_matmul:
        # Grid-invariant 0/1 segment matrix in bf16 (exact): seg[b, r] = (r // n_nodes == b).
        node_graph = jnp.arange(rows_per_tile, dtype=jnp.int32) // n_nodes
        seg = (node_graph[None, :] ==
               jnp.arange(tile_graphs, dtype=jnp.int32)[:, None]).astype(bf)
        in_specs.append(pl.BlockSpec((tile_graphs, rows_per_tile), lambda i: (0, 0)))
        inputs.append(seg)

    in_specs += [
        pl.BlockSpec((in_nf, hidden_nf), lambda i: (0, 0)),      # W1 (bf16)
        pl.BlockSpec((1, hidden_nf), lambda i: (0, 0)),          # b1
        pl.BlockSpec((hidden_nf, hidden_nf), lambda i: (0, 0)),  # W2 (bf16)
        pl.BlockSpec((1, hidden_nf), lambda i: (0, 0)),          # b2
        pl.BlockSpec((hidden_nf, hidden_nf), lambda i: (0, 0)),  # W3 (bf16)
        pl.BlockSpec((1, hidden_nf), lambda i: (0, 0)),          # b3
        pl.BlockSpec((1, hidden_nf), lambda i: (0, 0)),          # W4 row (f32)
        pl.BlockSpec((1, 1), lambda i: (0, 0)),                  # b4
    ]
    inputs += [w1.astype(bf), b1r, w2.astype(bf), b2r, w3.astype(bf), b3r, w4r, b4r]

    kernel = _make_kernel(tile_graphs, n_nodes, bf16_silu, use_seg_matmul)

    out = pl.pallas_call(
        kernel,
        out_shape=jax.ShapeDtypeStruct((1, b_pad), jnp.float32),
        grid_spec=pltpu.PrefetchScalarGridSpec(
            num_scalar_prefetch=0,
            grid=(num_tiles,),
            in_specs=in_specs,
            out_specs=pl.BlockSpec((1, tile_graphs), lambda i: (0, i)),   # lane-dense preds
        ),
        compiler_params=pltpu.CompilerParams(
            dimension_semantics=("parallel",),
            vmem_limit_bytes=vmem_limit_bytes),
    )(*inputs)

    return out[0, :batch]   # drop padded graphs; pred.squeeze(1)


def init_params(key, in_nf, hidden_nf):
    """Weights stored as (in, out) so the kernel does x @ W + b."""
    ks = jax.random.split(key, 8)

    def lin(kw, kb, fan_in, fan_out):
        bound = 1.0 / jnp.sqrt(fan_in)
        w = jax.random.uniform(kw, (fan_in, fan_out), jnp.float32, -bound, bound)
        b = jax.random.uniform(kb, (fan_out,), jnp.float32, -bound, bound)
        return w, b

    w1, b1 = lin(ks[0], ks[1], in_nf, hidden_nf)       # node_dec[0]
    w2, b2 = lin(ks[2], ks[3], hidden_nf, hidden_nf)   # node_dec[2]
    w3, b3 = lin(ks[4], ks[5], hidden_nf, hidden_nf)   # graph_dec[0]
    w4, b4 = lin(ks[6], ks[7], hidden_nf, 1)           # graph_dec[2]
    return (w1, b1, w2, b2, w3, b3, w4, b4)


def _reference(h, node_mask, n_nodes, params, *, bf16_silu=False):
    """Pure-JAX reference mirroring the kernel's bf16-operand / f32-accumulate policy."""
    w1, b1, w2, b2, w3, b3, w4, b4 = params
    bf = jnp.bfloat16
    x = jnp.dot(h.astype(bf), w1.astype(bf), preferred_element_type=jnp.float32) + b1
    if bf16_silu:
        xa = x.astype(bf)
        xa = xa * jax.nn.sigmoid(xa)
    else:
        xa = (x * jax.nn.sigmoid(x)).astype(bf)
    x = jnp.dot(xa, w2.astype(bf), preferred_element_type=jnp.float32) + b2
    x = x * node_mask
    if n_nodes % 8 != 0:
        # kernel casts the masked activations to bf16 before the segment matmul
        x = x.astype(bf).astype(jnp.float32)
    g = x.reshape(-1, n_nodes, x.shape[-1]).sum(axis=1)
    g = jnp.dot(g.astype(bf), w3.astype(bf), preferred_element_type=jnp.float32) + b3
    g = g * jax.nn.sigmoid(g)
    return jnp.sum(g * w4.reshape(1, -1), axis=-1) + b4[0]


if __name__ == "__main__":
    key = jax.random.PRNGKey(0)
    k_h, k_m, k_p, k_h2, k_m2, k_p2 = jax.random.split(key, 6)

    in_nf, hidden_nf = 32, 32

    # --- Test 1: n_nodes multiple of 8 -> reshape+sum path (no segment matmul),
    #             f32 SiLU so the reference matches tightly.
    batch, n_nodes = 4, 8
    N = batch * n_nodes
    h = jax.random.normal(k_h, (N, in_nf), dtype=jnp.float32)
    node_mask = (jax.random.uniform(k_m, (N, 1)) > 0.25).astype(jnp.float32)
    params = init_params(k_p, in_nf, hidden_nf)

    pred = readout_forward(h, node_mask, n_nodes, params, bf16_silu=False)
    pred = jax.block_until_ready(pred)
    ref = _reference(h, node_mask, n_nodes, params, bf16_silu=False)
    assert pred.shape == (batch,)
    assert jnp.allclose(pred, ref, atol=1e-3, rtol=1e-3), "mismatch (reshape-sum path)"

    # --- Test 2: n_nodes not a multiple of 8 -> bf16 segment-matmul path,
    #             with the (auto-detected) bf16 SiLU mode exercised too.
    batch2, n_nodes2 = 3, 6
    N2 = batch2 * n_nodes2
    h2 = jax.random.normal(k_h2, (N2, in_nf), dtype=jnp.float32)
    node_mask2 = (jax.random.uniform(k_m2, (N2, 1)) > 0.25).astype(jnp.float32)
    params2 = init_params(k_p2, in_nf, hidden_nf)

    use_bf16_silu = _default_bf16_silu()
    pred2 = readout_forward(h2, node_mask2, n_nodes2, params2, bf16_silu=use_bf16_silu)
    pred2 = jax.block_until_ready(pred2)
    ref2 = _reference(h2, node_mask2, n_nodes2, params2, bf16_silu=use_bf16_silu)
    assert pred2.shape == (batch2,)
    # Mosaic vs XLA bf16 sigmoid can differ by ~1 ulp, so allow a looser tolerance here.
    assert jnp.allclose(pred2, ref2, atol=2e-2, rtol=2e-2), "mismatch (segment-matmul path)"

    print("KERNEL_OK")
</pallas_src>

<mosaic_0001>
module attributes {stable_mosaic.version = 11 : i64} {
  func.func @kernel(%arg0: i32, %arg1: memref<1024x32xbf16, #tpu.memory_space<vmem>>, %arg2: memref<1024x1xf32, #tpu.memory_space<vmem>>, %arg3: memref<32x32xbf16, #tpu.memory_space<vmem>>, %arg4: memref<1x32xf32, #tpu.memory_space<vmem>>, %arg5: memref<32x32xbf16, #tpu.memory_space<vmem>>, %arg6: memref<1x32xf32, #tpu.memory_space<vmem>>, %arg7: memref<32x32xbf16, #tpu.memory_space<vmem>>, %arg8: memref<1x32xf32, #tpu.memory_space<vmem>>, %arg9: memref<1x32xf32, #tpu.memory_space<vmem>>, %arg10: memref<1x1xf32, #tpu.memory_space<vmem>>, %arg11: memref<1x128xf32, #tpu.memory_space<vmem>>) attributes {dimension_semantics = [#tpu.dimension_semantics<parallel>], iteration_bounds = array<i64: 1>, scalar_prefetch = 0 : i64, scratch_operands = 0 : i64, tpu.core_type = #tpu.core_type<tc>, window_params = [{transform_indices = @transform_0, window_bounds = array<i64: 1024, 32>}, {transform_indices = @transform_1, window_bounds = array<i64: 1024, 1>}, {pipeline_mode = #tpu.pipeline_mode<synchronous>, transform_indices = @transform_2, window_bounds = array<i64: 32, 32>}, {pipeline_mode = #tpu.pipeline_mode<synchronous>, transform_indices = @transform_3, window_bounds = array<i64: 1, 32>}, {pipeline_mode = #tpu.pipeline_mode<synchronous>, transform_indices = @transform_4, window_bounds = array<i64: 32, 32>}, {pipeline_mode = #tpu.pipeline_mode<synchronous>, transform_indices = @transform_5, window_bounds = array<i64: 1, 32>}, {pipeline_mode = #tpu.pipeline_mode<synchronous>, transform_indices = @transform_6, window_bounds = array<i64: 32, 32>}, {pipeline_mode = #tpu.pipeline_mode<synchronous>, transform_indices = @transform_7, window_bounds = array<i64: 1, 32>}, {pipeline_mode = #tpu.pipeline_mode<synchronous>, transform_indices = @transform_8, window_bounds = array<i64: 1, 32>}, {pipeline_mode = #tpu.pipeline_mode<synchronous>, transform_indices = @transform_9, window_bounds = array<i64: 1, 1>}, {transform_indices = @transform_10, window_bounds = array<i64: 1, 128>}]} {
    %c0 = arith.constant 0 : index
    %c0_0 = arith.constant 0 : index
    %0 = vector.load %arg1[%c0, %c0_0] : memref<1024x32xbf16, #tpu.memory_space<vmem>>, vector<1024x32xbf16>
    %c0_1 = arith.constant 0 : index
    %c0_2 = arith.constant 0 : index
    %1 = vector.load %arg3[%c0_1, %c0_2] : memref<32x32xbf16, #tpu.memory_space<vmem>>, vector<32x32xbf16>
    %cst = arith.constant dense<0.000000e+00> : vector<1024x32xf32>
    %2 = tpu.matmul %0, %1, %cst {dimension_numbers = #tpu.dot_dimension_numbers<[1], [0], [0], [1], [0, 0, 1, 1], [], []>} : vector<1024x32xbf16>, vector<32x32xbf16>, vector<1024x32xf32> -> vector<1024x32xf32>
    %c0_3 = arith.constant 0 : index
    %c0_4 = arith.constant 0 : index
    %3 = vector.load %arg4[%c0_3, %c0_4] : memref<1x32xf32, #tpu.memory_space<vmem>>, vector<1x32xf32>
    %4 = vector.broadcast %3 : vector<1x32xf32> to vector<1024x32xf32>
    %5 = arith.addf %2, %4 : vector<1024x32xf32>
    %6 = arith.negf %5 : vector<1024x32xf32>
    %7 = math.exp %6 : vector<1024x32xf32>
    %cst_5 = arith.constant 1.000000e+00 : f32
    %8 = vector.broadcast %cst_5 : f32 to vector<1024x32xf32>
    %9 = arith.addf %8, %7 : vector<1024x32xf32>
    %10 = arith.divf %8, %9 : vector<1024x32xf32>
    %11 = arith.mulf %5, %10 : vector<1024x32xf32>
    %12 = arith.truncf %11 : vector<1024x32xf32> to vector<1024x32xbf16>
    %c0_6 = arith.constant 0 : index
    %c0_7 = arith.constant 0 : index
    %13 = vector.load %arg5[%c0_6, %c0_7] : memref<32x32xbf16, #tpu.memory_space<vmem>>, vector<32x32xbf16>
    %cst_8 = arith.constant dense<0.000000e+00> : vector<1024x32xf32>
    %14 = tpu.matmul %12, %13, %cst_8 {dimension_numbers = #tpu.dot_dimension_numbers<[1], [0], [0], [1], [0, 0, 1, 1], [], []>} : vector<1024x32xbf16>, vector<32x32xbf16>, vector<1024x32xf32> -> vector<1024x32xf32>
    %c0_9 = arith.constant 0 : index
    %c0_10 = arith.constant 0 : index
    %15 = vector.load %arg6[%c0_9, %c0_10] : memref<1x32xf32, #tpu.memory_space<vmem>>, vector<1x32xf32>
    %16 = vector.broadcast %15 : vector<1x32xf32> to vector<1024x32xf32>
    %17 = arith.addf %14, %16 : vector<1024x32xf32>
    %c0_11 = arith.constant 0 : index
    %c0_12 = arith.constant 0 : index
    %18 = vector.load %arg2[%c0_11, %c0_12] : memref<1024x1xf32, #tpu.memory_space<vmem>>, vector<1024x1xf32>
    %19 = vector.broadcast %18 : vector<1024x1xf32> to vector<1024x32xf32>
    %20 = arith.mulf %17, %19 : vector<1024x32xf32>
    %21 = vector.shape_cast %20 : vector<1024x32xf32> to vector<128x8x32xf32>
    %cst_13 = arith.constant dense<0.000000e+00> : vector<128x32xf32>
    %22 = vector.multi_reduction <add>, %21, %cst_13 [1] : vector<128x8x32xf32> to vector<128x32xf32>
    %23 = arith.truncf %22 : vector<128x32xf32> to vector<128x32xbf16>
    %c0_14 = arith.constant 0 : index
    %c0_15 = arith.constant 0 : index
    %24 = vector.load %arg7[%c0_14, %c0_15] : memref<32x32xbf16, #tpu.memory_space<vmem>>, vector<32x32xbf16>
    %cst_16 = arith.constant dense<0.000000e+00> : vector<128x32xf32>
    %25 = tpu.matmul %23, %24, %cst_16 {dimension_numbers = #tpu.dot_dimension_numbers<[1], [0], [0], [1], [0, 0, 1, 1], [], []>} : vector<128x32xbf16>, vector<32x32xbf16>, vector<128x32xf32> -> vector<128x32xf32>
    %c0_17 = arith.constant 0 : index
    %c0_18 = arith.constant 0 : index
    %26 = vector.load %arg8[%c0_17, %c0_18] : memref<1x32xf32, #tpu.memory_space<vmem>>, vector<1x32xf32>
    %27 = vector.broadcast %26 : vector<1x32xf32> to vector<128x32xf32>
    %28 = arith.addf %25, %27 : vector<128x32xf32>
    %29 = arith.negf %28 : vector<128x32xf32>
    %30 = math.exp %29 : vector<128x32xf32>
    %cst_19 = arith.constant 1.000000e+00 : f32
    %31 = vector.broadcast %cst_19 : f32 to vector<128x32xf32>
    %32 = arith.addf %31, %30 : vector<128x32xf32>
    %33 = arith.divf %31, %32 : vector<128x32xf32>
    %34 = arith.mulf %28, %33 : vector<128x32xf32>
    %c0_20 = arith.constant 0 : index
    %c0_21 = arith.constant 0 : index
    %35 = vector.load %arg9[%c0_20, %c0_21] : memref<1x32xf32, #tpu.memory_space<vmem>>, vector<1x32xf32>
    %36 = vector.broadcast %35 : vector<1x32xf32> to vector<128x32xf32>
    %37 = arith.mulf %34, %36 : vector<128x32xf32>
    %cst_22 = arith.constant dense<0.000000e+00> : vector<128xf32>
    %38 = vector.multi_reduction <add>, %37, %cst_22 [1] : vector<128x32xf32> to vector<128xf32>
    %39 = vector.shape_cast %38 : vector<128xf32> to vector<1x128xf32>
    %c0_23 = arith.constant 0 : index
    %c0_24 = arith.constant 0 : index
    %40 = vector.load %arg10[%c0_23, %c0_24] : memref<1x1xf32, #tpu.memory_space<vmem>>, vector<1x1xf32>
    %41 = vector.broadcast %40 : vector<1x1xf32> to vector<1x128xf32>
    %42 = arith.addf %39, %41 : vector<1x128xf32>
    %c0_25 = arith.constant 0 : index
    %c0_26 = arith.constant 0 : index
    %43 = vector.load %arg11[%c0_25, %c0_26] : memref<1x128xf32, #tpu.memory_space<vmem>>, vector<1x128xf32>
    tpu.vector_store %arg11[%c0_25, %c0_26], %42 {strides = array<i32>} : memref<1x128xf32, #tpu.memory_space<vmem>>, vector<1x128xf32>,
    return
  }
  func.func @transform_0(%arg0: i32) -> (i32, i32) {
    %c0_i32 = arith.constant 0 : i32
    %c0_i32_0 = arith.constant 0 : i32
    return %arg0, %c0_i32 : i32, i32
  }
  func.func @transform_1(%arg0: i32) -> (i32, i32) {
    %c0_i32 = arith.constant 0 : i32
    %c0_i32_0 = arith.constant 0 : i32
    return %arg0, %c0_i32 : i32, i32
  }
  func.func @transform_2(%arg0: i32) -> (i32, i32) {
    %c0_i32 = arith.constant 0 : i32
    %c0_i32_0 = arith.constant 0 : i32
    %c0_i32_1 = arith.constant 0 : i32
    return %c0_i32, %c0_i32_0 : i32, i32
  }
  func.func @transform_3(%arg0: i32) -> (i32, i32) {
    %c0_i32 = arith.constant 0 : i32
    %c0_i32_0 = arith.constant 0 : i32
    %c0_i32_1 = arith.constant 0 : i32
    return %c0_i32, %c0_i32_0 : i32, i32
  }
  func.func @transform_4(%arg0: i32) -> (i32, i32) {
    %c0_i32 = arith.constant 0 : i32
    %c0_i32_0 = arith.constant 0 : i32
    %c0_i32_1 = arith.constant 0 : i32
    return %c0_i32, %c0_i32_0 : i32, i32
  }
  func.func @transform_5(%arg0: i32) -> (i32, i32) {
    %c0_i32 = arith.constant 0 : i32
    %c0_i32_0 = arith.constant 0 : i32
    %c0_i32_1 = arith.constant 0 : i32
    return %c0_i32, %c0_i32_0 : i32, i32
  }
  func.func @transform_6(%arg0: i32) -> (i32, i32) {
    %c0_i32 = arith.constant 0 : i32
    %c0_i32_0 = arith.constant 0 : i32
    %c0_i32_1 = arith.constant 0 : i32
    return %c0_i32, %c0_i32_0 : i32, i32
  }
  func.func @transform_7(%arg0: i32) -> (i32, i32) {
    %c0_i32 = arith.constant 0 : i32
    %c0_i32_0 = arith.constant 0 : i32
    %c0_i32_1 = arith.constant 0 : i32
    return %c0_i32, %c0_i32_0 : i32, i32
  }
  func.func @transform_8(%arg0: i32) -> (i32, i32) {
    %c0_i32 = arith.constant 0 : i32
    %c0_i32_0 = arith.constant 0 : i32
    %c0_i32_1 = arith.constant 0 : i32
    return %c0_i32, %c0_i32_0 : i32, i32
  }
  func.func @transform_9(%arg0: i32) -> (i32, i32) {
    %c0_i32 = arith.constant 0 : i32
    %c0_i32_0 = arith.constant 0 : i32
    %c0_i32_1 = arith.constant 0 : i32
    return %c0_i32, %c0_i32_0 : i32, i32
  }
  func.func @transform_10(%arg0: i32) -> (i32, i32) {
    %c0_i32 = arith.constant 0 : i32
    %c0_i32_0 = arith.constant 0 : i32
    return %c0_i32, %arg0 : i32, i32
  }
}

</mosaic_0001>

<llo_original>
// kernel: tpu_custom_call.1
$region0: #{tpu_custom_call.1}
  #allocation0 [shape = 'u32[]', space=smem, size = 0x4, offset = 0x4, fixed_abs, tag = 'smem constant byte address 0x4 - core index']
  #allocation1 [shape = 'u32[144,128]{1,0:T(1,128)}', space=vmem, size = 0x12000, scoped, tag = 'internal scratch']
  #allocation2 [shape = 'f32[1,1]{1,0:T(1,128)S(1)}', space=vmem, size = 0x200, scoped, tag = 'scoped memory for tpu_custom_call.1']
  %s0 = inlined_call_operand.vmem [shape: bf16[1024,32], index: 0, kind: input, shape index: {}]
  %s1 = inlined_call_operand.vmem [shape: f32[1024,1], index: 1, kind: input, shape index: {}]
  %s2 = inlined_call_operand.vmem [shape: bf16[32,32], index: 2, kind: input, shape index: {}]
  %s3 = inlined_call_operand.vmem [shape: f32[1,32], index: 3, kind: input, shape index: {}]
  %s4 = inlined_call_operand.vmem [shape: bf16[32,32], index: 4, kind: input, shape index: {}]
  %s5 = inlined_call_operand.vmem [shape: f32[1,32], index: 5, kind: input, shape index: {}]
  %s6 = inlined_call_operand.vmem [shape: bf16[32,32], index: 6, kind: input, shape index: {}]
  %s7 = inlined_call_operand.vmem [shape: f32[1,32], index: 7, kind: input, shape index: {}]
  %s8 = inlined_call_operand.vmem [shape: f32[1,32], index: 8, kind: input, shape index: {}]
  %s9 = inlined_call_operand.<no memory space> [shape: f32[1,1], index: 9, kind: input, shape index: {}]
  %s10 = inlined_call_operand.hbm [shape: f32[1,128], index: 10, kind: output, shape index: {}]
  %s11 = sld [smem:[#allocation0]]
  $region50: #{tpu_custom_call.1} parent=0
    _
  %s13 = ssub.s32 1, %s11
  %s14 = scalar_select 0, %s13, %s11
  %v15 = vstv %s9
  %16 = vst [vmem:[#allocation2] sm:$0x1] %v15
  $region1: #{tpu_custom_call.1} parent=0
    #allocation3 [shape = 'u8[512]{0}', space=vmem, size = 0x400, scoped, tag = 'output window, operand 0, single buffered']
    #allocation4 [shape = 's32[1]{0}', space=sflag, size = 0x4, scoped, tag = 'scoped memory for tpu_custom_call.1']
    %17 = vsyncpa [#allocation4], 0
    // Predicated region
    $region2: #{tpu_custom_call.1} parent=1 // pred_check
      _
    $region3: #{tpu_custom_call.1} parent=1 // pred_check_branch
      %19 = sbr.rel (0) target = $region5
    $region4: #{tpu_custom_call.1} parent=1 // pred_region
      _
    $region5: #{tpu_custom_call.1} parent=1 // pred_fallthru
      _
    // Predicated region
    $region6: #{tpu_custom_call.1} parent=1 // pred_check
      _
    $region7: #{tpu_custom_call.1} parent=1 // pred_check_branch
      %21 = sbr.rel (0) target = $region9
    $region8: #{tpu_custom_call.1} parent=1 // pred_region
      _
    $region9: #{tpu_custom_call.1} parent=1 // pred_fallthru
      _
    // Predicated region
    $region10: #{tpu_custom_call.1} parent=1 // pred_check
      _
    $region11: #{tpu_custom_call.1} parent=1 // pred_check_branch
      %23 = sbr.rel (0) target = $region13
    $region12: #{tpu_custom_call.1} parent=1 // pred_region
      _
    $region13: #{tpu_custom_call.1} parent=1 // pred_fallthru
      _
    // Predicated region
    $region14: #{tpu_custom_call.1} parent=1 // pred_check
      _
    $region15: #{tpu_custom_call.1} parent=1 // pred_check_branch
      %25 = sbr.rel (0) target = $region17
    $region16: #{tpu_custom_call.1} parent=1 // pred_region
      _
    $region17: #{tpu_custom_call.1} parent=1 // pred_fallthru
      _
    // Predicated region
    $region18: #{tpu_custom_call.1} parent=1 // pred_check
      _
    $region19: #{tpu_custom_call.1} parent=1 // pred_check_branch
      %27 = sbr.rel (0) target = $region21
    $region20: #{tpu_custom_call.1} parent=1 // pred_region
      _
    $region21: #{tpu_custom_call.1} parent=1 // pred_fallthru
      _
    // Predicated region
    $region22: #{tpu_custom_call.1} parent=1 // pred_check
      _
    $region23: #{tpu_custom_call.1} parent=1 // pred_check_branch
      %29 = sbr.rel (0) target = $region25
    $region24: #{tpu_custom_call.1} parent=1 // pred_region
      _
    $region25: #{tpu_custom_call.1} parent=1 // pred_fallthru
      _
    // Predicated region
    $region26: #{tpu_custom_call.1} parent=1 // pred_check
      _
    $region27: #{tpu_custom_call.1} parent=1 // pred_check_branch
      %31 = sbr.rel (0) target = $region29
    $region28: #{tpu_custom_call.1} parent=1 // pred_region
      _
    $region29: #{tpu_custom_call.1} parent=1 // pred_fallthru
      _
    // Predicated region
    $region30: #{tpu_custom_call.1} parent=1 // pred_check
      _
    $region31: #{tpu_custom_call.1} parent=1 // pred_check_branch
      %33 = sbr.rel (0) target = $region33
    $region32: #{tpu_custom_call.1} parent=1 // pred_region
      _
    $region33: #{tpu_custom_call.1} parent=1 // pred_fallthru
      _
    // Predicated region
    $region34: #{tpu_custom_call.1} parent=1 // pred_check
      _
    $region35: #{tpu_custom_call.1} parent=1 // pred_check_branch
      %35 = sbr.rel (0) target = $region37
    $region36: #{tpu_custom_call.1} parent=1 // pred_region
      _
    $region37: #{tpu_custom_call.1} parent=1 // pred_fallthru
      _
    // Predicated region
    $region38: #{tpu_custom_call.1} parent=1 // pred_check
      _
    $region39: #{tpu_custom_call.1} parent=1 // pred_check_branch
      %37 = sbr.rel (0) target = $region41
    $region40: #{tpu_custom_call.1} parent=1 // pred_region
      _
    $region41: #{tpu_custom_call.1} parent=1 // pred_fallthru
      _
    %v39 = vld [vmem:[%s0] sm:$0xf]
    %v40 = vld [vmem:[%s0 + $0x4] sm:$0xf]
    %v41 = vld [vmem:[%s0 + $0x8] sm:$0xf]
    %v42 = vld [vmem:[%s0 + $0xc] sm:$0xf]
    %v43 = vld [vmem:[%s0 + $0x10] sm:$0xf]
    %v44 = vld [vmem:[%s0 + $0x14] sm:$0xf]
    %v45 = vld [vmem:[%s0 + $0x18] sm:$0xf]
    %v46 = vld [vmem:[%s0 + $0x1c] sm:$0xf]
    %v47 = vld [vmem:[%s0 + $0x20] sm:$0xf]
    %v48 = vld [vmem:[%s0 + $0x24] sm:$0xf]
    %v49 = vld [vmem:[%s0 + $0x28] sm:$0xf]
    %v50 = vld [vmem:[%s0 + $0x2c] sm:$0xf]
    %v51 = vld [vmem:[%s0 + $0x30] sm:$0xf]
    %v52 = vld [vmem:[%s0 + $0x34] sm:$0xf]
    %v53 = vld [vmem:[%s0 + $0x38] sm:$0xf]
    %v54 = vld [vmem:[%s0 + $0x3c] sm:$0xf]
    %v55 = vld [vmem:[%s0 + $0x40] sm:$0xf]
    %v56 = vld [vmem:[%s0 + $0x44] sm:$0xf]
    %v57 = vld [vmem:[%s0 + $0x48] sm:$0xf]
    %v58 = vld [vmem:[%s0 + $0x4c] sm:$0xf]
    %v59 = vld [vmem:[%s0 + $0x50] sm:$0xf]
    %v60 = vld [vmem:[%s0 + $0x54] sm:$0xf]
    %v61 = vld [vmem:[%s0 + $0x58] sm:$0xf]
    %v62 = vld [vmem:[%s0 + $0x5c] sm:$0xf]
    %v63 = vld [vmem:[%s0 + $0x60] sm:$0xf]
    %v64 = vld [vmem:[%s0 + $0x64] sm:$0xf]
    %v65 = vld [vmem:[%s0 + $0x68] sm:$0xf]
    %v66 = vld [vmem:[%s0 + $0x6c] sm:$0xf]
    %v67 = vld [vmem:[%s0 + $0x70] sm:$0xf]
    %v68 = vld [vmem:[%s0 + $0x74] sm:$0xf]
    %v69 = vld [vmem:[%s0 + $0x78] sm:$0xf]
    %v70 = vld [vmem:[%s0 + $0x7c] sm:$0xf]
    %v71 = vld [vmem:[%s0 + $0x80] sm:$0xf]
    %v72 = vld [vmem:[%s0 + $0x84] sm:$0xf]
    %v73 = vld [vmem:[%s0 + $0x88] sm:$0xf]
    %v74 = vld [vmem:[%s0 + $0x8c] sm:$0xf]
    %v75 = vld [vmem:[%s0 + $0x90] sm:$0xf]
    %v76 = vld [vmem:[%s0 + $0x94] sm:$0xf]
    %v77 = vld [vmem:[%s0 + $0x98] sm:$0xf]
    %v78 = vld [vmem:[%s0 + $0x9c] sm:$0xf]
    %v79 = vld [vmem:[%s0 + $0xa0] sm:$0xf]
    %v80 = vld [vmem:[%s0 + $0xa4] sm:$0xf]
    %v81 = vld [vmem:[%s0 + $0xa8] sm:$0xf]
    %v82 = vld [vmem:[%s0 + $0xac] sm:$0xf]
    %v83 = vld [vmem:[%s0 + $0xb0] sm:$0xf]
    %v84 = vld [vmem:[%s0 + $0xb4] sm:$0xf]
    %v85 = vld [vmem:[%s0 + $0xb8] sm:$0xf]
    %v86 = vld [vmem:[%s0 + $0xbc] sm:$0xf]
    %v87 = vld [vmem:[%s0 + $0xc0] sm:$0xf]
    %v88 = vld [vmem:[%s0 + $0xc4] sm:$0xf]
    %v89 = vld [vmem:[%s0 + $0xc8] sm:$0xf]
    %v90 = vld [vmem:[%s0 + $0xcc] sm:$0xf]
    %v91 = vld [vmem:[%s0 + $0xd0] sm:$0xf]
    %v92 = vld [vmem:[%s0 + $0xd4] sm:$0xf]
    %v93 = vld [vmem:[%s0 + $0xd8] sm:$0xf]
    %v94 = vld [vmem:[%s0 + $0xdc] sm:$0xf]
    %v95 = vld [vmem:[%s0 + $0xe0] sm:$0xf]
    %v96 = vld [vmem:[%s0 + $0xe4] sm:$0xf]
    %v97 = vld [vmem:[%s0 + $0xe8] sm:$0xf]
    %v98 = vld [vmem:[%s0 + $0xec] sm:$0xf]
    %v99 = vld [vmem:[%s0 + $0xf0] sm:$0xf]
    %v100 = vld [vmem:[%s0 + $0xf4] sm:$0xf]
    %v101 = vld [vmem:[%s0 + $0xf8] sm:$0xf]
    %v102 = vld [vmem:[%s0 + $0xfc] sm:$0xf]
    %v103 = vld [vmem:[%s0 + $0x100] sm:$0xf]
    %v104 = vld [vmem:[%s0 + $0x104] sm:$0xf]
    %v105 = vld [vmem:[%s0 + $0x108] sm:$0xf]
    %v106 = vld [vmem:[%s0 + $0x10c] sm:$0xf]
    %v107 = vld [vmem:[%s0 + $0x110] sm:$0xf]
    %v108 = vld [vmem:[%s0 + $0x114] sm:$0xf]
    %v109 = vld [vmem:[%s0 + $0x118] sm:$0xf]
    %v110 = vld [vmem:[%s0 + $0x11c] sm:$0xf]
    %v111 = vld [vmem:[%s0 + $0x120] sm:$0xf]
    %v112 = vld [vmem:[%s0 + $0x124] sm:$0xf]
    %v113 = vld [vmem:[%s0 + $0x128] sm:$0xf]
    %v114 = vld [vmem:[%s0 + $0x12c] sm:$0xf]
    %v115 = vld [vmem:[%s0 + $0x130] sm:$0xf]
    %v116 = vld [vmem:[%s0 + $0x134] sm:$0xf]
    %v117 = vld [vmem:[%s0 + $0x138] sm:$0xf]
    %v118 = vld [vmem:[%s0 + $0x13c] sm:$0xf]
    %v119 = vld [vmem:[%s0 + $0x140] sm:$0xf]
    %v120 = vld [vmem:[%s0 + $0x144] sm:$0xf]
    %v121 = vld [vmem:[%s0 + $0x148] sm:$0xf]
    %v122 = vld [vmem:[%s0 + $0x14c] sm:$0xf]
    %v123 = vld [vmem:[%s0 + $0x150] sm:$0xf]
    %v124 = vld [vmem:[%s0 + $0x154] sm:$0xf]
    %v125 = vld [vmem:[%s0 + $0x158] sm:$0xf]
    %v126 = vld [vmem:[%s0 + $0x15c] sm:$0xf]
    %v127 = vld [vmem:[%s0 + $0x160] sm:$0xf]
    %v128 = vld [vmem:[%s0 + $0x164] sm:$0xf]
    %v129 = vld [vmem:[%s0 + $0x168] sm:$0xf]
    %v130 = vld [vmem:[%s0 + $0x16c] sm:$0xf]
    %v131 = vld [vmem:[%s0 + $0x170] sm:$0xf]
    %v132 = vld [vmem:[%s0 + $0x174] sm:$0xf]
    %v133 = vld [vmem:[%s0 + $0x178] sm:$0xf]
    %v134 = vld [vmem:[%s0 + $0x17c] sm:$0xf]
    %v135 = vld [vmem:[%s0 + $0x180] sm:$0xf]
    %v136 = vld [vmem:[%s0 + $0x184] sm:$0xf]
    %v137 = vld [vmem:[%s0 + $0x188] sm:$0xf]
    %v138 = vld [vmem:[%s0 + $0x18c] sm:$0xf]
    %v139 = vld [vmem:[%s0 + $0x190] sm:$0xf]
    %v140 = vld [vmem:[%s0 + $0x194] sm:$0xf]
    %v141 = vld [vmem:[%s0 + $0x198] sm:$0xf]
    %v142 = vld [vmem:[%s0 + $0x19c] sm:$0xf]
    %v143 = vld [vmem:[%s0 + $0x1a0] sm:$0xf]
    %v144 = vld [vmem:[%s0 + $0x1a4] sm:$0xf]
    %v145 = vld [vmem:[%s0 + $0x1a8] sm:$0xf]
    %v146 = vld [vmem:[%s0 + $0x1ac] sm:$0xf]
    %v147 = vld [vmem:[%s0 + $0x1b0] sm:$0xf]
    %v148 = vld [vmem:[%s0 + $0x1b4] sm:$0xf]
    %v149 = vld [vmem:[%s0 + $0x1b8] sm:$0xf]
    %v150 = vld [vmem:[%s0 + $0x1bc] sm:$0xf]
    %v151 = vld [vmem:[%s0 + $0x1c0] sm:$0xf]
    %v152 = vld [vmem:[%s0 + $0x1c4] sm:$0xf]
    %v153 = vld [vmem:[%s0 + $0x1c8] sm:$0xf]
    %v154 = vld [vmem:[%s0 + $0x1cc] sm:$0xf]
    %v155 = vld [vmem:[%s0 + $0x1d0] sm:$0xf]
    %v156 = vld [vmem:[%s0 + $0x1d4] sm:$0xf]
    %v157 = vld [vmem:[%s0 + $0x1d8] sm:$0xf]
    %v158 = vld [vmem:[%s0 + $0x1dc] sm:$0xf]
    %v159 = vld [vmem:[%s0 + $0x1e0] sm:$0xf]
    %v160 = vld [vmem:[%s0 + $0x1e4] sm:$0xf]
    %v161 = vld [vmem:[%s0 + $0x1e8] sm:$0xf]
    %v162 = vld [vmem:[%s0 + $0x1ec] sm:$0xf]
    %v163 = vld [vmem:[%s0 + $0x1f0] sm:$0xf]
    %v164 = vld [vmem:[%s0 + $0x1f4] sm:$0xf]
    %v165 = vld [vmem:[%s0 + $0x1f8] sm:$0xf]
    %v166 = vld [vmem:[%s0 + $0x1fc] sm:$0xf]
    %v167 = vld [vmem:[%s2] sm:$0xf]
    %v168 = vld [vmem:[%s2 + $0x4] sm:$0xf]
    %v169 = vld [vmem:[%s2 + $0x8] sm:$0xf]
    %v170 = vld [vmem:[%s2 + $0xc] sm:$0xf]
    %v171 = vld [vmem:[%s3] sm:$0x1]
    %v173 = vlaneseq
    %v174 = vshrl.u32 %v173, 7
    %v175 = vsub.s32 0, %v174
    %v176 = vrot.slane %v171, %v175
    %v306 = vunpack.c.l.b16 %v39
    %v307 = vunpack.c.l.b16 %v40
    %v308 = vunpack.c.l.b16 %v41
    %v309 = vunpack.c.l.b16 %v42
    %v310 = vunpack.c.l.b16 %v43
    %v311 = vunpack.c.l.b16 %v44
    %v312 = vunpack.c.l.b16 %v45
    %v313 = vunpack.c.l.b16 %v46
    %v314 = vunpack.c.l.b16 %v47
    %v315 = vunpack.c.l.b16 %v48
    %v316 = vunpack.c.l.b16 %v49
    %v317 = vunpack.c.l.b16 %v50
    %v318 = vunpack.c.l.b16 %v51
    %v319 = vunpack.c.l.b16 %v52
    %v320 = vunpack.c.l.b16 %v53
    %v321 = vunpack.c.l.b16 %v54
    %v322 = vunpack.c.l.b16 %v55
    %v323 = vunpack.c.l.b16 %v56
    %v324 = vunpack.c.l.b16 %v57
    %v325 = vunpack.c.l.b16 %v58
    %v326 = vunpack.c.l.b16 %v59
    %v327 = vunpack.c.l.b16 %v60
    %v328 = vunpack.c.l.b16 %v61
    %v329 = vunpack.c.l.b16 %v62
    %v330 = vunpack.c.l.b16 %v63
    %v331 = vunpack.c.l.b16 %v64
    %v332 = vunpack.c.l.b16 %v65
    %v333 = vunpack.c.l.b16 %v66
    %v334 = vunpack.c.l.b16 %v67
    %v335 = vunpack.c.l.b16 %v68
    %v336 = vunpack.c.l.b16 %v69
    %v337 = vunpack.c.l.b16 %v70
    %v338 = vunpack.c.l.b16 %v71
    %v339 = vunpack.c.l.b16 %v72
    %v340 = vunpack.c.l.b16 %v73
    %v341 = vunpack.c.l.b16 %v74
    %v342 = vunpack.c.l.b16 %v75
    %v343 = vunpack.c.l.b16 %v76
    %v344 = vunpack.c.l.b16 %v77
    %v345 = vunpack.c.l.b16 %v78
    %v346 = vunpack.c.l.b16 %v79
    %v347 = vunpack.c.l.b16 %v80
    %v348 = vunpack.c.l.b16 %v81
    %v349 = vunpack.c.l.b16 %v82
    %v350 = vunpack.c.l.b16 %v83
    %v351 = vunpack.c.l.b16 %v84
    %v352 = vunpack.c.l.b16 %v85
    %v353 = vunpack.c.l.b16 %v86
    %v354 = vunpack.c.l.b16 %v87
    %v355 = vunpack.c.l.b16 %v88
    %v356 = vunpack.c.l.b16 %v89
    %v357 = vunpack.c.l.b16 %v90
    %v358 = vunpack.c.l.b16 %v91
    %v359 = vunpack.c.l.b16 %v92
    %v360 = vunpack.c.l.b16 %v93
    %v361 = vunpack.c.l.b16 %v94
    %v362 = vunpack.c.l.b16 %v95
    %v363 = vunpack.c.l.b16 %v96
    %v364 = vunpack.c.l.b16 %v97
    %v365 = vunpack.c.l.b16 %v98
    %v366 = vunpack.c.l.b16 %v99
    %v367 = vunpack.c.l.b16 %v100
    %v368 = vunpack.c.l.b16 %v101
    %v369 = vunpack.c.l.b16 %v102
    %v370 = vunpack.c.l.b16 %v103
    %v371 = vunpack.c.l.b16 %v104
    %v372 = vunpack.c.l.b16 %v105
    %v373 = vunpack.c.l.b16 %v106
    %v374 = vunpack.c.l.b16 %v107
    %v375 = vunpack.c.l.b16 %v108
    %v376 = vunpack.c.l.b16 %v109
    %v377 = vunpack.c.l.b16 %v110
    %v378 = vunpack.c.l.b16 %v111
    %v379 = vunpack.c.l.b16 %v112
    %v380 = vunpack.c.l.b16 %v113
    %v381 = vunpack.c.l.b16 %v114
    %v382 = vunpack.c.l.b16 %v115
    %v383 = vunpack.c.l.b16 %v116
    %v384 = vunpack.c.l.b16 %v117
    %v385 = vunpack.c.l.b16 %v118
    %v386 = vunpack.c.l.b16 %v119
    %v387 = vunpack.c.l.b16 %v120
    %v388 = vunpack.c.l.b16 %v121
    %v389 = vunpack.c.l.b16 %v122
    %v390 = vunpack.c.l.b16 %v123
    %v391 = vunpack.c.l.b16 %v124
    %v392 = vunpack.c.l.b16 %v125
    %v393 = vunpack.c.l.b16 %v126
    %v394 = vunpack.c.l.b16 %v127
    %v395 = vunpack.c.l.b16 %v128
    %v396 = vunpack.c.l.b16 %v129
    %v397 = vunpack.c.l.b16 %v130
    %v398 = vunpack.c.l.b16 %v131
    %v399 = vunpack.c.l.b16 %v132
    %v400 = vunpack.c.l.b16 %v133
    %v401 = vunpack.c.l.b16 %v134
    %v402 = vunpack.c.l.b16 %v135
    %v403 = vunpack.c.l.b16 %v136
    %v404 = vunpack.c.l.b16 %v137
    %v405 = vunpack.c.l.b16 %v138
    %v406 = vunpack.c.l.b16 %v139
    %v407 = vunpack.c.l.b16 %v140
    %v408 = vunpack.c.l.b16 %v141
    %v409 = vunpack.c.l.b16 %v142
    %v410 = vunpack.c.l.b16 %v143
    %v411 = vunpack.c.l.b16 %v144
    %v412 = vunpack.c.l.b16 %v145
    %v413 = vunpack.c.l.b16 %v146
    %v414 = vunpack.c.l.b16 %v147
    %v415 = vunpack.c.l.b16 %v148
    %v416 = vunpack.c.l.b16 %v149
    %v417 = vunpack.c.l.b16 %v150
    %v418 = vunpack.c.l.b16 %v151
    %v419 = vunpack.c.l.b16 %v152
    %v420 = vunpack.c.l.b16 %v153
    %v421 = vunpack.c.l.b16 %v154
    %v422 = vunpack.c.l.b16 %v155
    %v423 = vunpack.c.l.b16 %v156
    %v424 = vunpack.c.l.b16 %v157
    %v425 = vunpack.c.l.b16 %v158
    %v426 = vunpack.c.l.b16 %v159
    %v427 = vunpack.c.l.b16 %v160
    %v428 = vunpack.c.l.b16 %v161
    %v429 = vunpack.c.l.b16 %v162
    %v430 = vunpack.c.l.b16 %v163
    %v431 = vunpack.c.l.b16 %v164
    %v432 = vunpack.c.l.b16 %v165
    %v433 = vunpack.c.l.b16 %v166
    %v434 = vpack.c.b16 %v307, %v306
    %v435 = vpack.c.b16 %v309, %v308
    %v436 = vpack.c.b16 %v311, %v310
    %v437 = vpack.c.b16 %v313, %v312
    %v438 = vpack.c.b16 %v315, %v314
    %v439 = vpack.c.b16 %v317, %v316
    %v440 = vpack.c.b16 %v319, %v318
    %v441 = vpack.c.b16 %v321, %v320
    %v442 = vpack.c.b16 %v323, %v322
    %v443 = vpack.c.b16 %v325, %v324
    %v444 = vpack.c.b16 %v327, %v326
    %v445 = vpack.c.b16 %v329, %v328
    %v446 = vpack.c.b16 %v331, %v330
    %v447 = vpack.c.b16 %v333, %v332
    %v448 = vpack.c.b16 %v335, %v334
    %v449 = vpack.c.b16 %v337, %v336
    %v450 = vpack.c.b16 %v339, %v338
    %v451 = vpack.c.b16 %v341, %v340
    %v452 = vpack.c.b16 %v343, %v342
    %v453 = vpack.c.b16 %v345, %v344
    %v454 = vpack.c.b16 %v347, %v346
    %v455 = vpack.c.b16 %v349, %v348
    %v456 = vpack.c.b16 %v351, %v350
    %v457 = vpack.c.b16 %v353, %v352
    %v458 = vpack.c.b16 %v355, %v354
    %v459 = vpack.c.b16 %v357, %v356
    %v460 = vpack.c.b16 %v359, %v358
    %v461 = vpack.c.b16 %v361, %v360
    %v462 = vpack.c.b16 %v363, %v362
    %v463 = vpack.c.b16 %v365, %v364
    %v464 = vpack.c.b16 %v367, %v366
    %v465 = vpack.c.b16 %v369, %v368
    %v466 = vpack.c.b16 %v371, %v370
    %v467 = vpack.c.b16 %v373, %v372
    %v468 = vpack.c.b16 %v375, %v374
    %v469 = vpack.c.b16 %v377, %v376
    %v470 = vpack.c.b16 %v379, %v378
    %v471 = vpack.c.b16 %v381, %v380
    %v472 = vpack.c.b16 %v383, %v382
    %v473 = vpack.c.b16 %v385, %v384
    %v474 = vpack.c.b16 %v387, %v386
    %v475 = vpack.c.b16 %v389, %v388
    %v476 = vpack.c.b16 %v391, %v390
    %v477 = vpack.c.b16 %v393, %v392
    %v478 = vpack.c.b16 %v395, %v394
    %v479 = vpack.c.b16 %v397, %v396
    %v480 = vpack.c.b16 %v399, %v398
    %v481 = vpack.c.b16 %v401, %v400
    %v482 = vpack.c.b16 %v403, %v402
    %v483 = vpack.c.b16 %v405, %v404
    %v484 = vpack.c.b16 %v407, %v406
    %v485 = vpack.c.b16 %v409, %v408
    %v486 = vpack.c.b16 %v411, %v410
    %v487 = vpack.c.b16 %v413, %v412
    %v488 = vpack.c.b16 %v415, %v414
    %v489 = vpack.c.b16 %v417, %v416
    %v490 = vpack.c.b16 %v419, %v418
    %v491 = vpack.c.b16 %v421, %v420
    %v492 = vpack.c.b16 %v423, %v422
    %v493 = vpack.c.b16 %v425, %v424
    %v494 = vpack.c.b16 %v427, %v426
    %v495 = vpack.c.b16 %v429, %v428
    %v496 = vpack.c.b16 %v431, %v430
    %v497 = vpack.c.b16 %v433, %v432
    %v502 = vunpack.c.l.b16 %v167
    %v503 = vunpack.c.l.b16 %v168
    %v504 = vunpack.c.l.b16 %v169
    %v505 = vunpack.c.l.b16 %v170
    %v506 = vpack.c.b16 %v503, %v502
    %v507 = vpack.c.b16 %v505, %v504
    %vm510 = vcmask 261120
    %v512 = vsel %vm510, %v434, 0
    %v515 = vsel %vm510, %v435, 0
    %v518 = vsel %vm510, %v436, 0
    %v521 = vsel %vm510, %v437, 0
    %v524 = vsel %vm510, %v438, 0
    %v527 = vsel %vm510, %v439, 0
    %v530 = vsel %vm510, %v440, 0
    %v533 = vsel %vm510, %v441, 0
    %v536 = vsel %vm510, %v442, 0
    %v539 = vsel %vm510, %v443, 0
    %v542 = vsel %vm510, %v444, 0
    %v545 = vsel %vm510, %v445, 0
    %v548 = vsel %vm510, %v446, 0
    %v551 = vsel %vm510, %v447, 0
    %v554 = vsel %vm510, %v448, 0
    %v557 = vsel %vm510, %v449, 0
    %v560 = vsel %vm510, %v450, 0
    %v563 = vsel %vm510, %v451, 0
    %v566 = vsel %vm510, %v452, 0
    %v569 = vsel %vm510, %v453, 0
    %v572 = vsel %vm510, %v454, 0
    %v575 = vsel %vm510, %v455, 0
    %v578 = vsel %vm510, %v456, 0
    %v581 = vsel %vm510, %v457, 0
    %v584 = vsel %vm510, %v458, 0
    %v587 = vsel %vm510, %v459, 0
    %v590 = vsel %vm510, %v460, 0
    %v593 = vsel %vm510, %v461, 0
    %v596 = vsel %vm510, %v462, 0
    %v599 = vsel %vm510, %v463, 0
    %v602 = vsel %vm510, %v464, 0
    %v605 = vsel %vm510, %v465, 0
    %v608 = vsel %vm510, %v466, 0
    %v611 = vsel %vm510, %v467, 0
    %v614 = vsel %vm510, %v468, 0
    %v617 = vsel %vm510, %v469, 0
    %v620 = vsel %vm510, %v470, 0
    %v623 = vsel %vm510, %v471, 0
    %v626 = vsel %vm510, %v472, 0
    %v629 = vsel %vm510, %v473, 0
    %v632 = vsel %vm510, %v474, 0
    %v635 = vsel %vm510, %v475, 0
    %v638 = vsel %vm510, %v476, 0
    %v641 = vsel %vm510, %v477, 0
    %v644 = vsel %vm510, %v478, 0
    %v647 = vsel %vm510, %v479, 0
    %v650 = vsel %vm510, %v480, 0
    %v653 = vsel %vm510, %v481, 0
    %v656 = vsel %vm510, %v482, 0
    %v659 = vsel %vm510, %v483, 0
    %v662 = vsel %vm510, %v484, 0
    %v665 = vsel %vm510, %v485, 0
    %v668 = vsel %vm510, %v486, 0
    %v671 = vsel %vm510, %v487, 0
    %v674 = vsel %vm510, %v488, 0
    %v677 = vsel %vm510, %v489, 0
    %v680 = vsel %vm510, %v490, 0
    %v683 = vsel %vm510, %v491, 0
    %v686 = vsel %vm510, %v492, 0
    %v689 = vsel %vm510, %v493, 0
    %v692 = vsel %vm510, %v494, 0
    %v695 = vsel %vm510, %v495, 0
    %v698 = vsel %vm510, %v496, 0
    %v701 = vsel %vm510, %v497, 0
    %703 = vmatprep.subr.bf16.mxu0 0
    %704 = vmatpush1.bf16.msra.mxu0 0
    %705 = vmatprep.subr.bf16.mxu0 0
    %706 = vmatpush1.bf16.msra.mxu0 0
    %707 = vmatprep.subr.bf16.mxu0 0
    %708 = vmatpush1.bf16.msra.mxu0 0
    %709 = vmatprep.subr.bf16.mxu0 0
    %710 = vmatpush1.bf16.msra.mxu0 0
    %711 = vmatprep.subr.bf16.mxu0 0
    %712 = vmatpush1.bf16.msra.mxu0 0
    %713 = vmatprep.subr.bf16.mxu0 0
    %714 = vmatpush1.bf16.msra.mxu0 0
    %715 = vmatprep.subr.bf16.mxu0 0
    %716 = vmatpush1.bf16.msra.mxu0 %v507
    %717 = vmatprep.subr.bf16.mxu0 0
    %718 = vmatpush1.bf16.msra.mxu0 %v506
    %719 = vmatprep.subr.bf16.mxu0 0
    %720 = vmatpush2.bf16.msra.mxu0 0
    %721 = vmatprep.subr.bf16.mxu0 0
    %722 = vmatpush2.bf16.msra.mxu0 0
    %723 = vmatprep.subr.bf16.mxu0 0
    %724 = vmatpush2.bf16.msra.mxu0 0
    %725 = vmatprep.subr.bf16.mxu0 0
    %726 = vmatpush2.bf16.msra.mxu0 0
    %727 = vmatprep.subr.bf16.mxu0 0
    %728 = vmatpush2.bf16.msra.mxu0 0
    %729 = vmatprep.subr.bf16.mxu0 0
    %730 = vmatpush2.bf16.msra.mxu0 0
    %731 = vmatprep.subr.bf16.mxu0 0
    %732 = vmatpush2.bf16.msra.mxu0 0
    %733 = vmatprep.subr.bf16.mxu0 0
    %734 = vmatpush2.bf16.msra.mxu0 0
    %735 = vmatprep.mubr.bf16.mxu0 0
    %736 = vmatmul.mubr.bf16.gmra.mxu0 %v512
    %v737 = vpop.f32.mrf.mxu0
    %v738 = vadd.f32 %v176, %v737
    %v739 = vpop.f32.mrf.mxu0
    %v740 = vpop.f32.mrf.mxu0
    %v741 = vadd.f32 %v176, %v740
    %v742 = vpop.f32.mrf.mxu0
    %743 = vmatprep.mubr.bf16.mxu0 0
    %744 = vmatmul.mubr.bf16.gmra.mxu0 %v515
    %v745 = vpop.f32.mrf.mxu0
    %v746 = vadd.f32 %v176, %v745
    %v747 = vpop.f32.mrf.mxu0
    %v748 = vpop.f32.mrf.mxu0
    %v749 = vadd.f32 %v176, %v748
    %v750 = vpop.f32.mrf.mxu0
    %751 = vmatprep.mubr.bf16.mxu0 0
    %752 = vmatmul.mubr.bf16.gmra.mxu0 %v518
    %v753 = vpop.f32.mrf.mxu0
    %v754 = vadd.f32 %v176, %v753
    %v755 = vpop.f32.mrf.mxu0
    %v756 = vpop.f32.mrf.mxu0
    %v757 = vadd.f32 %v176, %v756
    %v758 = vpop.f32.mrf.mxu0
    %759 = vmatprep.mubr.bf16.mxu0 0
    %760 = vmatmul.mubr.bf16.gmra.mxu0 %v521
    %v761 = vpop.f32.mrf.mxu0
    %v762 = vadd.f32 %v176, %v761
    %v763 = vpop.f32.mrf.mxu0
    %v764 = vpop.f32.mrf.mxu0
    %v765 = vadd.f32 %v176, %v764
    %v766 = vpop.f32.mrf.mxu0
    %767 = vmatprep.mubr.bf16.mxu0 0
    %768 = vmatmul.mubr.bf16.gmra.mxu0 %v524
    %v769 = vpop.f32.mrf.mxu0
    %v770 = vadd.f32 %v176, %v769
    %v771 = vpop.f32.mrf.mxu0
    %v772 = vpop.f32.mrf.mxu0
    %v773 = vadd.f32 %v176, %v772
    %v774 = vpop.f32.mrf.mxu0
    %775 = vmatprep.mubr.bf16.mxu0 0
    %776 = vmatmul.mubr.bf16.gmra.mxu0 %v527
    %v777 = vpop.f32.mrf.mxu0
    %v778 = vadd.f32 %v176, %v777
    %v779 = vpop.f32.mrf.mxu0
    %v780 = vpop.f32.mrf.mxu0
    %v781 = vadd.f32 %v176, %v780
    %v782 = vpop.f32.mrf.mxu0
    %783 = vmatprep.mubr.bf16.mxu0 0
    %784 = vmatmul.mubr.bf16.gmra.mxu0 %v530
    %v785 = vpop.f32.mrf.mxu0
    %v786 = vadd.f32 %v176, %v785
    %v787 = vpop.f32.mrf.mxu0
    %v788 = vpop.f32.mrf.mxu0
    %v789 = vadd.f32 %v176, %v788
    %v790 = vpop.f32.mrf.mxu0
    %791 = vmatprep.mubr.bf16.mxu0 0
    %792 = vmatmul.mubr.bf16.gmra.mxu0 %v533
    %v793 = vpop.f32.mrf.mxu0
    %v794 = vadd.f32 %v176, %v793
    %v795 = vpop.f32.mrf.mxu0
    %v796 = vpop.f32.mrf.mxu0
    %v797 = vadd.f32 %v176, %v796
    %v798 = vpop.f32.mrf.mxu0
    %799 = vmatprep.mubr.bf16.mxu0 0
    %800 = vmatmul.mubr.bf16.gmra.mxu0 %v536
    %v801 = vpop.f32.mrf.mxu0
    %v802 = vadd.f32 %v176, %v801
    %v803 = vpop.f32.mrf.mxu0
    %v804 = vpop.f32.mrf.mxu0
    %v805 = vadd.f32 %v176, %v804
    %v806 = vpop.f32.mrf.mxu0
    %807 = vmatprep.mubr.bf16.mxu0 0
    %808 = vmatmul.mubr.bf16.gmra.mxu0 %v539
    %v809 = vpop.f32.mrf.mxu0
    %v810 = vadd.f32 %v176, %v809
    %v811 = vpop.f32.mrf.mxu0
    %v812 = vpop.f32.mrf.mxu0
    %v813 = vadd.f32 %v176, %v812
    %v814 = vpop.f32.mrf.mxu0
    %815 = vmatprep.mubr.bf16.mxu0 0
    %816 = vmatmul.mubr.bf16.gmra.mxu0 %v542
    %v817 = vpop.f32.mrf.mxu0
    %v818 = vadd.f32 %v176, %v817
    %v819 = vpop.f32.mrf.mxu0
    %v820 = vpop.f32.mrf.mxu0
    %v821 = vadd.f32 %v176, %v820
    %v822 = vpop.f32.mrf.mxu0
    %823 = vmatprep.mubr.bf16.mxu0 0
    %824 = vmatmul.mubr.bf16.gmra.mxu0 %v545
    %v825 = vpop.f32.mrf.mxu0
    %v826 = vadd.f32 %v176, %v825
    %v827 = vpop.f32.mrf.mxu0
    %v828 = vpop.f32.mrf.mxu0
    %v829 = vadd.f32 %v176, %v828
    %v830 = vpop.f32.mrf.mxu0
    %831 = vmatprep.mubr.bf16.mxu0 0
    %832 = vmatmul.mubr.bf16.gmra.mxu0 %v548
    %v833 = vpop.f32.mrf.mxu0
    %v834 = vadd.f32 %v176, %v833
    %v835 = vpop.f32.mrf.mxu0
    %v836 = vpop.f32.mrf.mxu0
    %v837 = vadd.f32 %v176, %v836
    %v838 = vpop.f32.mrf.mxu0
    %839 = vmatprep.mubr.bf16.mxu0 0
    %840 = vmatmul.mubr.bf16.gmra.mxu0 %v551
    %v841 = vpop.f32.mrf.mxu0
    %v842 = vadd.f32 %v176, %v841
    %v843 = vpop.f32.mrf.mxu0
    %v844 = vpop.f32.mrf.mxu0
    %v845 = vadd.f32 %v176, %v844
    %v846 = vpop.f32.mrf.mxu0
    %847 = vmatprep.mubr.bf16.mxu0 0
    %848 = vmatmul.mubr.bf16.gmra.mxu0 %v554
    %v849 = vpop.f32.mrf.mxu0
    %v850 = vadd.f32 %v176, %v849
    %v851 = vpop.f32.mrf.mxu0
    %v852 = vpop.f32.mrf.mxu0
    %v853 = vadd.f32 %v176, %v852
    %v854 = vpop.f32.mrf.mxu0
    %855 = vmatprep.mubr.bf16.mxu0 0
    %856 = vmatmul.mubr.bf16.gmra.mxu0 %v557
    %v857 = vpop.f32.mrf.mxu0
    %v858 = vadd.f32 %v176, %v857
    %v859 = vpop.f32.mrf.mxu0
    %v860 = vpop.f32.mrf.mxu0
    %v861 = vadd.f32 %v176, %v860
    %v862 = vpop.f32.mrf.mxu0
    %863 = vmatprep.mubr.bf16.mxu0 0
    %864 = vmatmul.mubr.bf16.gmra.mxu0 %v560
    %v865 = vpop.f32.mrf.mxu0
    %v866 = vadd.f32 %v176, %v865
    %v867 = vpop.f32.mrf.mxu0
    %v868 = vpop.f32.mrf.mxu0
    %v869 = vadd.f32 %v176, %v868
    %v870 = vpop.f32.mrf.mxu0
    %871 = vmatprep.mubr.bf16.mxu0 0
    %872 = vmatmul.mubr.bf16.gmra.mxu0 %v563
    %v873 = vpop.f32.mrf.mxu0
    %v874 = vadd.f32 %v176, %v873
    %v875 = vpop.f32.mrf.mxu0
    %v876 = vpop.f32.mrf.mxu0
    %v877 = vadd.f32 %v176, %v876
    %v878 = vpop.f32.mrf.mxu0
    %879 = vmatprep.mubr.bf16.mxu0 0
    %880 = vmatmul.mubr.bf16.gmra.mxu0 %v566
    %v881 = vpop.f32.mrf.mxu0
    %v882 = vadd.f32 %v176, %v881
    %v883 = vpop.f32.mrf.mxu0
    %v884 = vpop.f32.mrf.mxu0
    %v885 = vadd.f32 %v176, %v884
    %v886 = vpop.f32.mrf.mxu0
    %887 = vmatprep.mubr.bf16.mxu0 0
    %888 = vmatmul.mubr.bf16.gmra.mxu0 %v569
    %v889 = vpop.f32.mrf.mxu0
    %v890 = vadd.f32 %v176, %v889
    %v891 = vpop.f32.mrf.mxu0
    %v892 = vpop.f32.mrf.mxu0
    %v893 = vadd.f32 %v176, %v892
    %v894 = vpop.f32.mrf.mxu0
    %895 = vmatprep.mubr.bf16.mxu0 0
    %896 = vmatmul.mubr.bf16.gmra.mxu0 %v572
    %v897 = vpop.f32.mrf.mxu0
    %v898 = vadd.f32 %v176, %v897
    %v899 = vpop.f32.mrf.mxu0
    %v900 = vpop.f32.mrf.mxu0
    %v901 = vadd.f32 %v176, %v900
    %v902 = vpop.f32.mrf.mxu0
    %903 = vmatprep.mubr.bf16.mxu0 0
    %904 = vmatmul.mubr.bf16.gmra.mxu0 %v575
    %v905 = vpop.f32.mrf.mxu0
    %v906 = vadd.f32 %v176, %v905
    %v907 = vpop.f32.mrf.mxu0
    %v908 = vpop.f32.mrf.mxu0
    %v909 = vadd.f32 %v176, %v908
    %v910 = vpop.f32.mrf.mxu0
    %911 = vmatprep.mubr.bf16.mxu0 0
    %912 = vmatmul.mubr.bf16.gmra.mxu0 %v578
    %v913 = vpop.f32.mrf.mxu0
    %v914 = vadd.f32 %v176, %v913
    %v915 = vpop.f32.mrf.mxu0
    %v916 = vpop.f32.mrf.mxu0
    %v917 = vadd.f32 %v176, %v916
    %v918 = vpop.f32.mrf.mxu0
    %919 = vmatprep.mubr.bf16.mxu0 0
    %920 = vmatmul.mubr.bf16.gmra.mxu0 %v581
    %v921 = vpop.f32.mrf.mxu0
    %v922 = vadd.f32 %v176, %v921
    %v923 = vpop.f32.mrf.mxu0
    %v924 = vpop.f32.mrf.mxu0
    %v925 = vadd.f32 %v176, %v924
    %v926 = vpop.f32.mrf.mxu0
    %927 = vmatprep.mubr.bf16.mxu0 0
    %928 = vmatmul.mubr.bf16.gmra.mxu0 %v584
    %v929 = vpop.f32.mrf.mxu0
    %v930 = vadd.f32 %v176, %v929
    %v931 = vpop.f32.mrf.mxu0
    %v932 = vpop.f32.mrf.mxu0
    %v933 = vadd.f32 %v176, %v932
    %v934 = vpop.f32.mrf.mxu0
    %935 = vmatprep.mubr.bf16.mxu0 0
    %936 = vmatmul.mubr.bf16.gmra.mxu0 %v587
    %v937 = vpop.f32.mrf.mxu0
    %v938 = vadd.f32 %v176, %v937
    %v939 = vpop.f32.mrf.mxu0
    %v940 = vpop.f32.mrf.mxu0
    %v941 = vadd.f32 %v176, %v940
    %v942 = vpop.f32.mrf.mxu0
    %943 = vmatprep.mubr.bf16.mxu0 0
    %944 = vmatmul.mubr.bf16.gmra.mxu0 %v590
    %v945 = vpop.f32.mrf.mxu0
    %v946 = vadd.f32 %v176, %v945
    %v947 = vpop.f32.mrf.mxu0
    %v948 = vpop.f32.mrf.mxu0
    %v949 = vadd.f32 %v176, %v948
    %v950 = vpop.f32.mrf.mxu0
    %951 = vmatprep.mubr.bf16.mxu0 0
    %952 = vmatmul.mubr.bf16.gmra.mxu0 %v593
    %v953 = vpop.f32.mrf.mxu0
    %v954 = vadd.f32 %v176, %v953
    %v955 = vpop.f32.mrf.mxu0
    %v956 = vpop.f32.mrf.mxu0
    %v957 = vadd.f32 %v176, %v956
    %v958 = vpop.f32.mrf.mxu0
    %959 = vmatprep.mubr.bf16.mxu0 0
    %960 = vmatmul.mubr.bf16.gmra.mxu0 %v596
    %v961 = vpop.f32.mrf.mxu0
    %v962 = vadd.f32 %v176, %v961
    %v963 = vpop.f32.mrf.mxu0
    %v964 = vpop.f32.mrf.mxu0
    %v965 = vadd.f32 %v176, %v964
    %v966 = vpop.f32.mrf.mxu0
    %967 = vmatprep.mubr.bf16.mxu0 0
    %968 = vmatmul.mubr.bf16.gmra.mxu0 %v599
    %v969 = vpop.f32.mrf.mxu0
    %v970 = vadd.f32 %v176, %v969
    %v971 = vpop.f32.mrf.mxu0
    %v972 = vpop.f32.mrf.mxu0
    %v973 = vadd.f32 %v176, %v972
    %v974 = vpop.f32.mrf.mxu0
    %975 = vmatprep.mubr.bf16.mxu0 0
    %976 = vmatmul.mubr.bf16.gmra.mxu0 %v602
    %v977 = vpop.f32.mrf.mxu0
    %v978 = vadd.f32 %v176, %v977
    %v979 = vpop.f32.mrf.mxu0
    %v980 = vpop.f32.mrf.mxu0
    %v981 = vadd.f32 %v176, %v980
    %v982 = vpop.f32.mrf.mxu0
    %983 = vmatprep.mubr.bf16.mxu0 0
    %984 = vmatmul.mubr.bf16.gmra.mxu0 %v605
    %v985 = vpop.f32.mrf.mxu0
    %v986 = vadd.f32 %v176, %v985
    %v987 = vpop.f32.mrf.mxu0
    %v988 = vpop.f32.mrf.mxu0
    %v989 = vadd.f32 %v176, %v988
    %v990 = vpop.f32.mrf.mxu0
    %991 = vmatprep.mubr.bf16.mxu0 0
    %992 = vmatmul.mubr.bf16.gmra.mxu0 %v608
    %v993 = vpop.f32.mrf.mxu0
    %v994 = vadd.f32 %v176, %v993
    %v995 = vpop.f32.mrf.mxu0
    %v996 = vpop.f32.mrf.mxu0
    %v997 = vadd.f32 %v176, %v996
    %v998 = vpop.f32.mrf.mxu0
    %999 = vmatprep.mubr.bf16.mxu0 0
    %1000 = vmatmul.mubr.bf16.gmra.mxu0 %v611
    %v1001 = vpop.f32.mrf.mxu0
    %v1002 = vadd.f32 %v176, %v1001
    %v1003 = vpop.f32.mrf.mxu0
    %v1004 = vpop.f32.mrf.mxu0
    %v1005 = vadd.f32 %v176, %v1004
    %v1006 = vpop.f32.mrf.mxu0
    %1007 = vmatprep.mubr.bf16.mxu0 0
    %1008 = vmatmul.mubr.bf16.gmra.mxu0 %v614
    %v1009 = vpop.f32.mrf.mxu0
    %v1010 = vadd.f32 %v176, %v1009
    %v1011 = vpop.f32.mrf.mxu0
    %v1012 = vpop.f32.mrf.mxu0
    %v1013 = vadd.f32 %v176, %v1012
    %v1014 = vpop.f32.mrf.mxu0
    %1015 = vmatprep.mubr.bf16.mxu0 0
    %1016 = vmatmul.mubr.bf16.gmra.mxu0 %v617
    %v1017 = vpop.f32.mrf.mxu0
    %v1018 = vadd.f32 %v176, %v1017
    %v1019 = vpop.f32.mrf.mxu0
    %v1020 = vpop.f32.mrf.mxu0
    %v1021 = vadd.f32 %v176, %v1020
    %v1022 = vpop.f32.mrf.mxu0
    %1023 = vmatprep.mubr.bf16.mxu0 0
    %1024 = vmatmul.mubr.bf16.gmra.mxu0 %v620
    %v1025 = vpop.f32.mrf.mxu0
    %v1026 = vadd.f32 %v176, %v1025
    %v1027 = vpop.f32.mrf.mxu0
    %v1028 = vpop.f32.mrf.mxu0
    %v1029 = vadd.f32 %v176, %v1028
    %v1030 = vpop.f32.mrf.mxu0
    %1031 = vmatprep.mubr.bf16.mxu0 0
    %1032 = vmatmul.mubr.bf16.gmra.mxu0 %v623
    %v1033 = vpop.f32.mrf.mxu0
    %v1034 = vadd.f32 %v176, %v1033
    %v1035 = vpop.f32.mrf.mxu0
    %v1036 = vpop.f32.mrf.mxu0
    %v1037 = vadd.f32 %v176, %v1036
    %v1038 = vpop.f32.mrf.mxu0
    %1039 = vmatprep.mubr.bf16.mxu0 0
    %1040 = vmatmul.mubr.bf16.gmra.mxu0 %v626
    %v1041 = vpop.f32.mrf.mxu0
    %v1042 = vadd.f32 %v176, %v1041
    %v1043 = vpop.f32.mrf.mxu0
    %v1044 = vpop.f32.mrf.mxu0
    %v1045 = vadd.f32 %v176, %v1044
    %v1046 = vpop.f32.mrf.mxu0
    %1047 = vmatprep.mubr.bf16.mxu0 0
    %1048 = vmatmul.mubr.bf16.gmra.mxu0 %v629
    %v1049 = vpop.f32.mrf.mxu0
    %v1050 = vadd.f32 %v176, %v1049
    %v1051 = vpop.f32.mrf.mxu0
    %v1052 = vpop.f32.mrf.mxu0
    %v1053 = vadd.f32 %v176, %v1052
    %v1054 = vpop.f32.mrf.mxu0
    %1055 = vmatprep.mubr.bf16.mxu0 0
    %1056 = vmatmul.mubr.bf16.gmra.mxu0 %v632
    %v1057 = vpop.f32.mrf.mxu0
    %v1058 = vadd.f32 %v176, %v1057
    %v1059 = vpop.f32.mrf.mxu0
    %v1060 = vpop.f32.mrf.mxu0
    %v1061 = vadd.f32 %v176, %v1060
    %v1062 = vpop.f32.mrf.mxu0
    %1063 = vmatprep.mubr.bf16.mxu0 0
    %1064 = vmatmul.mubr.bf16.gmra.mxu0 %v635
    %v1065 = vpop.f32.mrf.mxu0
    %v1066 = vadd.f32 %v176, %v1065
    %v1067 = vpop.f32.mrf.mxu0
    %v1068 = vpop.f32.mrf.mxu0
    %v1069 = vadd.f32 %v176, %v1068
    %v1070 = vpop.f32.mrf.mxu0
    %1071 = vmatprep.mubr.bf16.mxu0 0
    %1072 = vmatmul.mubr.bf16.gmra.mxu0 %v638
    %v1073 = vpop.f32.mrf.mxu0
    %v1074 = vadd.f32 %v176, %v1073
    %v1075 = vpop.f32.mrf.mxu0
    %v1076 = vpop.f32.mrf.mxu0
    %v1077 = vadd.f32 %v176, %v1076
    %v1078 = vpop.f32.mrf.mxu0
    %1079 = vmatprep.mubr.bf16.mxu0 0
    %1080 = vmatmul.mubr.bf16.gmra.mxu0 %v641
    %v1081 = vpop.f32.mrf.mxu0
    %v1082 = vadd.f32 %v176, %v1081
    %v1083 = vpop.f32.mrf.mxu0
    %v1084 = vpop.f32.mrf.mxu0
    %v1085 = vadd.f32 %v176, %v1084
    %v1086 = vpop.f32.mrf.mxu0
    %1087 = vmatprep.mubr.bf16.mxu0 0
    %1088 = vmatmul.mubr.bf16.gmra.mxu0 %v644
    %v1089 = vpop.f32.mrf.mxu0
    %v1090 = vadd.f32 %v176, %v1089
    %v1091 = vpop.f32.mrf.mxu0
    %v1092 = vpop.f32.mrf.mxu0
    %v1093 = vadd.f32 %v176, %v1092
    %v1094 = vpop.f32.mrf.mxu0
    %1095 = vmatprep.mubr.bf16.mxu0 0
    %1096 = vmatmul.mubr.bf16.gmra.mxu0 %v647
    %v1097 = vpop.f32.mrf.mxu0
    %v1098 = vadd.f32 %v176, %v1097
    %v1099 = vpop.f32.mrf.mxu0
    %v1100 = vpop.f32.mrf.mxu0
    %v1101 = vadd.f32 %v176, %v1100
    %v1102 = vpop.f32.mrf.mxu0
    %1103 = vmatprep.mubr.bf16.mxu0 0
    %1104 = vmatmul.mubr.bf16.gmra.mxu0 %v650
    %v1105 = vpop.f32.mrf.mxu0
    %v1106 = vadd.f32 %v176, %v1105
    %v1107 = vpop.f32.mrf.mxu0
    %v1108 = vpop.f32.mrf.mxu0
    %v1109 = vadd.f32 %v176, %v1108
    %v1110 = vpop.f32.mrf.mxu0
    %1111 = vmatprep.mubr.bf16.mxu0 0
    %1112 = vmatmul.mubr.bf16.gmra.mxu0 %v653
    %v1113 = vpop.f32.mrf.mxu0
    %v1114 = vadd.f32 %v176, %v1113
    %v1115 = vpop.f32.mrf.mxu0
    %v1116 = vpop.f32.mrf.mxu0
    %v1117 = vadd.f32 %v176, %v1116
    %v1118 = vpop.f32.mrf.mxu0
    %1119 = vmatprep.mubr.bf16.mxu0 0
    %1120 = vmatmul.mubr.bf16.gmra.mxu0 %v656
    %v1121 = vpop.f32.mrf.mxu0
    %v1122 = vadd.f32 %v176, %v1121
    %v1123 = vpop.f32.mrf.mxu0
    %v1124 = vpop.f32.mrf.mxu0
    %v1125 = vadd.f32 %v176, %v1124
    %v1126 = vpop.f32.mrf.mxu0
    %1127 = vmatprep.mubr.bf16.mxu0 0
    %1128 = vmatmul.mubr.bf16.gmra.mxu0 %v659
    %v1129 = vpop.f32.mrf.mxu0
    %v1130 = vadd.f32 %v176, %v1129
    %v1131 = vpop.f32.mrf.mxu0
    %v1132 = vpop.f32.mrf.mxu0
    %v1133 = vadd.f32 %v176, %v1132
    %v1134 = vpop.f32.mrf.mxu0
    %1135 = vmatprep.mubr.bf16.mxu0 0
    %1136 = vmatmul.mubr.bf16.gmra.mxu0 %v662
    %v1137 = vpop.f32.mrf.mxu0
    %v1138 = vadd.f32 %v176, %v1137
    %v1139 = vpop.f32.mrf.mxu0
    %v1140 = vpop.f32.mrf.mxu0
    %v1141 = vadd.f32 %v176, %v1140
    %v1142 = vpop.f32.mrf.mxu0
    %1143 = vmatprep.mubr.bf16.mxu0 0
    %1144 = vmatmul.mubr.bf16.gmra.mxu0 %v665
    %v1145 = vpop.f32.mrf.mxu0
    %v1146 = vadd.f32 %v176, %v1145
    %v1147 = vpop.f32.mrf.mxu0
    %v1148 = vpop.f32.mrf.mxu0
    %v1149 = vadd.f32 %v176, %v1148
    %v1150 = vpop.f32.mrf.mxu0
    %1151 = vmatprep.mubr.bf16.mxu0 0
    %1152 = vmatmul.mubr.bf16.gmra.mxu0 %v668
    %v1153 = vpop.f32.mrf.mxu0
    %v1154 = vadd.f32 %v176, %v1153
    %v1155 = vpop.f32.mrf.mxu0
    %v1156 = vpop.f32.mrf.mxu0
    %v1157 = vadd.f32 %v176, %v1156
    %v1158 = vpop.f32.mrf.mxu0
    %1159 = vmatprep.mubr.bf16.mxu0 0
    %1160 = vmatmul.mubr.bf16.gmra.mxu0 %v671
    %v1161 = vpop.f32.mrf.mxu0
    %v1162 = vadd.f32 %v176, %v1161
    %v1163 = vpop.f32.mrf.mxu0
    %v1164 = vpop.f32.mrf.mxu0
    %v1165 = vadd.f32 %v176, %v1164
    %v1166 = vpop.f32.mrf.mxu0
    %1167 = vmatprep.mubr.bf16.mxu0 0
    %1168 = vmatmul.mubr.bf16.gmra.mxu0 %v674
    %v1169 = vpop.f32.mrf.mxu0
    %v1170 = vadd.f32 %v176, %v1169
    %v1171 = vpop.f32.mrf.mxu0
    %v1172 = vpop.f32.mrf.mxu0
    %v1173 = vadd.f32 %v176, %v1172
    %v1174 = vpop.f32.mrf.mxu0
    %1175 = vmatprep.mubr.bf16.mxu0 0
    %1176 = vmatmul.mubr.bf16.gmra.mxu0 %v677
    %v1177 = vpop.f32.mrf.mxu0
    %v1178 = vadd.f32 %v176, %v1177
    %v1179 = vpop.f32.mrf.mxu0
    %v1180 = vpop.f32.mrf.mxu0
    %v1181 = vadd.f32 %v176, %v1180
    %v1182 = vpop.f32.mrf.mxu0
    %1183 = vmatprep.mubr.bf16.mxu0 0
    %1184 = vmatmul.mubr.bf16.gmra.mxu0 %v680
    %v1185 = vpop.f32.mrf.mxu0
    %v1186 = vadd.f32 %v176, %v1185
    %v1187 = vpop.f32.mrf.mxu0
    %v1188 = vpop.f32.mrf.mxu0
    %v1189 = vadd.f32 %v176, %v1188
    %v1190 = vpop.f32.mrf.mxu0
    %1191 = vmatprep.mubr.bf16.mxu0 0
    %1192 = vmatmul.mubr.bf16.gmra.mxu0 %v683
    %v1193 = vpop.f32.mrf.mxu0
    %v1194 = vadd.f32 %v176, %v1193
    %v1195 = vpop.f32.mrf.mxu0
    %v1196 = vpop.f32.mrf.mxu0
    %v1197 = vadd.f32 %v176, %v1196
    %v1198 = vpop.f32.mrf.mxu0
    %1199 = vmatprep.mubr.bf16.mxu0 0
    %1200 = vmatmul.mubr.bf16.gmra.mxu0 %v686
    %v1201 = vpop.f32.mrf.mxu0
    %v1202 = vadd.f32 %v176, %v1201
    %v1203 = vpop.f32.mrf.mxu0
    %v1204 = vpop.f32.mrf.mxu0
    %v1205 = vadd.f32 %v176, %v1204
    %v1206 = vpop.f32.mrf.mxu0
    %1207 = vmatprep.mubr.bf16.mxu0 0
    %1208 = vmatmul.mubr.bf16.gmra.mxu0 %v689
    %v1209 = vpop.f32.mrf.mxu0
    %v1210 = vadd.f32 %v176, %v1209
    %v1211 = vpop.f32.mrf.mxu0
    %v1212 = vpop.f32.mrf.mxu0
    %v1213 = vadd.f32 %v176, %v1212
    %v1214 = vpop.f32.mrf.mxu0
    %1215 = vmatprep.mubr.bf16.mxu0 0
    %1216 = vmatmul.mubr.bf16.gmra.mxu0 %v692
    %v1217 = vpop.f32.mrf.mxu0
    %v1218 = vadd.f32 %v176, %v1217
    %v1219 = vpop.f32.mrf.mxu0
    %v1220 = vpop.f32.mrf.mxu0
    %v1221 = vadd.f32 %v176, %v1220
    %v1222 = vpop.f32.mrf.mxu0
    %1223 = vmatprep.mubr.bf16.mxu0 0
    %1224 = vmatmul.mubr.bf16.gmra.mxu0 %v695
    %v1225 = vpop.f32.mrf.mxu0
    %v1226 = vadd.f32 %v176, %v1225
    %v1227 = vpop.f32.mrf.mxu0
    %v1228 = vpop.f32.mrf.mxu0
    %v1229 = vadd.f32 %v176, %v1228
    %v1230 = vpop.f32.mrf.mxu0
    %1231 = vmatprep.mubr.bf16.mxu0 0
    %1232 = vmatmul.mubr.bf16.gmra.mxu0 %v698
    %v1233 = vpop.f32.mrf.mxu0
    %v1234 = vadd.f32 %v176, %v1233
    %v1235 = vpop.f32.mrf.mxu0
    %v1236 = vpop.f32.mrf.mxu0
    %v1237 = vadd.f32 %v176, %v1236
    %v1238 = vpop.f32.mrf.mxu0
    %1239 = vmatprep.mubr.bf16.mxu0 0
    %1240 = vmatmul.mubr.bf16.gmra.mxu0 %v701
    %v1241 = vpop.f32.mrf.mxu0
    %v1242 = vadd.f32 %v176, %v1241
    %v1243 = vpop.f32.mrf.mxu0
    %v1244 = vpop.f32.mrf.mxu0
    %v1245 = vadd.f32 %v176, %v1244
    %v1246 = vpop.f32.mrf.mxu0
    %1247 = vdwg.mxu0
    %v1248 = vxor.u32 %v738, 2147483648
    %v1249 = vxor.u32 %v741, 2147483648
    %v1250 = vxor.u32 %v746, 2147483648
    %v1251 = vxor.u32 %v749, 2147483648
    %v1252 = vxor.u32 %v754, 2147483648
    %v1253 = vxor.u32 %v757, 2147483648
    %v1254 = vxor.u32 %v762, 2147483648
    %v1255 = vxor.u32 %v765, 2147483648
    %v1256 = vxor.u32 %v770, 2147483648
    %v1257 = vxor.u32 %v773, 2147483648
    %v1258 = vxor.u32 %v778, 2147483648
    %v1259 = vxor.u32 %v781, 2147483648
    %v1260 = vxor.u32 %v786, 2147483648
    %v1261 = vxor.u32 %v789, 2147483648
    %v1262 = vxor.u32 %v794, 2147483648
    %v1263 = vxor.u32 %v797, 2147483648
    %v1264 = vxor.u32 %v802, 2147483648
    %v1265 = vxor.u32 %v805, 2147483648
    %v1266 = vxor.u32 %v810, 2147483648
    %v1267 = vxor.u32 %v813, 2147483648
    %v1268 = vxor.u32 %v818, 2147483648
    %v1269 = vxor.u32 %v821, 2147483648
    %v1270 = vxor.u32 %v826, 2147483648
    %v1271 = vxor.u32 %v829, 2147483648
    %v1272 = vxor.u32 %v834, 2147483648
    %v1273 = vxor.u32 %v837, 2147483648
    %v1274 = vxor.u32 %v842, 2147483648
    %v1275 = vxor.u32 %v845, 2147483648
    %v1276 = vxor.u32 %v850, 2147483648
    %v1277 = vxor.u32 %v853, 2147483648
    %v1278 = vxor.u32 %v858, 2147483648
    %v1279 = vxor.u32 %v861, 2147483648
    %v1280 = vxor.u32 %v866, 2147483648
    %v1281 = vxor.u32 %v869, 2147483648
    %v1282 = vxor.u32 %v874, 2147483648
    %v1283 = vxor.u32 %v877, 2147483648
    %v1284 = vxor.u32 %v882, 2147483648
    %v1285 = vxor.u32 %v885, 2147483648
    %v1286 = vxor.u32 %v890, 2147483648
    %v1287 = vxor.u32 %v893, 2147483648
    %v1288 = vxor.u32 %v898, 2147483648
    %v1289 = vxor.u32 %v901, 2147483648
    %v1290 = vxor.u32 %v906, 2147483648
    %v1291 = vxor.u32 %v909, 2147483648
    %v1292 = vxor.u32 %v914, 2147483648
    %v1293 = vxor.u32 %v917, 2147483648
    %v1294 = vxor.u32 %v922, 2147483648
    %v1295 = vxor.u32 %v925, 2147483648
    %v1296 = vxor.u32 %v930, 2147483648
    %v1297 = vxor.u32 %v933, 2147483648
    %v1298 = vxor.u32 %v938, 2147483648
    %v1299 = vxor.u32 %v941, 2147483648
    %v1300 = vxor.u32 %v946, 2147483648
    %v1301 = vxor.u32 %v949, 2147483648
    %v1302 = vxor.u32 %v954, 2147483648
    %v1303 = vxor.u32 %v957, 2147483648
    %v1304 = vxor.u32 %v962, 2147483648
    %v1305 = vxor.u32 %v965, 2147483648
    %v1306 = vxor.u32 %v970, 2147483648
    %v1307 = vxor.u32 %v973, 2147483648
    %v1308 = vxor.u32 %v978, 2147483648
    %v1309 = vxor.u32 %v981, 2147483648
    %v1310 = vxor.u32 %v986, 2147483648
    %v1311 = vxor.u32 %v989, 2147483648
    %v1312 = vxor.u32 %v994, 2147483648
    %v1313 = vxor.u32 %v997, 2147483648
    %v1314 = vxor.u32 %v1002, 2147483648
    %v1315 = vxor.u32 %v1005, 2147483648
    %v1316 = vxor.u32 %v1010, 2147483648
    %v1317 = vxor.u32 %v1013, 2147483648
    %v1318 = vxor.u32 %v1018, 2147483648
    %v1319 = vxor.u32 %v1021, 2147483648
    %v1320 = vxor.u32 %v1026, 2147483648
    %v1321 = vxor.u32 %v1029, 2147483648
    %v1322 = vxor.u32 %v1034, 2147483648
    %v1323 = vxor.u32 %v1037, 2147483648
    %v1324 = vxor.u32 %v1042, 2147483648
    %v1325 = vxor.u32 %v1045, 2147483648
    %v1326 = vxor.u32 %v1050, 2147483648
    %v1327 = vxor.u32 %v1053, 2147483648
    %v1328 = vxor.u32 %v1058, 2147483648
    %v1329 = vxor.u32 %v1061, 2147483648
    %v1330 = vxor.u32 %v1066, 2147483648
    %v1331 = vxor.u32 %v1069, 2147483648
    %v1332 = vxor.u32 %v1074, 2147483648
    %v1333 = vxor.u32 %v1077, 2147483648
    %v1334 = vxor.u32 %v1082, 2147483648
    %v1335 = vxor.u32 %v1085, 2147483648
    %v1336 = vxor.u32 %v1090, 2147483648
    %v1337 = vxor.u32 %v1093, 2147483648
    %v1338 = vxor.u32 %v1098, 2147483648
    %v1339 = vxor.u32 %v1101, 2147483648
    %v1340 = vxor.u32 %v1106, 2147483648
    %v1341 = vxor.u32 %v1109, 2147483648
    %v1342 = vxor.u32 %v1114, 2147483648
    %v1343 = vxor.u32 %v1117, 2147483648
    %v1344 = vxor.u32 %v1122, 2147483648
    %v1345 = vxor.u32 %v1125, 2147483648
    %v1346 = vxor.u32 %v1130, 2147483648
    %v1347 = vxor.u32 %v1133, 2147483648
    %v1348 = vxor.u32 %v1138, 2147483648
    %v1349 = vxor.u32 %v1141, 2147483648
    %v1350 = vxor.u32 %v1146, 2147483648
    %v1351 = vxor.u32 %v1149, 2147483648
    %v1352 = vxor.u32 %v1154, 2147483648
    %v1353 = vxor.u32 %v1157, 2147483648
    %v1354 = vxor.u32 %v1162, 2147483648
    %v1355 = vxor.u32 %v1165, 2147483648
    %v1356 = vxor.u32 %v1170, 2147483648
    %v1357 = vxor.u32 %v1173, 2147483648
    %v1358 = vxor.u32 %v1178, 2147483648
    %v1359 = vxor.u32 %v1181, 2147483648
    %v1360 = vxor.u32 %v1186, 2147483648
    %v1361 = vxor.u32 %v1189, 2147483648
    %v1362 = vxor.u32 %v1194, 2147483648
    %v1363 = vxor.u32 %v1197, 2147483648
    %v1364 = vxor.u32 %v1202, 2147483648
    %v1365 = vxor.u32 %v1205, 2147483648
    %v1366 = vxor.u32 %v1210, 2147483648
    %v1367 = vxor.u32 %v1213, 2147483648
    %v1368 = vxor.u32 %v1218, 2147483648
    %v1369 = vxor.u32 %v1221, 2147483648
    %v1370 = vxor.u32 %v1226, 2147483648
    %v1371 = vxor.u32 %v1229, 2147483648
    %v1372 = vxor.u32 %v1234, 2147483648
    %v1373 = vxor.u32 %v1237, 2147483648
    %v1374 = vxor.u32 %v1242, 2147483648
    %v1375 = vxor.u32 %v1245, 2147483648
    %v1376 = vmul.f32 %v1248, 1.442695
    %v1377 = vpow.pop %v1376
    %v1378 = vmul.f32 %v1249, 1.442695
    %v1379 = vpow.pop %v1378
    %v1380 = vmul.f32 %v1250, 1.442695
    %v1381 = vpow.pop %v1380
    %v1382 = vmul.f32 %v1251, 1.442695
    %v1383 = vpow.pop %v1382
    %v1384 = vmul.f32 %v1252, 1.442695
    %v1385 = vpow.pop %v1384
    %v1386 = vmul.f32 %v1253, 1.442695
    %v1387 = vpow.pop %v1386
    %v1388 = vmul.f32 %v1254, 1.442695
    %v1389 = vpow.pop %v1388
    %v1390 = vmul.f32 %v1255, 1.442695
    %v1391 = vpow.pop %v1390
    %v1392 = vmul.f32 %v1256, 1.442695
    %v1393 = vpow.pop %v1392
    %v1394 = vmul.f32 %v1257, 1.442695
    %v1395 = vpow.pop %v1394
    %v1396 = vmul.f32 %v1258, 1.442695
    %v1397 = vpow.pop %v1396
    %v1398 = vmul.f32 %v1259, 1.442695
    %v1399 = vpow.pop %v1398
    %v1400 = vmul.f32 %v1260, 1.442695
    %v1401 = vpow.pop %v1400
    %v1402 = vmul.f32 %v1261, 1.442695
    %v1403 = vpow.pop %v1402
    %v1404 = vmul.f32 %v1262, 1.442695
    %v1405 = vpow.pop %v1404
    %v1406 = vmul.f32 %v1263, 1.442695
    %v1407 = vpow.pop %v1406
    %v1408 = vmul.f32 %v1264, 1.442695
    %v1409 = vpow.pop %v1408
    %v1410 = vmul.f32 %v1265, 1.442695
    %v1411 = vpow.pop %v1410
    %v1412 = vmul.f32 %v1266, 1.442695
    %v1413 = vpow.pop %v1412
    %v1414 = vmul.f32 %v1267, 1.442695
    %v1415 = vpow.pop %v1414
    %v1416 = vmul.f32 %v1268, 1.442695
    %v1417 = vpow.pop %v1416
    %v1418 = vmul.f32 %v1269, 1.442695
    %v1419 = vpow.pop %v1418
    %v1420 = vmul.f32 %v1270, 1.442695
    %v1421 = vpow.pop %v1420
    %v1422 = vmul.f32 %v1271, 1.442695
    %v1423 = vpow.pop %v1422
    %v1424 = vmul.f32 %v1272, 1.442695
    %v1425 = vpow.pop %v1424
    %v1426 = vmul.f32 %v1273, 1.442695
    %v1427 = vpow.pop %v1426
    %v1428 = vmul.f32 %v1274, 1.442695
    %v1429 = vpow.pop %v1428
    %v1430 = vmul.f32 %v1275, 1.442695
    %v1431 = vpow.pop %v1430
    %v1432 = vmul.f32 %v1276, 1.442695
    %v1433 = vpow.pop %v1432
    %v1434 = vmul.f32 %v1277, 1.442695
    %v1435 = vpow.pop %v1434
    %v1436 = vmul.f32 %v1278, 1.442695
    %v1437 = vpow.pop %v1436
    %v1438 = vmul.f32 %v1279, 1.442695
    %v1439 = vpow.pop %v1438
    %v1440 = vmul.f32 %v1280, 1.442695
    %v1441 = vpow.pop %v1440
    %v1442 = vmul.f32 %v1281, 1.442695
    %v1443 = vpow.pop %v1442
    %v1444 = vmul.f32 %v1282, 1.442695
    %v1445 = vpow.pop %v1444
    %v1446 = vmul.f32 %v1283, 1.442695
    %v1447 = vpow.pop %v1446
    %v1448 = vmul.f32 %v1284, 1.442695
    %v1449 = vpow.pop %v1448
    %v1450 = vmul.f32 %v1285, 1.442695
    %v1451 = vpow.pop %v1450
    %v1452 = vmul.f32 %v1286, 1.442695
    %v1453 = vpow.pop %v1452
    %v1454 = vmul.f32 %v1287, 1.442695
    %v1455 = vpow.pop %v1454
    %v1456 = vmul.f32 %v1288, 1.442695
    %v1457 = vpow.pop %v1456
    %v1458 = vmul.f32 %v1289, 1.442695
    %v1459 = vpow.pop %v1458
    %v1460 = vmul.f32 %v1290, 1.442695
    %v1461 = vpow.pop %v1460
    %v1462 = vmul.f32 %v1291, 1.442695
    %v1463 = vpow.pop %v1462
    %v1464 = vmul.f32 %v1292, 1.442695
    %v1465 = vpow.pop %v1464
    %v1466 = vmul.f32 %v1293, 1.442695
    %v1467 = vpow.pop %v1466
    %v1468 = vmul.f32 %v1294, 1.442695
    %v1469 = vpow.pop %v1468
    %v1470 = vmul.f32 %v1295, 1.442695
    %v1471 = vpow.pop %v1470
    %v1472 = vmul.f32 %v1296, 1.442695
    %v1473 = vpow.pop %v1472
    %v1474 = vmul.f32 %v1297, 1.442695
    %v1475 = vpow.pop %v1474
    %v1476 = vmul.f32 %v1298, 1.442695
    %v1477 = vpow.pop %v1476
    %v1478 = vmul.f32 %v1299, 1.442695
    %v1479 = vpow.pop %v1478
    %v1480 = vmul.f32 %v1300, 1.442695
    %v1481 = vpow.pop %v1480
    %v1482 = vmul.f32 %v1301, 1.442695
    %v1483 = vpow.pop %v1482
    %v1484 = vmul.f32 %v1302, 1.442695
    %v1485 = vpow.pop %v1484
    %v1486 = vmul.f32 %v1303, 1.442695
    %v1487 = vpow.pop %v1486
    %v1488 = vmul.f32 %v1304, 1.442695
    %v1489 = vpow.pop %v1488
    %v1490 = vmul.f32 %v1305, 1.442695
    %v1491 = vpow.pop %v1490
    %v1492 = vmul.f32 %v1306, 1.442695
    %v1493 = vpow.pop %v1492
    %v1494 = vmul.f32 %v1307, 1.442695
    %v1495 = vpow.pop %v1494
    %v1496 = vmul.f32 %v1308, 1.442695
    %v1497 = vpow.pop %v1496
    %v1498 = vmul.f32 %v1309, 1.442695
    %v1499 = vpow.pop %v1498
    %v1500 = vmul.f32 %v1310, 1.442695
    %v1501 = vpow.pop %v1500
    %v1502 = vmul.f32 %v1311, 1.442695
    %v1503 = vpow.pop %v1502
    %v1504 = vmul.f32 %v1312, 1.442695
    %v1505 = vpow.pop %v1504
    %v1506 = vmul.f32 %v1313, 1.442695
    %v1507 = vpow.pop %v1506
    %v1508 = vmul.f32 %v1314, 1.442695
    %v1509 = vpow.pop %v1508
    %v1510 = vmul.f32 %v1315, 1.442695
    %v1511 = vpow.pop %v1510
    %v1512 = vmul.f32 %v1316, 1.442695
    %v1513 = vpow.pop %v1512
    %v1514 = vmul.f32 %v1317, 1.442695
    %v1515 = vpow.pop %v1514
    %v1516 = vmul.f32 %v1318, 1.442695
    %v1517 = vpow.pop %v1516
    %v1518 = vmul.f32 %v1319, 1.442695
    %v1519 = vpow.pop %v1518
    %v1520 = vmul.f32 %v1320, 1.442695
    %v1521 = vpow.pop %v1520
    %v1522 = vmul.f32 %v1321, 1.442695
    %v1523 = vpow.pop %v1522
    %v1524 = vmul.f32 %v1322, 1.442695
    %v1525 = vpow.pop %v1524
    %v1526 = vmul.f32 %v1323, 1.442695
    %v1527 = vpow.pop %v1526
    %v1528 = vmul.f32 %v1324, 1.442695
    %v1529 = vpow.pop %v1528
    %v1530 = vmul.f32 %v1325, 1.442695
    %v1531 = vpow.pop %v1530
    %v1532 = vmul.f32 %v1326, 1.442695
    %v1533 = vpow.pop %v1532
    %v1534 = vmul.f32 %v1327, 1.442695
    %v1535 = vpow.pop %v1534
    %v1536 = vmul.f32 %v1328, 1.442695
    %v1537 = vpow.pop %v1536
    %v1538 = vmul.f32 %v1329, 1.442695
    %v1539 = vpow.pop %v1538
    %v1540 = vmul.f32 %v1330, 1.442695
    %v1541 = vpow.pop %v1540
    %v1542 = vmul.f32 %v1331, 1.442695
    %v1543 = vpow.pop %v1542
    %v1544 = vmul.f32 %v1332, 1.442695
    %v1545 = vpow.pop %v1544
    %v1546 = vmul.f32 %v1333, 1.442695
    %v1547 = vpow.pop %v1546
    %v1548 = vmul.f32 %v1334, 1.442695
    %v1549 = vpow.pop %v1548
    %v1550 = vmul.f32 %v1335, 1.442695
    %v1551 = vpow.pop %v1550
    %v1552 = vmul.f32 %v1336, 1.442695
    %v1553 = vpow.pop %v1552
    %v1554 = vmul.f32 %v1337, 1.442695
    %v1555 = vpow.pop %v1554
    %v1556 = vmul.f32 %v1338, 1.442695
    %v1557 = vpow.pop %v1556
    %v1558 = vmul.f32 %v1339, 1.442695
    %v1559 = vpow.pop %v1558
    %v1560 = vmul.f32 %v1340, 1.442695
    %v1561 = vpow.pop %v1560
    %v1562 = vmul.f32 %v1341, 1.442695
    %v1563 = vpow.pop %v1562
    %v1564 = vmul.f32 %v1342, 1.442695
    %v1565 = vpow.pop %v1564
    %v1566 = vmul.f32 %v1343, 1.442695
    %v1567 = vpow.pop %v1566
    %v1568 = vmul.f32 %v1344, 1.442695
    %v1569 = vpow.pop %v1568
    %v1570 = vmul.f32 %v1345, 1.442695
    %v1571 = vpow.pop %v1570
    %v1572 = vmul.f32 %v1346, 1.442695
    %v1573 = vpow.pop %v1572
    %v1574 = vmul.f32 %v1347, 1.442695
    %v1575 = vpow.pop %v1574
    %v1576 = vmul.f32 %v1348, 1.442695
    %v1577 = vpow.pop %v1576
    %v1578 = vmul.f32 %v1349, 1.442695
    %v1579 = vpow.pop %v1578
    %v1580 = vmul.f32 %v1350, 1.442695
    %v1581 = vpow.pop %v1580
    %v1582 = vmul.f32 %v1351, 1.442695
    %v1583 = vpow.pop %v1582
    %v1584 = vmul.f32 %v1352, 1.442695
    %v1585 = vpow.pop %v1584
    %v1586 = vmul.f32 %v1353, 1.442695
    %v1587 = vpow.pop %v1586
    %v1588 = vmul.f32 %v1354, 1.442695
    %v1589 = vpow.pop %v1588
    %v1590 = vmul.f32 %v1355, 1.442695
    %v1591 = vpow.pop %v1590
    %v1592 = vmul.f32 %v1356, 1.442695
    %v1593 = vpow.pop %v1592
    %v1594 = vmul.f32 %v1357, 1.442695
    %v1595 = vpow.pop %v1594
    %v1596 = vmul.f32 %v1358, 1.442695
    %v1597 = vpow.pop %v1596
    %v1598 = vmul.f32 %v1359, 1.442695
    %v1599 = vpow.pop %v1598
    %v1600 = vmul.f32 %v1360, 1.442695
    %v1601 = vpow.pop %v1600
    %v1602 = vmul.f32 %v1361, 1.442695
    %v1603 = vpow.pop %v1602
    %v1604 = vmul.f32 %v1362, 1.442695
    %v1605 = vpow.pop %v1604
    %v1606 = vmul.f32 %v1363, 1.442695
    %v1607 = vpow.pop %v1606
    %v1608 = vmul.f32 %v1364, 1.442695
    %v1609 = vpow.pop %v1608
    %v1610 = vmul.f32 %v1365, 1.442695
    %v1611 = vpow.pop %v1610
    %v1612 = vmul.f32 %v1366, 1.442695
    %v1613 = vpow.pop %v1612
    %v1614 = vmul.f32 %v1367, 1.442695
    %v1615 = vpow.pop %v1614
    %v1616 = vmul.f32 %v1368, 1.442695
    %v1617 = vpow.pop %v1616
    %v1618 = vmul.f32 %v1369, 1.442695
    %v1619 = vpow.pop %v1618
    %v1620 = vmul.f32 %v1370, 1.442695
    %v1621 = vpow.pop %v1620
    %v1622 = vmul.f32 %v1371, 1.442695
    %v1623 = vpow.pop %v1622
    %v1624 = vmul.f32 %v1372, 1.442695
    %v1625 = vpow.pop %v1624
    %v1626 = vmul.f32 %v1373, 1.442695
    %v1627 = vpow.pop %v1626
    %v1628 = vmul.f32 %v1374, 1.442695
    %v1629 = vpow.pop %v1628
    %v1630 = vmul.f32 %v1375, 1.442695
    %v1631 = vpow.pop %v1630
    %v1632 = vadd.f32 %v1377, 1.0
    %v1633 = vadd.f32 %v1379, 1.0
    %v1634 = vadd.f32 %v1381, 1.0
    %v1635 = vadd.f32 %v1383, 1.0
    %v1636 = vadd.f32 %v1385, 1.0
    %v1637 = vadd.f32 %v1387, 1.0
    %v1638 = vadd.f32 %v1389, 1.0
    %v1639 = vadd.f32 %v1391, 1.0
    %v1640 = vadd.f32 %v1393, 1.0
    %v1641 = vadd.f32 %v1395, 1.0
    %v1642 = vadd.f32 %v1397, 1.0
    %v1643 = vadd.f32 %v1399, 1.0
    %v1644 = vadd.f32 %v1401, 1.0
    %v1645 = vadd.f32 %v1403, 1.0
    %v1646 = vadd.f32 %v1405, 1.0
    %v1647 = vadd.f32 %v1407, 1.0
    %v1648 = vadd.f32 %v1409, 1.0
    %v1649 = vadd.f32 %v1411, 1.0
    %v1650 = vadd.f32 %v1413, 1.0
    %v1651 = vadd.f32 %v1415, 1.0
    %v1652 = vadd.f32 %v1417, 1.0
    %v1653 = vadd.f32 %v1419, 1.0
    %v1654 = vadd.f32 %v1421, 1.0
    %v1655 = vadd.f32 %v1423, 1.0
    %v1656 = vadd.f32 %v1425, 1.0
    %v1657 = vadd.f32 %v1427, 1.0
    %v1658 = vadd.f32 %v1429, 1.0
    %v1659 = vadd.f32 %v1431, 1.0
    %v1660 = vadd.f32 %v1433, 1.0
    %v1661 = vadd.f32 %v1435, 1.0
    %v1662 = vadd.f32 %v1437, 1.0
    %v1663 = vadd.f32 %v1439, 1.0
    %v1664 = vadd.f32 %v1441, 1.0
    %v1665 = vadd.f32 %v1443, 1.0
    %v1666 = vadd.f32 %v1445, 1.0
    %v1667 = vadd.f32 %v1447, 1.0
    %v1668 = vadd.f32 %v1449, 1.0
    %v1669 = vadd.f32 %v1451, 1.0
    %v1670 = vadd.f32 %v1453, 1.0
    %v1671 = vadd.f32 %v1455, 1.0
    %v1672 = vadd.f32 %v1457, 1.0
    %v1673 = vadd.f32 %v1459, 1.0
    %v1674 = vadd.f32 %v1461, 1.0
    %v1675 = vadd.f32 %v1463, 1.0
    %v1676 = vadd.f32 %v1465, 1.0
    %v1677 = vadd.f32 %v1467, 1.0
    %v1678 = vadd.f32 %v1469, 1.0
    %v1679 = vadd.f32 %v1471, 1.0
    %v1680 = vadd.f32 %v1473, 1.0
    %v1681 = vadd.f32 %v1475, 1.0
    %v1682 = vadd.f32 %v1477, 1.0
    %v1683 = vadd.f32 %v1479, 1.0
    %v1684 = vadd.f32 %v1481, 1.0
    %v1685 = vadd.f32 %v1483, 1.0
    %v1686 = vadd.f32 %v1485, 1.0
    %v1687 = vadd.f32 %v1487, 1.0
    %v1688 = vadd.f32 %v1489, 1.0
    %v1689 = vadd.f32 %v1491, 1.0
    %v1690 = vadd.f32 %v1493, 1.0
    %v1691 = vadd.f32 %v1495, 1.0
    %v1692 = vadd.f32 %v1497, 1.0
    %v1693 = vadd.f32 %v1499, 1.0
    %v1694 = vadd.f32 %v1501, 1.0
    %v1695 = vadd.f32 %v1503, 1.0
    %v1696 = vadd.f32 %v1505, 1.0
    %v1697 = vadd.f32 %v1507, 1.0
    %v1698 = vadd.f32 %v1509, 1.0
    %v1699 = vadd.f32 %v1511, 1.0
    %v1700 = vadd.f32 %v1513, 1.0
    %v1701 = vadd.f32 %v1515, 1.0
    %v1702 = vadd.f32 %v1517, 1.0
    %v1703 = vadd.f32 %v1519, 1.0
    %v1704 = vadd.f32 %v1521, 1.0
    %v1705 = vadd.f32 %v1523, 1.0
    %v1706 = vadd.f32 %v1525, 1.0
    %v1707 = vadd.f32 %v1527, 1.0
    %v1708 = vadd.f32 %v1529, 1.0
    %v1709 = vadd.f32 %v1531, 1.0
    %v1710 = vadd.f32 %v1533, 1.0
    %v1711 = vadd.f32 %v1535, 1.0
    %v1712 = vadd.f32 %v1537, 1.0
    %v1713 = vadd.f32 %v1539, 1.0
    %v1714 = vadd.f32 %v1541, 1.0
    %v1715 = vadd.f32 %v1543, 1.0
    %v1716 = vadd.f32 %v1545, 1.0
    %v1717 = vadd.f32 %v1547, 1.0
    %v1718 = vadd.f32 %v1549, 1.0
    %v1719 = vadd.f32 %v1551, 1.0
    %v1720 = vadd.f32 %v1553, 1.0
    %v1721 = vadd.f32 %v1555, 1.0
    %v1722 = vadd.f32 %v1557, 1.0
    %v1723 = vadd.f32 %v1559, 1.0
    %v1724 = vadd.f32 %v1561, 1.0
    %v1725 = vadd.f32 %v1563, 1.0
    %v1726 = vadd.f32 %v1565, 1.0
    %v1727 = vadd.f32 %v1567, 1.0
    %v1728 = vadd.f32 %v1569, 1.0
    %v1729 = vadd.f32 %v1571, 1.0
    %v1730 = vadd.f32 %v1573, 1.0
    %v1731 = vadd.f32 %v1575, 1.0
    %v1732 = vadd.f32 %v1577, 1.0
    %v1733 = vadd.f32 %v1579, 1.0
    %v1734 = vadd.f32 %v1581, 1.0
    %v1735 = vadd.f32 %v1583, 1.0
    %v1736 = vadd.f32 %v1585, 1.0
    %v1737 = vadd.f32 %v1587, 1.0
    %v1738 = vadd.f32 %v1589, 1.0
    %v1739 = vadd.f32 %v1591, 1.0
    %v1740 = vadd.f32 %v1593, 1.0
    %v1741 = vadd.f32 %v1595, 1.0
    %v1742 = vadd.f32 %v1597, 1.0
    %v1743 = vadd.f32 %v1599, 1.0
    %v1744 = vadd.f32 %v1601, 1.0
    %v1745 = vadd.f32 %v1603, 1.0
    %v1746 = vadd.f32 %v1605, 1.0
    %v1747 = vadd.f32 %v1607, 1.0
    %v1748 = vadd.f32 %v1609, 1.0
    %v1749 = vadd.f32 %v1611, 1.0
    %v1750 = vadd.f32 %v1613, 1.0
    %v1751 = vadd.f32 %v1615, 1.0
    %v1752 = vadd.f32 %v1617, 1.0
    %v1753 = vadd.f32 %v1619, 1.0
    %v1754 = vadd.f32 %v1621, 1.0
    %v1755 = vadd.f32 %v1623, 1.0
    %v1756 = vadd.f32 %v1625, 1.0
    %v1757 = vadd.f32 %v1627, 1.0
    %v1758 = vadd.f32 %v1629, 1.0
    %v1759 = vadd.f32 %v1631, 1.0
    %v1760 = vrcp.pop %v1632
    %v1761 = vmul.f32 1.0, %v1760
    %v1762 = vrcp.pop %v1633
    %v1763 = vmul.f32 1.0, %v1762
    %v1764 = vrcp.pop %v1634
    %v1765 = vmul.f32 1.0, %v1764
    %v1766 = vrcp.pop %v1635
    %v1767 = vmul.f32 1.0, %v1766
    %v1768 = vrcp.pop %v1636
    %v1769 = vmul.f32 1.0, %v1768
    %v1770 = vrcp.pop %v1637
    %v1771 = vmul.f32 1.0, %v1770
    %v1772 = vrcp.pop %v1638
    %v1773 = vmul.f32 1.0, %v1772
    %v1774 = vrcp.pop %v1639
    %v1775 = vmul.f32 1.0, %v1774
    %v1776 = vrcp.pop %v1640
    %v1777 = vmul.f32 1.0, %v1776
    %v1778 = vrcp.pop %v1641
    %v1779 = vmul.f32 1.0, %v1778
    %v1780 = vrcp.pop %v1642
    %v1781 = vmul.f32 1.0, %v1780
    %v1782 = vrcp.pop %v1643
    %v1783 = vmul.f32 1.0, %v1782
    %v1784 = vrcp.pop %v1644
    %v1785 = vmul.f32 1.0, %v1784
    %v1786 = vrcp.pop %v1645
    %v1787 = vmul.f32 1.0, %v1786
    %v1788 = vrcp.pop %v1646
    %v1789 = vmul.f32 1.0, %v1788
    %v1790 = vrcp.pop %v1647
    %v1791 = vmul.f32 1.0, %v1790
    %v1792 = vrcp.pop %v1648
    %v1793 = vmul.f32 1.0, %v1792
    %v1794 = vrcp.pop %v1649
    %v1795 = vmul.f32 1.0, %v1794
    %v1796 = vrcp.pop %v1650
    %v1797 = vmul.f32 1.0, %v1796
    %v1798 = vrcp.pop %v1651
    %v1799 = vmul.f32 1.0, %v1798
    %v1800 = vrcp.pop %v1652
    %v1801 = vmul.f32 1.0, %v1800
    %v1802 = vrcp.pop %v1653
    %v1803 = vmul.f32 1.0, %v1802
    %v1804 = vrcp.pop %v1654
    %v1805 = vmul.f32 1.0, %v1804
    %v1806 = vrcp.pop %v1655
    %v1807 = vmul.f32 1.0, %v1806
    %v1808 = vrcp.pop %v1656
    %v1809 = vmul.f32 1.0, %v1808
    %v1810 = vrcp.pop %v1657
    %v1811 = vmul.f32 1.0, %v1810
    %v1812 = vrcp.pop %v1658
    %v1813 = vmul.f32 1.0, %v1812
    %v1814 = vrcp.pop %v1659
    %v1815 = vmul.f32 1.0, %v1814
    %v1816 = vrcp.pop %v1660
    %v1817 = vmul.f32 1.0, %v1816
    %v1818 = vrcp.pop %v1661
    %v1819 = vmul.f32 1.0, %v1818
    %v1820 = vrcp.pop %v1662
    %v1821 = vmul.f32 1.0, %v1820
    %v1822 = vrcp.pop %v1663
    %v1823 = vmul.f32 1.0, %v1822
    %v1824 = vrcp.pop %v1664
    %v1825 = vmul.f32 1.0, %v1824
    %v1826 = vrcp.pop %v1665
    %v1827 = vmul.f32 1.0, %v1826
    %v1828 = vrcp.pop %v1666
    %v1829 = vmul.f32 1.0, %v1828
    %v1830 = vrcp.pop %v1667
    %v1831 = vmul.f32 1.0, %v1830
    %v1832 = vrcp.pop %v1668
    %v1833 = vmul.f32 1.0, %v1832
    %v1834 = vrcp.pop %v1669
    %v1835 = vmul.f32 1.0, %v1834
    %v1836 = vrcp.pop %v1670
    %v1837 = vmul.f32 1.0, %v1836
    %v1838 = vrcp.pop %v1671
    %v1839 = vmul.f32 1.0, %v1838
    %v1840 = vrcp.pop %v1672
    %v1841 = vmul.f32 1.0, %v1840
    %v1842 = vrcp.pop %v1673
    %v1843 = vmul.f32 1.0, %v1842
    %v1844 = vrcp.pop %v1674
    %v1845 = vmul.f32 1.0, %v1844
    %v1846 = vrcp.pop %v1675
    %v1847 = vmul.f32 1.0, %v1846
    %v1848 = vrcp.pop %v1676
    %v1849 = vmul.f32 1.0, %v1848
    %v1850 = vrcp.pop %v1677
    %v1851 = vmul.f32 1.0, %v1850
    %v1852 = vrcp.pop %v1678
    %v1853 = vmul.f32 1.0, %v1852
    %v1854 = vrcp.pop %v1679
    %v1855 = vmul.f32 1.0, %v1854
    %v1856 = vrcp.pop %v1680
    %v1857 = vmul.f32 1.0, %v1856
    %v1858 = vrcp.pop %v1681
    %v1859 = vmul.f32 1.0, %v1858
    %v1860 = vrcp.pop %v1682
    %v1861 = vmul.f32 1.0, %v1860
    %v1862 = vrcp.pop %v1683
    %v1863 = vmul.f32 1.0, %v1862
    %v1864 = vrcp.pop %v1684
    %v1865 = vmul.f32 1.0, %v1864
    %v1866 = vrcp.pop %v1685
    %v1867 = vmul.f32 1.0, %v1866
    %v1868 = vrcp.pop %v1686
    %v1869 = vmul.f32 1.0, %v1868
    %v1870 = vrcp.pop %v1687
    %v1871 = vmul.f32 1.0, %v1870
    %v1872 = vrcp.pop %v1688
    %v1873 = vmul.f32 1.0, %v1872
    %v1874 = vrcp.pop %v1689
    %v1875 = vmul.f32 1.0, %v1874
    %v1876 = vrcp.pop %v1690
    %v1877 = vmul.f32 1.0, %v1876
    %v1878 = vrcp.pop %v1691
    %v1879 = vmul.f32 1.0, %v1878
    %v1880 = vrcp.pop %v1692
    %v1881 = vmul.f32 1.0, %v1880
    %v1882 = vrcp.pop %v1693
    %v1883 = vmul.f32 1.0, %v1882
    %v1884 = vrcp.pop %v1694
    %v1885 = vmul.f32 1.0, %v1884
    %v1886 = vrcp.pop %v1695
    %v1887 = vmul.f32 1.0, %v1886
    %v1888 = vrcp.pop %v1696
    %v1889 = vmul.f32 1.0, %v1888
    %v1890 = vrcp.pop %v1697
    %v1891 = vmul.f32 1.0, %v1890
    %v1892 = vrcp.pop %v1698
    %v1893 = vmul.f32 1.0, %v1892
    %v1894 = vrcp.pop %v1699
    %v1895 = vmul.f32 1.0, %v1894
    %v1896 = vrcp.pop %v1700
    %v1897 = vmul.f32 1.0, %v1896
    %v1898 = vrcp.pop %v1701
    %v1899 = vmul.f32 1.0, %v1898
    %v1900 = vrcp.pop %v1702
    %v1901 = vmul.f32 1.0, %v1900
    %v1902 = vrcp.pop %v1703
    %v1903 = vmul.f32 1.0, %v1902
    %v1904 = vrcp.pop %v1704
    %v1905 = vmul.f32 1.0, %v1904
    %v1906 = vrcp.pop %v1705
    %v1907 = vmul.f32 1.0, %v1906
    %v1908 = vrcp.pop %v1706
    %v1909 = vmul.f32 1.0, %v1908
    %v1910 = vrcp.pop %v1707
    %v1911 = vmul.f32 1.0, %v1910
    %v1912 = vrcp.pop %v1708
    %v1913 = vmul.f32 1.0, %v1912
    %v1914 = vrcp.pop %v1709
    %v1915 = vmul.f32 1.0, %v1914
    %v1916 = vrcp.pop %v1710
    %v1917 = vmul.f32 1.0, %v1916
    %v1918 = vrcp.pop %v1711
    %v1919 = vmul.f32 1.0, %v1918
    %v1920 = vrcp.pop %v1712
    %v1921 = vmul.f32 1.0, %v1920
    %v1922 = vrcp.pop %v1713
    %v1923 = vmul.f32 1.0, %v1922
    %v1924 = vrcp.pop %v1714
    %v1925 = vmul.f32 1.0, %v1924
    %v1926 = vrcp.pop %v1715
    %v1927 = vmul.f32 1.0, %v1926
    %v1928 = vrcp.pop %v1716
    %v1929 = vmul.f32 1.0, %v1928
    %v1930 = vrcp.pop %v1717
    %v1931 = vmul.f32 1.0, %v1930
    %v1932 = vrcp.pop %v1718
    %v1933 = vmul.f32 1.0, %v1932
    %v1934 = vrcp.pop %v1719
    %v1935 = vmul.f32 1.0, %v1934
    %v1936 = vrcp.pop %v1720
    %v1937 = vmul.f32 1.0, %v1936
    %v1938 = vrcp.pop %v1721
    %v1939 = vmul.f32 1.0, %v1938
    %v1940 = vrcp.pop %v1722
    %v1941 = vmul.f32 1.0, %v1940
    %v1942 = vrcp.pop %v1723
    %v1943 = vmul.f32 1.0, %v1942
    %v1944 = vrcp.pop %v1724
    %v1945 = vmul.f32 1.0, %v1944
    %v1946 = vrcp.pop %v1725
    %v1947 = vmul.f32 1.0, %v1946
    %v1948 = vrcp.pop %v1726
    %v1949 = vmul.f32 1.0, %v1948
    %v1950 = vrcp.pop %v1727
    %v1951 = vmul.f32 1.0, %v1950
    %v1952 = vrcp.pop %v1728
    %v1953 = vmul.f32 1.0, %v1952
    %v1954 = vrcp.pop %v1729
    %v1955 = vmul.f32 1.0, %v1954
    %v1956 = vrcp.pop %v1730
    %v1957 = vmul.f32 1.0, %v1956
    %v1958 = vrcp.pop %v1731
    %v1959 = vmul.f32 1.0, %v1958
    %v1960 = vrcp.pop %v1732
    %v1961 = vmul.f32 1.0, %v1960
    %v1962 = vrcp.pop %v1733
    %v1963 = vmul.f32 1.0, %v1962
    %v1964 = vrcp.pop %v1734
    %v1965 = vmul.f32 1.0, %v1964
    %v1966 = vrcp.pop %v1735
    %v1967 = vmul.f32 1.0, %v1966
    %v1968 = vrcp.pop %v1736
    %v1969 = vmul.f32 1.0, %v1968
    %v1970 = vrcp.pop %v1737
    %v1971 = vmul.f32 1.0, %v1970
    %v1972 = vrcp.pop %v1738
    %v1973 = vmul.f32 1.0, %v1972
    %v1974 = vrcp.pop %v1739
    %v1975 = vmul.f32 1.0, %v1974
    %v1976 = vrcp.pop %v1740
    %v1977 = vmul.f32 1.0, %v1976
    %v1978 = vrcp.pop %v1741
    %v1979 = vmul.f32 1.0, %v1978
    %v1980 = vrcp.pop %v1742
    %v1981 = vmul.f32 1.0, %v1980
    %v1982 = vrcp.pop %v1743
    %v1983 = vmul.f32 1.0, %v1982
    %v1984 = vrcp.pop %v1744
    %v1985 = vmul.f32 1.0, %v1984
    %v1986 = vrcp.pop %v1745
    %v1987 = vmul.f32 1.0, %v1986
    %v1988 = vrcp.pop %v1746
    %v1989 = vmul.f32 1.0, %v1988
    %v1990 = vrcp.pop %v1747
    %v1991 = vmul.f32 1.0, %v1990
    %v1992 = vrcp.pop %v1748
    %v1993 = vmul.f32 1.0, %v1992
    %v1994 = vrcp.pop %v1749
    %v1995 = vmul.f32 1.0, %v1994
    %v1996 = vrcp.pop %v1750
    %v1997 = vmul.f32 1.0, %v1996
    %v1998 = vrcp.pop %v1751
    %v1999 = vmul.f32 1.0, %v1998
    %v2000 = vrcp.pop %v1752
    %v2001 = vmul.f32 1.0, %v2000
    %v2002 = vrcp.pop %v1753
    %v2003 = vmul.f32 1.0, %v2002
    %v2004 = vrcp.pop %v1754
    %v2005 = vmul.f32 1.0, %v2004
    %v2006 = vrcp.pop %v1755
    %v2007 = vmul.f32 1.0, %v2006
    %v2008 = vrcp.pop %v1756
    %v2009 = vmul.f32 1.0, %v2008
    %v2010 = vrcp.pop %v1757
    %v2011 = vmul.f32 1.0, %v2010
    %v2012 = vrcp.pop %v1758
    %v2013 = vmul.f32 1.0, %v2012
    %v2014 = vrcp.pop %v1759
    %v2015 = vmul.f32 1.0, %v2014
    %v2016 = vmul.f32 %v738, %v1761
    %v2017 = vmul.f32 %v741, %v1763
    %v2018 = vmul.f32 %v746, %v1765
    %v2019 = vmul.f32 %v749, %v1767
    %v2020 = vmul.f32 %v754, %v1769
    %v2021 = vmul.f32 %v757, %v1771
    %v2022 = vmul.f32 %v762, %v1773
    %v2023 = vmul.f32 %v765, %v1775
    %v2024 = vmul.f32 %v770, %v1777
    %v2025 = vmul.f32 %v773, %v1779
    %v2026 = vmul.f32 %v778, %v1781
    %v2027 = vmul.f32 %v781, %v1783
    %v2028 = vmul.f32 %v786, %v1785
    %v2029 = vmul.f32 %v789, %v1787
    %v2030 = vmul.f32 %v794, %v1789
    %v2031 = vmul.f32 %v797, %v1791
    %v2032 = vmul.f32 %v802, %v1793
    %v2033 = vmul.f32 %v805, %v1795
    %v2034 = vmul.f32 %v810, %v1797
    %v2035 = vmul.f32 %v813, %v1799
    %v2036 = vmul.f32 %v818, %v1801
    %v2037 = vmul.f32 %v821, %v1803
    %v2038 = vmul.f32 %v826, %v1805
    %v2039 = vmul.f32 %v829, %v1807
    %v2040 = vmul.f32 %v834, %v1809
    %v2041 = vmul.f32 %v837, %v1811
    %v2042 = vmul.f32 %v842, %v1813
    %v2043 = vmul.f32 %v845, %v1815
    %v2044 = vmul.f32 %v850, %v1817
    %v2045 = vmul.f32 %v853, %v1819
    %v2046 = vmul.f32 %v858, %v1821
    %v2047 = vmul.f32 %v861, %v1823
    %v2048 = vmul.f32 %v866, %v1825
    %v2049 = vmul.f32 %v869, %v1827
    %v2050 = vmul.f32 %v874, %v1829
    %v2051 = vmul.f32 %v877, %v1831
    %v2052 = vmul.f32 %v882, %v1833
    %v2053 = vmul.f32 %v885, %v1835
    %v2054 = vmul.f32 %v890, %v1837
    %v2055 = vmul.f32 %v893, %v1839
    %v2056 = vmul.f32 %v898, %v1841
    %v2057 = vmul.f32 %v901, %v1843
    %v2058 = vmul.f32 %v906, %v1845
    %v2059 = vmul.f32 %v909, %v1847
    %v2060 = vmul.f32 %v914, %v1849
    %v2061 = vmul.f32 %v917, %v1851
    %v2062 = vmul.f32 %v922, %v1853
    %v2063 = vmul.f32 %v925, %v1855
    %v2064 = vmul.f32 %v930, %v1857
    %v2065 = vmul.f32 %v933, %v1859
    %v2066 = vmul.f32 %v938, %v1861
    %v2067 = vmul.f32 %v941, %v1863
    %v2068 = vmul.f32 %v946, %v1865
    %v2069 = vmul.f32 %v949, %v1867
    %v2070 = vmul.f32 %v954, %v1869
    %v2071 = vmul.f32 %v957, %v1871
    %v2072 = vmul.f32 %v962, %v1873
    %v2073 = vmul.f32 %v965, %v1875
    %v2074 = vmul.f32 %v970, %v1877
    %v2075 = vmul.f32 %v973, %v1879
    %v2076 = vmul.f32 %v978, %v1881
    %v2077 = vmul.f32 %v981, %v1883
    %v2078 = vmul.f32 %v986, %v1885
    %v2079 = vmul.f32 %v989, %v1887
    %v2080 = vmul.f32 %v994, %v1889
    %v2081 = vmul.f32 %v997, %v1891
    %v2082 = vmul.f32 %v1002, %v1893
    %v2083 = vmul.f32 %v1005, %v1895
    %v2084 = vmul.f32 %v1010, %v1897
    %v2085 = vmul.f32 %v1013, %v1899
    %v2086 = vmul.f32 %v1018, %v1901
    %v2087 = vmul.f32 %v1021, %v1903
    %v2088 = vmul.f32 %v1026, %v1905
    %v2089 = vmul.f32 %v1029, %v1907
    %v2090 = vmul.f32 %v1034, %v1909
    %v2091 = vmul.f32 %v1037, %v1911
    %v2092 = vmul.f32 %v1042, %v1913
    %v2093 = vmul.f32 %v1045, %v1915
    %v2094 = vmul.f32 %v1050, %v1917
    %v2095 = vmul.f32 %v1053, %v1919
    %v2096 = vmul.f32 %v1058, %v1921
    %v2097 = vmul.f32 %v1061, %v1923
    %v2098 = vmul.f32 %v1066, %v1925
    %v2099 = vmul.f32 %v1069, %v1927
    %v2100 = vmul.f32 %v1074, %v1929
    %v2101 = vmul.f32 %v1077, %v1931
    %v2102 = vmul.f32 %v1082, %v1933
    %v2103 = vmul.f32 %v1085, %v1935
    %v2104 = vmul.f32 %v1090, %v1937
    %v2105 = vmul.f32 %v1093, %v1939
    %v2106 = vmul.f32 %v1098, %v1941
    %v2107 = vmul.f32 %v1101, %v1943
    %v2108 = vmul.f32 %v1106, %v1945
    %v2109 = vmul.f32 %v1109, %v1947
    %v2110 = vmul.f32 %v1114, %v1949
    %v2111 = vmul.f32 %v1117, %v1951
    %v2112 = vmul.f32 %v1122, %v1953
    %v2113 = vmul.f32 %v1125, %v1955
    %v2114 = vmul.f32 %v1130, %v1957
    %v2115 = vmul.f32 %v1133, %v1959
    %v2116 = vmul.f32 %v1138, %v1961
    %v2117 = vmul.f32 %v1141, %v1963
    %v2118 = vmul.f32 %v1146, %v1965
    %v2119 = vmul.f32 %v1149, %v1967
    %v2120 = vmul.f32 %v1154, %v1969
    %v2121 = vmul.f32 %v1157, %v1971
    %v2122 = vmul.f32 %v1162, %v1973
    %v2123 = vmul.f32 %v1165, %v1975
    %v2124 = vmul.f32 %v1170, %v1977
    %v2125 = vmul.f32 %v1173, %v1979
    %v2126 = vmul.f32 %v1178, %v1981
    %v2127 = vmul.f32 %v1181, %v1983
    %v2128 = vmul.f32 %v1186, %v1985
    %v2129 = vmul.f32 %v1189, %v1987
    %v2130 = vmul.f32 %v1194, %v1989
    %v2131 = vmul.f32 %v1197, %v1991
    %v2132 = vmul.f32 %v1202, %v1993
    %v2133 = vmul.f32 %v1205, %v1995
    %v2134 = vmul.f32 %v1210, %v1997
    %v2135 = vmul.f32 %v1213, %v1999
    %v2136 = vmul.f32 %v1218, %v2001
    %v2137 = vmul.f32 %v1221, %v2003
    %v2138 = vmul.f32 %v1226, %v2005
    %v2139 = vmul.f32 %v1229, %v2007
    %v2140 = vmul.f32 %v1234, %v2009
    %v2141 = vmul.f32 %v1237, %v2011
    %v2142 = vmul.f32 %v1242, %v2013
    %v2143 = vmul.f32 %v1245, %v2015
    %v2144 = vpack.c.bf16 %v2017, %v2016
    %v2145 = vpack.c.bf16 %v2019, %v2018
    %v2146 = vpack.c.bf16 %v2021, %v2020
    %v2147 = vpack.c.bf16 %v2023, %v2022
    %v2148 = vpack.c.bf16 %v2025, %v2024
    %v2149 = vpack.c.bf16 %v2027, %v2026
    %v2150 = vpack.c.bf16 %v2029, %v2028
    %v2151 = vpack.c.bf16 %v2031, %v2030
    %v2152 = vpack.c.bf16 %v2033, %v2032
    %v2153 = vpack.c.bf16 %v2035, %v2034
    %v2154 = vpack.c.bf16 %v2037, %v2036
    %v2155 = vpack.c.bf16 %v2039, %v2038
    %v2156 = vpack.c.bf16 %v2041, %v2040
    %v2157 = vpack.c.bf16 %v2043, %v2042
    %v2158 = vpack.c.bf16 %v2045, %v2044
    %v2159 = vpack.c.bf16 %v2047, %v2046
    %v2160 = vpack.c.bf16 %v2049, %v2048
    %v2161 = vpack.c.bf16 %v2051, %v2050
    %v2162 = vpack.c.bf16 %v2053, %v2052
    %v2163 = vpack.c.bf16 %v2055, %v2054
    %v2164 = vpack.c.bf16 %v2057, %v2056
    %v2165 = vpack.c.bf16 %v2059, %v2058
    %v2166 = vpack.c.bf16 %v2061, %v2060
    %v2167 = vpack.c.bf16 %v2063, %v2062
    %v2168 = vpack.c.bf16 %v2065, %v2064
    %v2169 = vpack.c.bf16 %v2067, %v2066
    %v2170 = vpack.c.bf16 %v2069, %v2068
    %v2171 = vpack.c.bf16 %v2071, %v2070
    %v2172 = vpack.c.bf16 %v2073, %v2072
    %v2173 = vpack.c.bf16 %v2075, %v2074
    %v2174 = vpack.c.bf16 %v2077, %v2076
    %v2175 = vpack.c.bf16 %v2079, %v2078
    %v2176 = vpack.c.bf16 %v2081, %v2080
    %v2177 = vpack.c.bf16 %v2083, %v2082
    %v2178 = vpack.c.bf16 %v2085, %v2084
    %v2179 = vpack.c.bf16 %v2087, %v2086
    %v2180 = vpack.c.bf16 %v2089, %v2088
    %v2181 = vpack.c.bf16 %v2091, %v2090
    %v2182 = vpack.c.bf16 %v2093, %v2092
    %v2183 = vpack.c.bf16 %v2095, %v2094
    %v2184 = vpack.c.bf16 %v2097, %v2096
    %v2185 = vpack.c.bf16 %v2099, %v2098
    %v2186 = vpack.c.bf16 %v2101, %v2100
    %v2187 = vpack.c.bf16 %v2103, %v2102
    %v2188 = vpack.c.bf16 %v2105, %v2104
    %v2189 = vpack.c.bf16 %v2107, %v2106
    %v2190 = vpack.c.bf16 %v2109, %v2108
    %v2191 = vpack.c.bf16 %v2111, %v2110
    %v2192 = vpack.c.bf16 %v2113, %v2112
    %v2193 = vpack.c.bf16 %v2115, %v2114
    %v2194 = vpack.c.bf16 %v2117, %v2116
    %v2195 = vpack.c.bf16 %v2119, %v2118
    %v2196 = vpack.c.bf16 %v2121, %v2120
    %v2197 = vpack.c.bf16 %v2123, %v2122
    %v2198 = vpack.c.bf16 %v2125, %v2124
    %v2199 = vpack.c.bf16 %v2127, %v2126
    %v2200 = vpack.c.bf16 %v2129, %v2128
    %v2201 = vpack.c.bf16 %v2131, %v2130
    %v2202 = vpack.c.bf16 %v2133, %v2132
    %v2203 = vpack.c.bf16 %v2135, %v2134
    %v2204 = vpack.c.bf16 %v2137, %v2136
    %v2205 = vpack.c.bf16 %v2139, %v2138
    %v2206 = vpack.c.bf16 %v2141, %v2140
    %v2207 = vpack.c.bf16 %v2143, %v2142
    %v2208 = vld [vmem:[%s4] sm:$0xf]
    %v2209 = vld [vmem:[%s4 + $0x4] sm:$0xf]
    %v2210 = vld [vmem:[%s4 + $0x8] sm:$0xf]
    %v2211 = vld [vmem:[%s4 + $0xc] sm:$0xf]
    %v2212 = vld [vmem:[%s5] sm:$0x1]
    %v2214 = vlaneseq
    %v2215 = vshrl.u32 %v2214, 7
    %v2216 = vsub.s32 0, %v2215
    %v2217 = vrot.slane %v2212, %v2216
    %v2223 = vunpack.c.l.b16 %v2208
    %v2224 = vunpack.c.l.b16 %v2209
    %v2225 = vunpack.c.l.b16 %v2210
    %v2226 = vunpack.c.l.b16 %v2211
    %v2227 = vpack.c.b16 %v2224, %v2223
    %v2228 = vpack.c.b16 %v2226, %v2225
    %v2232 = vsel %vm510, %v2144, 0
    %v2235 = vsel %vm510, %v2145, 0
    %v2238 = vsel %vm510, %v2146, 0
    %v2241 = vsel %vm510, %v2147, 0
    %v2244 = vsel %vm510, %v2148, 0
    %v2247 = vsel %vm510, %v2149, 0
    %v2250 = vsel %vm510, %v2150, 0
    %v2253 = vsel %vm510, %v2151, 0
    %v2256 = vsel %vm510, %v2152, 0
    %v2259 = vsel %vm510, %v2153, 0
    %v2262 = vsel %vm510, %v2154, 0
    %v2265 = vsel %vm510, %v2155, 0
    %v2268 = vsel %vm510, %v2156, 0
    %v2271 = vsel %vm510, %v2157, 0
    %v2274 = vsel %vm510, %v2158, 0
    %v2277 = vsel %vm510, %v2159, 0
    %v2280 = vsel %vm510, %v2160, 0
    %v2283 = vsel %vm510, %v2161, 0
    %v2286 = vsel %vm510, %v2162, 0
    %v2289 = vsel %vm510, %v2163, 0
    %v2292 = vsel %vm510, %v2164, 0
    %v2295 = vsel %vm510, %v2165, 0
    %v2298 = vsel %vm510, %v2166, 0
    %v2301 = vsel %vm510, %v2167, 0
    %v2304 = vsel %vm510, %v2168, 0
    %v2307 = vsel %vm510, %v2169, 0
    %v2310 = vsel %vm510, %v2170, 0
    %v2313 = vsel %vm510, %v2171, 0
    %v2316 = vsel %vm510, %v2172, 0
    %v2319 = vsel %vm510, %v2173, 0
    %v2322 = vsel %vm510, %v2174, 0
    %v2325 = vsel %vm510, %v2175, 0
    %v2328 = vsel %vm510, %v2176, 0
    %v2331 = vsel %vm510, %v2177, 0
    %v2334 = vsel %vm510, %v2178, 0
    %v2337 = vsel %vm510, %v2179, 0
    %v2340 = vsel %vm510, %v2180, 0
    %v2343 = vsel %vm510, %v2181, 0
    %v2346 = vsel %vm510, %v2182, 0
    %v2349 = vsel %vm510, %v2183, 0
    %v2352 = vsel %vm510, %v2184, 0
    %v2355 = vsel %vm510, %v2185, 0
    %v2358 = vsel %vm510, %v2186, 0
    %v2361 = vsel %vm510, %v2187, 0
    %v2364 = vsel %vm510, %v2188, 0
    %v2367 = vsel %vm510, %v2189, 0
    %v2370 = vsel %vm510, %v2190, 0
    %v2373 = vsel %vm510, %v2191, 0
    %v2376 = vsel %vm510, %v2192, 0
    %v2379 = vsel %vm510, %v2193, 0
    %v2382 = vsel %vm510, %v2194, 0
    %v2385 = vsel %vm510, %v2195, 0
    %v2388 = vsel %vm510, %v2196, 0
    %v2391 = vsel %vm510, %v2197, 0
    %v2394 = vsel %vm510, %v2198, 0
    %v2397 = vsel %vm510, %v2199, 0
    %v2400 = vsel %vm510, %v2200, 0
    %v2403 = vsel %vm510, %v2201, 0
    %v2406 = vsel %vm510, %v2202, 0
    %v2409 = vsel %vm510, %v2203, 0
    %v2412 = vsel %vm510, %v2204, 0
    %v2415 = vsel %vm510, %v2205, 0
    %v2418 = vsel %vm510, %v2206, 0
    %v2421 = vsel %vm510, %v2207, 0
    %2423 = vmatprep.subr.bf16.mxu0 0
    %2424 = vmatpush1.bf16.msra.mxu0 0
    %2425 = vmatprep.subr.bf16.mxu0 0
    %2426 = vmatpush1.bf16.msra.mxu0 0
    %2427 = vmatprep.subr.bf16.mxu0 0
    %2428 = vmatpush1.bf16.msra.mxu0 0
    %2429 = vmatprep.subr.bf16.mxu0 0
    %2430 = vmatpush1.bf16.msra.mxu0 0
    %2431 = vmatprep.subr.bf16.mxu0 0
    %2432 = vmatpush1.bf16.msra.mxu0 0
    %2433 = vmatprep.subr.bf16.mxu0 0
    %2434 = vmatpush1.bf16.msra.mxu0 0
    %2435 = vmatprep.subr.bf16.mxu0 0
    %2436 = vmatpush1.bf16.msra.mxu0 %v2228
    %2437 = vmatprep.subr.bf16.mxu0 0
    %2438 = vmatpush1.bf16.msra.mxu0 %v2227
    %2439 = vmatprep.subr.bf16.mxu0 0
    %2440 = vmatpush2.bf16.msra.mxu0 0
    %2441 = vmatprep.subr.bf16.mxu0 0
    %2442 = vmatpush2.bf16.msra.mxu0 0
    %2443 = vmatprep.subr.bf16.mxu0 0
    %2444 = vmatpush2.bf16.msra.mxu0 0
    %2445 = vmatprep.subr.bf16.mxu0 0
    %2446 = vmatpush2.bf16.msra.mxu0 0
    %2447 = vmatprep.subr.bf16.mxu0 0
    %2448 = vmatpush2.bf16.msra.mxu0 0
    %2449 = vmatprep.subr.bf16.mxu0 0
    %2450 = vmatpush2.bf16.msra.mxu0 0
    %2451 = vmatprep.subr.bf16.mxu0 0
    %2452 = vmatpush2.bf16.msra.mxu0 0
    %2453 = vmatprep.subr.bf16.mxu0 0
    %2454 = vmatpush2.bf16.msra.mxu0 0
    %2455 = vmatprep.mubr.bf16.mxu0 0
    %2456 = vmatmul.mubr.bf16.gmra.mxu0 %v2232
    %v2457 = vpop.f32.mrf.mxu0
    %v2458 = vadd.f32 %v2217, %v2457
    %v2459 = vpop.f32.mrf.mxu0
    %v2460 = vpop.f32.mrf.mxu0
    %v2461 = vadd.f32 %v2217, %v2460
    %v2462 = vpop.f32.mrf.mxu0
    %2463 = vmatprep.mubr.bf16.mxu0 0
    %2464 = vmatmul.mubr.bf16.gmra.mxu0 %v2235
    %v2465 = vpop.f32.mrf.mxu0
    %v2466 = vadd.f32 %v2217, %v2465
    %v2467 = vpop.f32.mrf.mxu0
    %v2468 = vpop.f32.mrf.mxu0
    %v2469 = vadd.f32 %v2217, %v2468
    %v2470 = vpop.f32.mrf.mxu0
    %2471 = vmatprep.mubr.bf16.mxu0 0
    %2472 = vmatmul.mubr.bf16.gmra.mxu0 %v2238
    %v2473 = vpop.f32.mrf.mxu0
    %v2474 = vadd.f32 %v2217, %v2473
    %v2475 = vpop.f32.mrf.mxu0
    %v2476 = vpop.f32.mrf.mxu0
    %v2477 = vadd.f32 %v2217, %v2476
    %v2478 = vpop.f32.mrf.mxu0
    %2479 = vmatprep.mubr.bf16.mxu0 0
    %2480 = vmatmul.mubr.bf16.gmra.mxu0 %v2241
    %v2481 = vpop.f32.mrf.mxu0
    %v2482 = vadd.f32 %v2217, %v2481
    %v2483 = vpop.f32.mrf.mxu0
    %v2484 = vpop.f32.mrf.mxu0
    %v2485 = vadd.f32 %v2217, %v2484
    %v2486 = vpop.f32.mrf.mxu0
    %2487 = vmatprep.mubr.bf16.mxu0 0
    %2488 = vmatmul.mubr.bf16.gmra.mxu0 %v2244
    %v2489 = vpop.f32.mrf.mxu0
    %v2490 = vadd.f32 %v2217, %v2489
    %v2491 = vpop.f32.mrf.mxu0
    %v2492 = vpop.f32.mrf.mxu0
    %v2493 = vadd.f32 %v2217, %v2492
    %v2494 = vpop.f32.mrf.mxu0
    %2495 = vmatprep.mubr.bf16.mxu0 0
    %2496 = vmatmul.mubr.bf16.gmra.mxu0 %v2247
    %v2497 = vpop.f32.mrf.mxu0
    %v2498 = vadd.f32 %v2217, %v2497
    %v2499 = vpop.f32.mrf.mxu0
    %v2500 = vpop.f32.mrf.mxu0
    %v2501 = vadd.f32 %v2217, %v2500
    %v2502 = vpop.f32.mrf.mxu0
    %2503 = vmatprep.mubr.bf16.mxu0 0
    %2504 = vmatmul.mubr.bf16.gmra.mxu0 %v2250
    %v2505 = vpop.f32.mrf.mxu0
    %v2506 = vadd.f32 %v2217, %v2505
    %v2507 = vpop.f32.mrf.mxu0
    %v2508 = vpop.f32.mrf.mxu0
    %v2509 = vadd.f32 %v2217, %v2508
    %v2510 = vpop.f32.mrf.mxu0
    %2511 = vmatprep.mubr.bf16.mxu0 0
    %2512 = vmatmul.mubr.bf16.gmra.mxu0 %v2253
    %v2513 = vpop.f32.mrf.mxu0
    %v2514 = vadd.f32 %v2217, %v2513
    %v2515 = vpop.f32.mrf.mxu0
    %v2516 = vpop.f32.mrf.mxu0
    %v2517 = vadd.f32 %v2217, %v2516
    %v2518 = vpop.f32.mrf.mxu0
    %2519 = vmatprep.mubr.bf16.mxu0 0
    %2520 = vmatmul.mubr.bf16.gmra.mxu0 %v2256
    %v2521 = vpop.f32.mrf.mxu0
    %v2522 = vadd.f32 %v2217, %v2521
    %v2523 = vpop.f32.mrf.mxu0
    %v2524 = vpop.f32.mrf.mxu0
    %v2525 = vadd.f32 %v2217, %v2524
    %v2526 = vpop.f32.mrf.mxu0
    %2527 = vmatprep.mubr.bf16.mxu0 0
    %2528 = vmatmul.mubr.bf16.gmra.mxu0 %v2259
    %v2529 = vpop.f32.mrf.mxu0
    %v2530 = vadd.f32 %v2217, %v2529
    %v2531 = vpop.f32.mrf.mxu0
    %v2532 = vpop.f32.mrf.mxu0
    %v2533 = vadd.f32 %v2217, %v2532
    %v2534 = vpop.f32.mrf.mxu0
    %2535 = vmatprep.mubr.bf16.mxu0 0
    %2536 = vmatmul.mubr.bf16.gmra.mxu0 %v2262
    %v2537 = vpop.f32.mrf.mxu0
    %v2538 = vadd.f32 %v2217, %v2537
    %v2539 = vpop.f32.mrf.mxu0
    %v2540 = vpop.f32.mrf.mxu0
    %v2541 = vadd.f32 %v2217, %v2540
    %v2542 = vpop.f32.mrf.mxu0
    %2543 = vmatprep.mubr.bf16.mxu0 0
    %2544 = vmatmul.mubr.bf16.gmra.mxu0 %v2265
    %v2545 = vpop.f32.mrf.mxu0
    %v2546 = vadd.f32 %v2217, %v2545
    %v2547 = vpop.f32.mrf.mxu0
    %v2548 = vpop.f32.mrf.mxu0
    %v2549 = vadd.f32 %v2217, %v2548
    %v2550 = vpop.f32.mrf.mxu0
    %2551 = vmatprep.mubr.bf16.mxu0 0
    %2552 = vmatmul.mubr.bf16.gmra.mxu0 %v2268
    %v2553 = vpop.f32.mrf.mxu0
    %v2554 = vadd.f32 %v2217, %v2553
    %v2555 = vpop.f32.mrf.mxu0
    %v2556 = vpop.f32.mrf.mxu0
    %v2557 = vadd.f32 %v2217, %v2556
    %v2558 = vpop.f32.mrf.mxu0
    %2559 = vmatprep.mubr.bf16.mxu0 0
    %2560 = vmatmul.mubr.bf16.gmra.mxu0 %v2271
    %v2561 = vpop.f32.mrf.mxu0
    %v2562 = vadd.f32 %v2217, %v2561
    %v2563 = vpop.f32.mrf.mxu0
    %v2564 = vpop.f32.mrf.mxu0
    %v2565 = vadd.f32 %v2217, %v2564
    %v2566 = vpop.f32.mrf.mxu0
    %2567 = vmatprep.mubr.bf16.mxu0 0
    %2568 = vmatmul.mubr.bf16.gmra.mxu0 %v2274
    %v2569 = vpop.f32.mrf.mxu0
    %v2570 = vadd.f32 %v2217, %v2569
    %v2571 = vpop.f32.mrf.mxu0
    %v2572 = vpop.f32.mrf.mxu0
    %v2573 = vadd.f32 %v2217, %v2572
    %v2574 = vpop.f32.mrf.mxu0
    %2575 = vmatprep.mubr.bf16.mxu0 0
    %2576 = vmatmul.mubr.bf16.gmra.mxu0 %v2277
    %v2577 = vpop.f32.mrf.mxu0
    %v2578 = vadd.f32 %v2217, %v2577
    %v2579 = vpop.f32.mrf.mxu0
    %v2580 = vpop.f32.mrf.mxu0
    %v2581 = vadd.f32 %v2217, %v2580
    %v2582 = vpop.f32.mrf.mxu0
    %2583 = vmatprep.mubr.bf16.mxu0 0
    %2584 = vmatmul.mubr.bf16.gmra.mxu0 %v2280
    %v2585 = vpop.f32.mrf.mxu0
    %v2586 = vadd.f32 %v2217, %v2585
    %v2587 = vpop.f32.mrf.mxu0
    %v2588 = vpop.f32.mrf.mxu0
    %v2589 = vadd.f32 %v2217, %v2588
    %v2590 = vpop.f32.mrf.mxu0
    %2591 = vmatprep.mubr.bf16.mxu0 0
    %2592 = vmatmul.mubr.bf16.gmra.mxu0 %v2283
    %v2593 = vpop.f32.mrf.mxu0
    %v2594 = vadd.f32 %v2217, %v2593
    %v2595 = vpop.f32.mrf.mxu0
    %v2596 = vpop.f32.mrf.mxu0
    %v2597 = vadd.f32 %v2217, %v2596
    %v2598 = vpop.f32.mrf.mxu0
    %2599 = vmatprep.mubr.bf16.mxu0 0
    %2600 = vmatmul.mubr.bf16.gmra.mxu0 %v2286
    %v2601 = vpop.f32.mrf.mxu0
    %v2602 = vadd.f32 %v2217, %v2601
    %v2603 = vpop.f32.mrf.mxu0
    %v2604 = vpop.f32.mrf.mxu0
    %v2605 = vadd.f32 %v2217, %v2604
    %v2606 = vpop.f32.mrf.mxu0
    %2607 = vmatprep.mubr.bf16.mxu0 0
    %2608 = vmatmul.mubr.bf16.gmra.mxu0 %v2289
    %v2609 = vpop.f32.mrf.mxu0
    %v2610 = vadd.f32 %v2217, %v2609
    %v2611 = vpop.f32.mrf.mxu0
    %v2612 = vpop.f32.mrf.mxu0
    %v2613 = vadd.f32 %v2217, %v2612
    %v2614 = vpop.f32.mrf.mxu0
    %2615 = vmatprep.mubr.bf16.mxu0 0
    %2616 = vmatmul.mubr.bf16.gmra.mxu0 %v2292
    %v2617 = vpop.f32.mrf.mxu0
    %v2618 = vadd.f32 %v2217, %v2617
    %v2619 = vpop.f32.mrf.mxu0
    %v2620 = vpop.f32.mrf.mxu0
    %v2621 = vadd.f32 %v2217, %v2620
    %v2622 = vpop.f32.mrf.mxu0
    %2623 = vmatprep.mubr.bf16.mxu0 0
    %2624 = vmatmul.mubr.bf16.gmra.mxu0 %v2295
    %v2625 = vpop.f32.mrf.mxu0
    %v2626 = vadd.f32 %v2217, %v2625
    %v2627 = vpop.f32.mrf.mxu0
    %v2628 = vpop.f32.mrf.mxu0
    %v2629 = vadd.f32 %v2217, %v2628
    %v2630 = vpop.f32.mrf.mxu0
    %2631 = vmatprep.mubr.bf16.mxu0 0
    %2632 = vmatmul.mubr.bf16.gmra.mxu0 %v2298
    %v2633 = vpop.f32.mrf.mxu0
    %v2634 = vadd.f32 %v2217, %v2633
    %v2635 = vpop.f32.mrf.mxu0
    %v2636 = vpop.f32.mrf.mxu0
    %v2637 = vadd.f32 %v2217, %v2636
    %v2638 = vpop.f32.mrf.mxu0
    %2639 = vmatprep.mubr.bf16.mxu0 0
    %2640 = vmatmul.mubr.bf16.gmra.mxu0 %v2301
    %v2641 = vpop.f32.mrf.mxu0
    %v2642 = vadd.f32 %v2217, %v2641
    %v2643 = vpop.f32.mrf.mxu0
    %v2644 = vpop.f32.mrf.mxu0
    %v2645 = vadd.f32 %v2217, %v2644
    %v2646 = vpop.f32.mrf.mxu0
    %2647 = vmatprep.mubr.bf16.mxu0 0
    %2648 = vmatmul.mubr.bf16.gmra.mxu0 %v2304
    %v2649 = vpop.f32.mrf.mxu0
    %v2650 = vadd.f32 %v2217, %v2649
    %v2651 = vpop.f32.mrf.mxu0
    %v2652 = vpop.f32.mrf.mxu0
    %v2653 = vadd.f32 %v2217, %v2652
    %v2654 = vpop.f32.mrf.mxu0
    %2655 = vmatprep.mubr.bf16.mxu0 0
    %2656 = vmatmul.mubr.bf16.gmra.mxu0 %v2307
    %v2657 = vpop.f32.mrf.mxu0
    %v2658 = vadd.f32 %v2217, %v2657
    %v2659 = vpop.f32.mrf.mxu0
    %v2660 = vpop.f32.mrf.mxu0
    %v2661 = vadd.f32 %v2217, %v2660
    %v2662 = vpop.f32.mrf.mxu0
    %2663 = vmatprep.mubr.bf16.mxu0 0
    %2664 = vmatmul.mubr.bf16.gmra.mxu0 %v2310
    %v2665 = vpop.f32.mrf.mxu0
    %v2666 = vadd.f32 %v2217, %v2665
    %v2667 = vpop.f32.mrf.mxu0
    %v2668 = vpop.f32.mrf.mxu0
    %v2669 = vadd.f32 %v2217, %v2668
    %v2670 = vpop.f32.mrf.mxu0
    %2671 = vmatprep.mubr.bf16.mxu0 0
    %2672 = vmatmul.mubr.bf16.gmra.mxu0 %v2313
    %v2673 = vpop.f32.mrf.mxu0
    %v2674 = vadd.f32 %v2217, %v2673
    %v2675 = vpop.f32.mrf.mxu0
    %v2676 = vpop.f32.mrf.mxu0
    %v2677 = vadd.f32 %v2217, %v2676
    %v2678 = vpop.f32.mrf.mxu0
    %2679 = vmatprep.mubr.bf16.mxu0 0
    %2680 = vmatmul.mubr.bf16.gmra.mxu0 %v2316
    %v2681 = vpop.f32.mrf.mxu0
    %v2682 = vadd.f32 %v2217, %v2681
    %v2683 = vpop.f32.mrf.mxu0
    %v2684 = vpop.f32.mrf.mxu0
    %v2685 = vadd.f32 %v2217, %v2684
    %v2686 = vpop.f32.mrf.mxu0
    %2687 = vmatprep.mubr.bf16.mxu0 0
    %2688 = vmatmul.mubr.bf16.gmra.mxu0 %v2319
    %v2689 = vpop.f32.mrf.mxu0
    %v2690 = vadd.f32 %v2217, %v2689
    %v2691 = vpop.f32.mrf.mxu0
    %v2692 = vpop.f32.mrf.mxu0
    %v2693 = vadd.f32 %v2217, %v2692
    %v2694 = vpop.f32.mrf.mxu0
    %2695 = vmatprep.mubr.bf16.mxu0 0
    %2696 = vmatmul.mubr.bf16.gmra.mxu0 %v2322
    %v2697 = vpop.f32.mrf.mxu0
    %v2698 = vadd.f32 %v2217, %v2697
    %v2699 = vpop.f32.mrf.mxu0
    %v2700 = vpop.f32.mrf.mxu0
    %v2701 = vadd.f32 %v2217, %v2700
    %v2702 = vpop.f32.mrf.mxu0
    %2703 = vmatprep.mubr.bf16.mxu0 0
    %2704 = vmatmul.mubr.bf16.gmra.mxu0 %v2325
    %v2705 = vpop.f32.mrf.mxu0
    %v2706 = vadd.f32 %v2217, %v2705
    %v2707 = vpop.f32.mrf.mxu0
    %v2708 = vpop.f32.mrf.mxu0
    %v2709 = vadd.f32 %v2217, %v2708
    %v2710 = vpop.f32.mrf.mxu0
    %2711 = vmatprep.mubr.bf16.mxu0 0
    %2712 = vmatmul.mubr.bf16.gmra.mxu0 %v2328
    %v2713 = vpop.f32.mrf.mxu0
    %v2714 = vadd.f32 %v2217, %v2713
    %v2715 = vpop.f32.mrf.mxu0
    %v2716 = vpop.f32.mrf.mxu0
    %v2717 = vadd.f32 %v2217, %v2716
    %v2718 = vpop.f32.mrf.mxu0
    %2719 = vmatprep.mubr.bf16.mxu0 0
    %2720 = vmatmul.mubr.bf16.gmra.mxu0 %v2331
    %v2721 = vpop.f32.mrf.mxu0
    %v2722 = vadd.f32 %v2217, %v2721
    %v2723 = vpop.f32.mrf.mxu0
    %v2724 = vpop.f32.mrf.mxu0
    %v2725 = vadd.f32 %v2217, %v2724
    %v2726 = vpop.f32.mrf.mxu0
    %2727 = vmatprep.mubr.bf16.mxu0 0
    %2728 = vmatmul.mubr.bf16.gmra.mxu0 %v2334
    %v2729 = vpop.f32.mrf.mxu0
    %v2730 = vadd.f32 %v2217, %v2729
    %v2731 = vpop.f32.mrf.mxu0
    %v2732 = vpop.f32.mrf.mxu0
    %v2733 = vadd.f32 %v2217, %v2732
    %v2734 = vpop.f32.mrf.mxu0
    %2735 = vmatprep.mubr.bf16.mxu0 0
    %2736 = vmatmul.mubr.bf16.gmra.mxu0 %v2337
    %v2737 = vpop.f32.mrf.mxu0
    %v2738 = vadd.f32 %v2217, %v2737
    %v2739 = vpop.f32.mrf.mxu0
    %v2740 = vpop.f32.mrf.mxu0
    %v2741 = vadd.f32 %v2217, %v2740
    %v2742 = vpop.f32.mrf.mxu0
    %2743 = vmatprep.mubr.bf16.mxu0 0
    %2744 = vmatmul.mubr.bf16.gmra.mxu0 %v2340
    %v2745 = vpop.f32.mrf.mxu0
    %v2746 = vadd.f32 %v2217, %v2745
    %v2747 = vpop.f32.mrf.mxu0
    %v2748 = vpop.f32.mrf.mxu0
    %v2749 = vadd.f32 %v2217, %v2748
    %v2750 = vpop.f32.mrf.mxu0
    %2751 = vmatprep.mubr.bf16.mxu0 0
    %2752 = vmatmul.mubr.bf16.gmra.mxu0 %v2343
    %v2753 = vpop.f32.mrf.mxu0
    %v2754 = vadd.f32 %v2217, %v2753
    %v2755 = vpop.f32.mrf.mxu0
    %v2756 = vpop.f32.mrf.mxu0
    %v2757 = vadd.f32 %v2217, %v2756
    %v2758 = vpop.f32.mrf.mxu0
    %2759 = vmatprep.mubr.bf16.mxu0 0
    %2760 = vmatmul.mubr.bf16.gmra.mxu0 %v2346
    %v2761 = vpop.f32.mrf.mxu0
    %v2762 = vadd.f32 %v2217, %v2761
    %v2763 = vpop.f32.mrf.mxu0
    %v2764 = vpop.f32.mrf.mxu0
    %v2765 = vadd.f32 %v2217, %v2764
    %v2766 = vpop.f32.mrf.mxu0
    %2767 = vmatprep.mubr.bf16.mxu0 0
    %2768 = vmatmul.mubr.bf16.gmra.mxu0 %v2349
    %v2769 = vpop.f32.mrf.mxu0
    %v2770 = vadd.f32 %v2217, %v2769
    %v2771 = vpop.f32.mrf.mxu0
    %v2772 = vpop.f32.mrf.mxu0
    %v2773 = vadd.f32 %v2217, %v2772
    %v2774 = vpop.f32.mrf.mxu0
    %2775 = vmatprep.mubr.bf16.mxu0 0
    %2776 = vmatmul.mubr.bf16.gmra.mxu0 %v2352
    %v2777 = vpop.f32.mrf.mxu0
    %v2778 = vadd.f32 %v2217, %v2777
    %v2779 = vpop.f32.mrf.mxu0
    %v2780 = vpop.f32.mrf.mxu0
    %v2781 = vadd.f32 %v2217, %v2780
    %v2782 = vpop.f32.mrf.mxu0
    %2783 = vmatprep.mubr.bf16.mxu0 0
    %2784 = vmatmul.mubr.bf16.gmra.mxu0 %v2355
    %v2785 = vpop.f32.mrf.mxu0
    %v2786 = vadd.f32 %v2217, %v2785
    %v2787 = vpop.f32.mrf.mxu0
    %v2788 = vpop.f32.mrf.mxu0
    %v2789 = vadd.f32 %v2217, %v2788
    %v2790 = vpop.f32.mrf.mxu0
    %2791 = vmatprep.mubr.bf16.mxu0 0
    %2792 = vmatmul.mubr.bf16.gmra.mxu0 %v2358
    %v2793 = vpop.f32.mrf.mxu0
    %v2794 = vadd.f32 %v2217, %v2793
    %v2795 = vpop.f32.mrf.mxu0
    %v2796 = vpop.f32.mrf.mxu0
    %v2797 = vadd.f32 %v2217, %v2796
    %v2798 = vpop.f32.mrf.mxu0
    %2799 = vmatprep.mubr.bf16.mxu0 0
    %2800 = vmatmul.mubr.bf16.gmra.mxu0 %v2361
    %v2801 = vpop.f32.mrf.mxu0
    %v2802 = vadd.f32 %v2217, %v2801
    %v2803 = vpop.f32.mrf.mxu0
    %v2804 = vpop.f32.mrf.mxu0
    %v2805 = vadd.f32 %v2217, %v2804
    %v2806 = vpop.f32.mrf.mxu0
    %2807 = vmatprep.mubr.bf16.mxu0 0
    %2808 = vmatmul.mubr.bf16.gmra.mxu0 %v2364
    %v2809 = vpop.f32.mrf.mxu0
    %v2810 = vadd.f32 %v2217, %v2809
    %v2811 = vpop.f32.mrf.mxu0
    %v2812 = vpop.f32.mrf.mxu0
    %v2813 = vadd.f32 %v2217, %v2812
    %v2814 = vpop.f32.mrf.mxu0
    %2815 = vmatprep.mubr.bf16.mxu0 0
    %2816 = vmatmul.mubr.bf16.gmra.mxu0 %v2367
    %v2817 = vpop.f32.mrf.mxu0
    %v2818 = vadd.f32 %v2217, %v2817
    %v2819 = vpop.f32.mrf.mxu0
    %v2820 = vpop.f32.mrf.mxu0
    %v2821 = vadd.f32 %v2217, %v2820
    %v2822 = vpop.f32.mrf.mxu0
    %2823 = vmatprep.mubr.bf16.mxu0 0
    %2824 = vmatmul.mubr.bf16.gmra.mxu0 %v2370
    %v2825 = vpop.f32.mrf.mxu0
    %v2826 = vadd.f32 %v2217, %v2825
    %v2827 = vpop.f32.mrf.mxu0
    %v2828 = vpop.f32.mrf.mxu0
    %v2829 = vadd.f32 %v2217, %v2828
    %v2830 = vpop.f32.mrf.mxu0
    %2831 = vmatprep.mubr.bf16.mxu0 0
    %2832 = vmatmul.mubr.bf16.gmra.mxu0 %v2373
    %v2833 = vpop.f32.mrf.mxu0
    %v2834 = vadd.f32 %v2217, %v2833
    %v2835 = vpop.f32.mrf.mxu0
    %v2836 = vpop.f32.mrf.mxu0
    %v2837 = vadd.f32 %v2217, %v2836
    %v2838 = vpop.f32.mrf.mxu0
    %2839 = vmatprep.mubr.bf16.mxu0 0
    %2840 = vmatmul.mubr.bf16.gmra.mxu0 %v2376
    %v2841 = vpop.f32.mrf.mxu0
    %v2842 = vadd.f32 %v2217, %v2841
    %v2843 = vpop.f32.mrf.mxu0
    %v2844 = vpop.f32.mrf.mxu0
    %v2845 = vadd.f32 %v2217, %v2844
    %v2846 = vpop.f32.mrf.mxu0
    %2847 = vmatprep.mubr.bf16.mxu0 0
    %2848 = vmatmul.mubr.bf16.gmra.mxu0 %v2379
    %v2849 = vpop.f32.mrf.mxu0
    %v2850 = vadd.f32 %v2217, %v2849
    %v2851 = vpop.f32.mrf.mxu0
    %v2852 = vpop.f32.mrf.mxu0
    %v2853 = vadd.f32 %v2217, %v2852
    %v2854 = vpop.f32.mrf.mxu0
    %2855 = vmatprep.mubr.bf16.mxu0 0
    %2856 = vmatmul.mubr.bf16.gmra.mxu0 %v2382
    %v2857 = vpop.f32.mrf.mxu0
    %v2858 = vadd.f32 %v2217, %v2857
    %v2859 = vpop.f32.mrf.mxu0
    %v2860 = vpop.f32.mrf.mxu0
    %v2861 = vadd.f32 %v2217, %v2860
    %v2862 = vpop.f32.mrf.mxu0
    %2863 = vmatprep.mubr.bf16.mxu0 0
    %2864 = vmatmul.mubr.bf16.gmra.mxu0 %v2385
    %v2865 = vpop.f32.mrf.mxu0
    %v2866 = vadd.f32 %v2217, %v2865
    %v2867 = vpop.f32.mrf.mxu0
    %v2868 = vpop.f32.mrf.mxu0
    %v2869 = vadd.f32 %v2217, %v2868
    %v2870 = vpop.f32.mrf.mxu0
    %2871 = vmatprep.mubr.bf16.mxu0 0
    %2872 = vmatmul.mubr.bf16.gmra.mxu0 %v2388
    %v2873 = vpop.f32.mrf.mxu0
    %v2874 = vadd.f32 %v2217, %v2873
    %v2875 = vpop.f32.mrf.mxu0
    %v2876 = vpop.f32.mrf.mxu0
    %v2877 = vadd.f32 %v2217, %v2876
    %v2878 = vpop.f32.mrf.mxu0
    %2879 = vmatprep.mubr.bf16.mxu0 0
    %2880 = vmatmul.mubr.bf16.gmra.mxu0 %v2391
    %v2881 = vpop.f32.mrf.mxu0
    %v2882 = vadd.f32 %v2217, %v2881
    %v2883 = vpop.f32.mrf.mxu0
    %v2884 = vpop.f32.mrf.mxu0
    %v2885 = vadd.f32 %v2217, %v2884
    %v2886 = vpop.f32.mrf.mxu0
    %2887 = vmatprep.mubr.bf16.mxu0 0
    %2888 = vmatmul.mubr.bf16.gmra.mxu0 %v2394
    %v2889 = vpop.f32.mrf.mxu0
    %v2890 = vadd.f32 %v2217, %v2889
    %v2891 = vpop.f32.mrf.mxu0
    %v2892 = vpop.f32.mrf.mxu0
    %v2893 = vadd.f32 %v2217, %v2892
    %v2894 = vpop.f32.mrf.mxu0
    %2895 = vmatprep.mubr.bf16.mxu0 0
    %2896 = vmatmul.mubr.bf16.gmra.mxu0 %v2397
    %v2897 = vpop.f32.mrf.mxu0
    %v2898 = vadd.f32 %v2217, %v2897
    %v2899 = vpop.f32.mrf.mxu0
    %v2900 = vpop.f32.mrf.mxu0
    %v2901 = vadd.f32 %v2217, %v2900
    %v2902 = vpop.f32.mrf.mxu0
    %2903 = vmatprep.mubr.bf16.mxu0 0
    %2904 = vmatmul.mubr.bf16.gmra.mxu0 %v2400
    %v2905 = vpop.f32.mrf.mxu0
    %v2906 = vadd.f32 %v2217, %v2905
    %v2907 = vpop.f32.mrf.mxu0
    %v2908 = vpop.f32.mrf.mxu0
    %v2909 = vadd.f32 %v2217, %v2908
    %v2910 = vpop.f32.mrf.mxu0
    %2911 = vmatprep.mubr.bf16.mxu0 0
    %2912 = vmatmul.mubr.bf16.gmra.mxu0 %v2403
    %v2913 = vpop.f32.mrf.mxu0
    %v2914 = vadd.f32 %v2217, %v2913
    %v2915 = vpop.f32.mrf.mxu0
    %v2916 = vpop.f32.mrf.mxu0
    %v2917 = vadd.f32 %v2217, %v2916
    %v2918 = vpop.f32.mrf.mxu0
    %2919 = vmatprep.mubr.bf16.mxu0 0
    %2920 = vmatmul.mubr.bf16.gmra.mxu0 %v2406
    %v2921 = vpop.f32.mrf.mxu0
    %v2922 = vadd.f32 %v2217, %v2921
    %v2923 = vpop.f32.mrf.mxu0
    %v2924 = vpop.f32.mrf.mxu0
    %v2925 = vadd.f32 %v2217, %v2924
    %v2926 = vpop.f32.mrf.mxu0
    %2927 = vmatprep.mubr.bf16.mxu0 0
    %2928 = vmatmul.mubr.bf16.gmra.mxu0 %v2409
    %v2929 = vpop.f32.mrf.mxu0
    %v2930 = vadd.f32 %v2217, %v2929
    %v2931 = vpop.f32.mrf.mxu0
    %v2932 = vpop.f32.mrf.mxu0
    %v2933 = vadd.f32 %v2217, %v2932
    %v2934 = vpop.f32.mrf.mxu0
    %2935 = vmatprep.mubr.bf16.mxu0 0
    %2936 = vmatmul.mubr.bf16.gmra.mxu0 %v2412
    %v2937 = vpop.f32.mrf.mxu0
    %v2938 = vadd.f32 %v2217, %v2937
    %v2939 = vpop.f32.mrf.mxu0
    %v2940 = vpop.f32.mrf.mxu0
    %v2941 = vadd.f32 %v2217, %v2940
    %v2942 = vpop.f32.mrf.mxu0
    %2943 = vmatprep.mubr.bf16.mxu0 0
    %2944 = vmatmul.mubr.bf16.gmra.mxu0 %v2415
    %v2945 = vpop.f32.mrf.mxu0
    %v2946 = vadd.f32 %v2217, %v2945
    %v2947 = vpop.f32.mrf.mxu0
    %v2948 = vpop.f32.mrf.mxu0
    %v2949 = vadd.f32 %v2217, %v2948
    %v2950 = vpop.f32.mrf.mxu0
    %2951 = vmatprep.mubr.bf16.mxu0 0
    %2952 = vmatmul.mubr.bf16.gmra.mxu0 %v2418
    %v2953 = vpop.f32.mrf.mxu0
    %v2954 = vadd.f32 %v2217, %v2953
    %v2955 = vpop.f32.mrf.mxu0
    %v2956 = vpop.f32.mrf.mxu0
    %v2957 = vadd.f32 %v2217, %v2956
    %v2958 = vpop.f32.mrf.mxu0
    %2959 = vmatprep.mubr.bf16.mxu0 0
    %2960 = vmatmul.mubr.bf16.gmra.mxu0 %v2421
    %v2961 = vpop.f32.mrf.mxu0
    %v2962 = vadd.f32 %v2217, %v2961
    %v2963 = vpop.f32.mrf.mxu0
    %v2964 = vpop.f32.mrf.mxu0
    %v2965 = vadd.f32 %v2217, %v2964
    %v2966 = vpop.f32.mrf.mxu0
    %2967 = vdwg.mxu0
    %v2968 = vld [vmem:[%s1] sm:$0xff]
    %v2969 = vld [vmem:[%s1 + $0x8] sm:$0xff]
    %v2970 = vld [vmem:[%s1 + $0x10] sm:$0xff]
    %v2971 = vld [vmem:[%s1 + $0x18] sm:$0xff]
    %v2972 = vld [vmem:[%s1 + $0x20] sm:$0xff]
    %v2973 = vld [vmem:[%s1 + $0x28] sm:$0xff]
    %v2974 = vld [vmem:[%s1 + $0x30] sm:$0xff]
    %v2975 = vld [vmem:[%s1 + $0x38] sm:$0xff]
    %v2976 = vld [vmem:[%s1 + $0x40] sm:$0xff]
    %v2977 = vld [vmem:[%s1 + $0x48] sm:$0xff]
    %v2978 = vld [vmem:[%s1 + $0x50] sm:$0xff]
    %v2979 = vld [vmem:[%s1 + $0x58] sm:$0xff]
    %v2980 = vld [vmem:[%s1 + $0x60] sm:$0xff]
    %v2981 = vld [vmem:[%s1 + $0x68] sm:$0xff]
    %v2982 = vld [vmem:[%s1 + $0x70] sm:$0xff]
    %v2983 = vld [vmem:[%s1 + $0x78] sm:$0xff]
    %v2984 = vld [vmem:[%s1 + $0x80] sm:$0xff]
    %v2985 = vld [vmem:[%s1 + $0x88] sm:$0xff]
    %v2986 = vld [vmem:[%s1 + $0x90] sm:$0xff]
    %v2987 = vld [vmem:[%s1 + $0x98] sm:$0xff]
    %v2988 = vld [vmem:[%s1 + $0xa0] sm:$0xff]
    %v2989 = vld [vmem:[%s1 + $0xa8] sm:$0xff]
    %v2990 = vld [vmem:[%s1 + $0xb0] sm:$0xff]
    %v2991 = vld [vmem:[%s1 + $0xb8] sm:$0xff]
    %v2992 = vld [vmem:[%s1 + $0xc0] sm:$0xff]
    %v2993 = vld [vmem:[%s1 + $0xc8] sm:$0xff]
    %v2994 = vld [vmem:[%s1 + $0xd0] sm:$0xff]
    %v2995 = vld [vmem:[%s1 + $0xd8] sm:$0xff]
    %v2996 = vld [vmem:[%s1 + $0xe0] sm:$0xff]
    %v2997 = vld [vmem:[%s1 + $0xe8] sm:$0xff]
    %v2998 = vld [vmem:[%s1 + $0xf0] sm:$0xff]
    %v2999 = vld [vmem:[%s1 + $0xf8] sm:$0xff]
    %v3000 = vld [vmem:[%s1 + $0x100] sm:$0xff]
    %v3001 = vld [vmem:[%s1 + $0x108] sm:$0xff]
    %v3002 = vld [vmem:[%s1 + $0x110] sm:$0xff]
    %v3003 = vld [vmem:[%s1 + $0x118] sm:$0xff]
    %v3004 = vld [vmem:[%s1 + $0x120] sm:$0xff]
    %v3005 = vld [vmem:[%s1 + $0x128] sm:$0xff]
    %v3006 = vld [vmem:[%s1 + $0x130] sm:$0xff]
    %v3007 = vld [vmem:[%s1 + $0x138] sm:$0xff]
    %v3008 = vld [vmem:[%s1 + $0x140] sm:$0xff]
    %v3009 = vld [vmem:[%s1 + $0x148] sm:$0xff]
    %v3010 = vld [vmem:[%s1 + $0x150] sm:$0xff]
    %v3011 = vld [vmem:[%s1 + $0x158] sm:$0xff]
    %v3012 = vld [vmem:[%s1 + $0x160] sm:$0xff]
    %v3013 = vld [vmem:[%s1 + $0x168] sm:$0xff]
    %v3014 = vld [vmem:[%s1 + $0x170] sm:$0xff]
    %v3015 = vld [vmem:[%s1 + $0x178] sm:$0xff]
    %v3016 = vld [vmem:[%s1 + $0x180] sm:$0xff]
    %v3017 = vld [vmem:[%s1 + $0x188] sm:$0xff]
    %v3018 = vld [vmem:[%s1 + $0x190] sm:$0xff]
    %v3019 = vld [vmem:[%s1 + $0x198] sm:$0xff]
    %v3020 = vld [vmem:[%s1 + $0x1a0] sm:$0xff]
    %v3021 = vld [vmem:[%s1 + $0x1a8] sm:$0xff]
    %v3022 = vld [vmem:[%s1 + $0x1b0] sm:$0xff]
    %v3023 = vld [vmem:[%s1 + $0x1b8] sm:$0xff]
    %v3024 = vld [vmem:[%s1 + $0x1c0] sm:$0xff]
    %v3025 = vld [vmem:[%s1 + $0x1c8] sm:$0xff]
    %v3026 = vld [vmem:[%s1 + $0x1d0] sm:$0xff]
    %v3027 = vld [vmem:[%s1 + $0x1d8] sm:$0xff]
    %v3028 = vld [vmem:[%s1 + $0x1e0] sm:$0xff]
    %v3029 = vld [vmem:[%s1 + $0x1e8] sm:$0xff]
    %v3030 = vld [vmem:[%s1 + $0x1f0] sm:$0xff]
    %v3031 = vld [vmem:[%s1 + $0x1f8] sm:$0xff]
    %v3032 = vld [vmem:[%s1 + $0x200] sm:$0xff]
    %v3033 = vld [vmem:[%s1 + $0x208] sm:$0xff]
    %v3034 = vld [vmem:[%s1 + $0x210] sm:$0xff]
    %v3035 = vld [vmem:[%s1 + $0x218] sm:$0xff]
    %v3036 = vld [vmem:[%s1 + $0x220] sm:$0xff]
    %v3037 = vld [vmem:[%s1 + $0x228] sm:$0xff]
    %v3038 = vld [vmem:[%s1 + $0x230] sm:$0xff]
    %v3039 = vld [vmem:[%s1 + $0x238] sm:$0xff]
    %v3040 = vld [vmem:[%s1 + $0x240] sm:$0xff]
    %v3041 = vld [vmem:[%s1 + $0x248] sm:$0xff]
    %v3042 = vld [vmem:[%s1 + $0x250] sm:$0xff]
    %v3043 = vld [vmem:[%s1 + $0x258] sm:$0xff]
    %v3044 = vld [vmem:[%s1 + $0x260] sm:$0xff]
    %v3045 = vld [vmem:[%s1 + $0x268] sm:$0xff]
    %v3046 = vld [vmem:[%s1 + $0x270] sm:$0xff]
    %v3047 = vld [vmem:[%s1 + $0x278] sm:$0xff]
    %v3048 = vld [vmem:[%s1 + $0x280] sm:$0xff]
    %v3049 = vld [vmem:[%s1 + $0x288] sm:$0xff]
    %v3050 = vld [vmem:[%s1 + $0x290] sm:$0xff]
    %v3051 = vld [vmem:[%s1 + $0x298] sm:$0xff]
    %v3052 = vld [vmem:[%s1 + $0x2a0] sm:$0xff]
    %v3053 = vld [vmem:[%s1 + $0x2a8] sm:$0xff]
    %v3054 = vld [vmem:[%s1 + $0x2b0] sm:$0xff]
    %v3055 = vld [vmem:[%s1 + $0x2b8] sm:$0xff]
    %v3056 = vld [vmem:[%s1 + $0x2c0] sm:$0xff]
    %v3057 = vld [vmem:[%s1 + $0x2c8] sm:$0xff]
    %v3058 = vld [vmem:[%s1 + $0x2d0] sm:$0xff]
    %v3059 = vld [vmem:[%s1 + $0x2d8] sm:$0xff]
    %v3060 = vld [vmem:[%s1 + $0x2e0] sm:$0xff]
    %v3061 = vld [vmem:[%s1 + $0x2e8] sm:$0xff]
    %v3062 = vld [vmem:[%s1 + $0x2f0] sm:$0xff]
    %v3063 = vld [vmem:[%s1 + $0x2f8] sm:$0xff]
    %v3064 = vld [vmem:[%s1 + $0x300] sm:$0xff]
    %v3065 = vld [vmem:[%s1 + $0x308] sm:$0xff]
    %v3066 = vld [vmem:[%s1 + $0x310] sm:$0xff]
    %v3067 = vld [vmem:[%s1 + $0x318] sm:$0xff]
    %v3068 = vld [vmem:[%s1 + $0x320] sm:$0xff]
    %v3069 = vld [vmem:[%s1 + $0x328] sm:$0xff]
    %v3070 = vld [vmem:[%s1 + $0x330] sm:$0xff]
    %v3071 = vld [vmem:[%s1 + $0x338] sm:$0xff]
    %v3072 = vld [vmem:[%s1 + $0x340] sm:$0xff]
    %v3073 = vld [vmem:[%s1 + $0x348] sm:$0xff]
    %v3074 = vld [vmem:[%s1 + $0x350] sm:$0xff]
    %v3075 = vld [vmem:[%s1 + $0x358] sm:$0xff]
    %v3076 = vld [vmem:[%s1 + $0x360] sm:$0xff]
    %v3077 = vld [vmem:[%s1 + $0x368] sm:$0xff]
    %v3078 = vld [vmem:[%s1 + $0x370] sm:$0xff]
    %v3079 = vld [vmem:[%s1 + $0x378] sm:$0xff]
    %v3080 = vld [vmem:[%s1 + $0x380] sm:$0xff]
    %v3081 = vld [vmem:[%s1 + $0x388] sm:$0xff]
    %v3082 = vld [vmem:[%s1 + $0x390] sm:$0xff]
    %v3083 = vld [vmem:[%s1 + $0x398] sm:$0xff]
    %v3084 = vld [vmem:[%s1 + $0x3a0] sm:$0xff]
    %v3085 = vld [vmem:[%s1 + $0x3a8] sm:$0xff]
    %v3086 = vld [vmem:[%s1 + $0x3b0] sm:$0xff]
    %v3087 = vld [vmem:[%s1 + $0x3b8] sm:$0xff]
    %v3088 = vld [vmem:[%s1 + $0x3c0] sm:$0xff]
    %v3089 = vld [vmem:[%s1 + $0x3c8] sm:$0xff]
    %v3090 = vld [vmem:[%s1 + $0x3d0] sm:$0xff]
    %v3091 = vld [vmem:[%s1 + $0x3d8] sm:$0xff]
    %v3092 = vld [vmem:[%s1 + $0x3e0] sm:$0xff]
    %v3093 = vld [vmem:[%s1 + $0x3e8] sm:$0xff]
    %v3094 = vld [vmem:[%s1 + $0x3f0] sm:$0xff]
    %v3095 = vld [vmem:[%s1 + $0x3f8] sm:$0xff]
    %3097 = vset.pattern.permute.xlu0 0
    %3098 = vperm.xlu0 %3097, %v2968
    %v3099 = vpop.permute.xlu0 %3098
    %3102 = vset.pattern.permute.xlu0 0
    %3103 = vperm.xlu0 %3102, %v2969
    %v3104 = vpop.permute.xlu0 %3103
    %3107 = vset.pattern.permute.xlu0 0
    %3108 = vperm.xlu0 %3107, %v2970
    %v3109 = vpop.permute.xlu0 %3108
    %3112 = vset.pattern.permute.xlu0 0
    %3113 = vperm.xlu0 %3112, %v2971
    %v3114 = vpop.permute.xlu0 %3113
    %3117 = vset.pattern.permute.xlu0 0
    %3118 = vperm.xlu0 %3117, %v2972
    %v3119 = vpop.permute.xlu0 %3118
    %3122 = vset.pattern.permute.xlu0 0
    %3123 = vperm.xlu0 %3122, %v2973
    %v3124 = vpop.permute.xlu0 %3123
    %3127 = vset.pattern.permute.xlu0 0
    %3128 = vperm.xlu0 %3127, %v2974
    %v3129 = vpop.permute.xlu0 %3128
    %3132 = vset.pattern.permute.xlu0 0
    %3133 = vperm.xlu0 %3132, %v2975
    %v3134 = vpop.permute.xlu0 %3133
    %3137 = vset.pattern.permute.xlu0 0
    %3138 = vperm.xlu0 %3137, %v2976
    %v3139 = vpop.permute.xlu0 %3138
    %3142 = vset.pattern.permute.xlu0 0
    %3143 = vperm.xlu0 %3142, %v2977
    %v3144 = vpop.permute.xlu0 %3143
    %3147 = vset.pattern.permute.xlu0 0
    %3148 = vperm.xlu0 %3147, %v2978
    %v3149 = vpop.permute.xlu0 %3148
    %3152 = vset.pattern.permute.xlu0 0
    %3153 = vperm.xlu0 %3152, %v2979
    %v3154 = vpop.permute.xlu0 %3153
    %3157 = vset.pattern.permute.xlu0 0
    %3158 = vperm.xlu0 %3157, %v2980
    %v3159 = vpop.permute.xlu0 %3158
    %3162 = vset.pattern.permute.xlu0 0
    %3163 = vperm.xlu0 %3162, %v2981
    %v3164 = vpop.permute.xlu0 %3163
    %3167 = vset.pattern.permute.xlu0 0
    %3168 = vperm.xlu0 %3167, %v2982
    %v3169 = vpop.permute.xlu0 %3168
    %3172 = vset.pattern.permute.xlu0 0
    %3173 = vperm.xlu0 %3172, %v2983
    %v3174 = vpop.permute.xlu0 %3173
    %3177 = vset.pattern.permute.xlu0 0
    %3178 = vperm.xlu0 %3177, %v2984
    %v3179 = vpop.permute.xlu0 %3178
    %3182 = vset.pattern.permute.xlu0 0
    %3183 = vperm.xlu0 %3182, %v2985
    %v3184 = vpop.permute.xlu0 %3183
    %3187 = vset.pattern.permute.xlu0 0
    %3188 = vperm.xlu0 %3187, %v2986
    %v3189 = vpop.permute.xlu0 %3188
    %3192 = vset.pattern.permute.xlu0 0
    %3193 = vperm.xlu0 %3192, %v2987
    %v3194 = vpop.permute.xlu0 %3193
    %3197 = vset.pattern.permute.xlu0 0
    %3198 = vperm.xlu0 %3197, %v2988
    %v3199 = vpop.permute.xlu0 %3198
    %3202 = vset.pattern.permute.xlu0 0
    %3203 = vperm.xlu0 %3202, %v2989
    %v3204 = vpop.permute.xlu0 %3203
    %3207 = vset.pattern.permute.xlu0 0
    %3208 = vperm.xlu0 %3207, %v2990
    %v3209 = vpop.permute.xlu0 %3208
    %3212 = vset.pattern.permute.xlu0 0
    %3213 = vperm.xlu0 %3212, %v2991
    %v3214 = vpop.permute.xlu0 %3213
    %3217 = vset.pattern.permute.xlu0 0
    %3218 = vperm.xlu0 %3217, %v2992
    %v3219 = vpop.permute.xlu0 %3218
    %3222 = vset.pattern.permute.xlu0 0
    %3223 = vperm.xlu0 %3222, %v2993
    %v3224 = vpop.permute.xlu0 %3223
    %3227 = vset.pattern.permute.xlu0 0
    %3228 = vperm.xlu0 %3227, %v2994
    %v3229 = vpop.permute.xlu0 %3228
    %3232 = vset.pattern.permute.xlu0 0
    %3233 = vperm.xlu0 %3232, %v2995
    %v3234 = vpop.permute.xlu0 %3233
    %3237 = vset.pattern.permute.xlu0 0
    %3238 = vperm.xlu0 %3237, %v2996
    %v3239 = vpop.permute.xlu0 %3238
    %3242 = vset.pattern.permute.xlu0 0
    %3243 = vperm.xlu0 %3242, %v2997
    %v3244 = vpop.permute.xlu0 %3243
    %3247 = vset.pattern.permute.xlu0 0
    %3248 = vperm.xlu0 %3247, %v2998
    %v3249 = vpop.permute.xlu0 %3248
    %3252 = vset.pattern.permute.xlu0 0
    %3253 = vperm.xlu0 %3252, %v2999
    %v3254 = vpop.permute.xlu0 %3253
    %3257 = vset.pattern.permute.xlu0 0
    %3258 = vperm.xlu0 %3257, %v3000
    %v3259 = vpop.permute.xlu0 %3258
    %3262 = vset.pattern.permute.xlu0 0
    %3263 = vperm.xlu0 %3262, %v3001
    %v3264 = vpop.permute.xlu0 %3263
    %3267 = vset.pattern.permute.xlu0 0
    %3268 = vperm.xlu0 %3267, %v3002
    %v3269 = vpop.permute.xlu0 %3268
    %3272 = vset.pattern.permute.xlu0 0
    %3273 = vperm.xlu0 %3272, %v3003
    %v3274 = vpop.permute.xlu0 %3273
    %3277 = vset.pattern.permute.xlu0 0
    %3278 = vperm.xlu0 %3277, %v3004
    %v3279 = vpop.permute.xlu0 %3278
    %3282 = vset.pattern.permute.xlu0 0
    %3283 = vperm.xlu0 %3282, %v3005
    %v3284 = vpop.permute.xlu0 %3283
    %3287 = vset.pattern.permute.xlu0 0
    %3288 = vperm.xlu0 %3287, %v3006
    %v3289 = vpop.permute.xlu0 %3288
    %3292 = vset.pattern.permute.xlu0 0
    %3293 = vperm.xlu0 %3292, %v3007
    %v3294 = vpop.permute.xlu0 %3293
    %3297 = vset.pattern.permute.xlu0 0
    %3298 = vperm.xlu0 %3297, %v3008
    %v3299 = vpop.permute.xlu0 %3298
    %3302 = vset.pattern.permute.xlu0 0
    %3303 = vperm.xlu0 %3302, %v3009
    %v3304 = vpop.permute.xlu0 %3303
    %3307 = vset.pattern.permute.xlu0 0
    %3308 = vperm.xlu0 %3307, %v3010
    %v3309 = vpop.permute.xlu0 %3308
    %3312 = vset.pattern.permute.xlu0 0
    %3313 = vperm.xlu0 %3312, %v3011
    %v3314 = vpop.permute.xlu0 %3313
    %3317 = vset.pattern.permute.xlu0 0
    %3318 = vperm.xlu0 %3317, %v3012
    %v3319 = vpop.permute.xlu0 %3318
    %3322 = vset.pattern.permute.xlu0 0
    %3323 = vperm.xlu0 %3322, %v3013
    %v3324 = vpop.permute.xlu0 %3323
    %3327 = vset.pattern.permute.xlu0 0
    %3328 = vperm.xlu0 %3327, %v3014
    %v3329 = vpop.permute.xlu0 %3328
    %3332 = vset.pattern.permute.xlu0 0
    %3333 = vperm.xlu0 %3332, %v3015
    %v3334 = vpop.permute.xlu0 %3333
    %3337 = vset.pattern.permute.xlu0 0
    %3338 = vperm.xlu0 %3337, %v3016
    %v3339 = vpop.permute.xlu0 %3338
    %3342 = vset.pattern.permute.xlu0 0
    %3343 = vperm.xlu0 %3342, %v3017
    %v3344 = vpop.permute.xlu0 %3343
    %3347 = vset.pattern.permute.xlu0 0
    %3348 = vperm.xlu0 %3347, %v3018
    %v3349 = vpop.permute.xlu0 %3348
    %3352 = vset.pattern.permute.xlu0 0
    %3353 = vperm.xlu0 %3352, %v3019
    %v3354 = vpop.permute.xlu0 %3353
    %3357 = vset.pattern.permute.xlu0 0
    %3358 = vperm.xlu0 %3357, %v3020
    %v3359 = vpop.permute.xlu0 %3358
    %3362 = vset.pattern.permute.xlu0 0
    %3363 = vperm.xlu0 %3362, %v3021
    %v3364 = vpop.permute.xlu0 %3363
    %3367 = vset.pattern.permute.xlu0 0
    %3368 = vperm.xlu0 %3367, %v3022
    %v3369 = vpop.permute.xlu0 %3368
    %3372 = vset.pattern.permute.xlu0 0
    %3373 = vperm.xlu0 %3372, %v3023
    %v3374 = vpop.permute.xlu0 %3373
    %3377 = vset.pattern.permute.xlu0 0
    %3378 = vperm.xlu0 %3377, %v3024
    %v3379 = vpop.permute.xlu0 %3378
    %3382 = vset.pattern.permute.xlu0 0
    %3383 = vperm.xlu0 %3382, %v3025
    %v3384 = vpop.permute.xlu0 %3383
    %3387 = vset.pattern.permute.xlu0 0
    %3388 = vperm.xlu0 %3387, %v3026
    %v3389 = vpop.permute.xlu0 %3388
    %3392 = vset.pattern.permute.xlu0 0
    %3393 = vperm.xlu0 %3392, %v3027
    %v3394 = vpop.permute.xlu0 %3393
    %3397 = vset.pattern.permute.xlu0 0
    %3398 = vperm.xlu0 %3397, %v3028
    %v3399 = vpop.permute.xlu0 %3398
    %3402 = vset.pattern.permute.xlu0 0
    %3403 = vperm.xlu0 %3402, %v3029
    %v3404 = vpop.permute.xlu0 %3403
    %3407 = vset.pattern.permute.xlu0 0
    %3408 = vperm.xlu0 %3407, %v3030
    %v3409 = vpop.permute.xlu0 %3408
    %3412 = vset.pattern.permute.xlu0 0
    %3413 = vperm.xlu0 %3412, %v3031
    %v3414 = vpop.permute.xlu0 %3413
    %3417 = vset.pattern.permute.xlu0 0
    %3418 = vperm.xlu0 %3417, %v3032
    %v3419 = vpop.permute.xlu0 %3418
    %3422 = vset.pattern.permute.xlu0 0
    %3423 = vperm.xlu0 %3422, %v3033
    %v3424 = vpop.permute.xlu0 %3423
    %3427 = vset.pattern.permute.xlu0 0
    %3428 = vperm.xlu0 %3427, %v3034
    %v3429 = vpop.permute.xlu0 %3428
    %3432 = vset.pattern.permute.xlu0 0
    %3433 = vperm.xlu0 %3432, %v3035
    %v3434 = vpop.permute.xlu0 %3433
    %3437 = vset.pattern.permute.xlu0 0
    %3438 = vperm.xlu0 %3437, %v3036
    %v3439 = vpop.permute.xlu0 %3438
    %3442 = vset.pattern.permute.xlu0 0
    %3443 = vperm.xlu0 %3442, %v3037
    %v3444 = vpop.permute.xlu0 %3443
    %3447 = vset.pattern.permute.xlu0 0
    %3448 = vperm.xlu0 %3447, %v3038
    %v3449 = vpop.permute.xlu0 %3448
    %3452 = vset.pattern.permute.xlu0 0
    %3453 = vperm.xlu0 %3452, %v3039
    %v3454 = vpop.permute.xlu0 %3453
    %3457 = vset.pattern.permute.xlu0 0
    %3458 = vperm.xlu0 %3457, %v3040
    %v3459 = vpop.permute.xlu0 %3458
    %3462 = vset.pattern.permute.xlu0 0
    %3463 = vperm.xlu0 %3462, %v3041
    %v3464 = vpop.permute.xlu0 %3463
    %3467 = vset.pattern.permute.xlu0 0
    %3468 = vperm.xlu0 %3467, %v3042
    %v3469 = vpop.permute.xlu0 %3468
    %3472 = vset.pattern.permute.xlu0 0
    %3473 = vperm.xlu0 %3472, %v3043
    %v3474 = vpop.permute.xlu0 %3473
    %3477 = vset.pattern.permute.xlu0 0
    %3478 = vperm.xlu0 %3477, %v3044
    %v3479 = vpop.permute.xlu0 %3478
    %3482 = vset.pattern.permute.xlu0 0
    %3483 = vperm.xlu0 %3482, %v3045
    %v3484 = vpop.permute.xlu0 %3483
    %3487 = vset.pattern.permute.xlu0 0
    %3488 = vperm.xlu0 %3487, %v3046
    %v3489 = vpop.permute.xlu0 %3488
    %3492 = vset.pattern.permute.xlu0 0
    %3493 = vperm.xlu0 %3492, %v3047
    %v3494 = vpop.permute.xlu0 %3493
    %3497 = vset.pattern.permute.xlu0 0
    %3498 = vperm.xlu0 %3497, %v3048
    %v3499 = vpop.permute.xlu0 %3498
    %3502 = vset.pattern.permute.xlu0 0
    %3503 = vperm.xlu0 %3502, %v3049
    %v3504 = vpop.permute.xlu0 %3503
    %3507 = vset.pattern.permute.xlu0 0
    %3508 = vperm.xlu0 %3507, %v3050
    %v3509 = vpop.permute.xlu0 %3508
    %3512 = vset.pattern.permute.xlu0 0
    %3513 = vperm.xlu0 %3512, %v3051
    %v3514 = vpop.permute.xlu0 %3513
    %3517 = vset.pattern.permute.xlu0 0
    %3518 = vperm.xlu0 %3517, %v3052
    %v3519 = vpop.permute.xlu0 %3518
    %3522 = vset.pattern.permute.xlu0 0
    %3523 = vperm.xlu0 %3522, %v3053
    %v3524 = vpop.permute.xlu0 %3523
    %3527 = vset.pattern.permute.xlu0 0
    %3528 = vperm.xlu0 %3527, %v3054
    %v3529 = vpop.permute.xlu0 %3528
    %3532 = vset.pattern.permute.xlu0 0
    %3533 = vperm.xlu0 %3532, %v3055
    %v3534 = vpop.permute.xlu0 %3533
    %3537 = vset.pattern.permute.xlu0 0
    %3538 = vperm.xlu0 %3537, %v3056
    %v3539 = vpop.permute.xlu0 %3538
    %3542 = vset.pattern.permute.xlu0 0
    %3543 = vperm.xlu0 %3542, %v3057
    %v3544 = vpop.permute.xlu0 %3543
    %3547 = vset.pattern.permute.xlu0 0
    %3548 = vperm.xlu0 %3547, %v3058
    %v3549 = vpop.permute.xlu0 %3548
    %3552 = vset.pattern.permute.xlu0 0
    %3553 = vperm.xlu0 %3552, %v3059
    %v3554 = vpop.permute.xlu0 %3553
    %3557 = vset.pattern.permute.xlu0 0
    %3558 = vperm.xlu0 %3557, %v3060
    %v3559 = vpop.permute.xlu0 %3558
    %3562 = vset.pattern.permute.xlu0 0
    %3563 = vperm.xlu0 %3562, %v3061
    %v3564 = vpop.permute.xlu0 %3563
    %3567 = vset.pattern.permute.xlu0 0
    %3568 = vperm.xlu0 %3567, %v3062
    %v3569 = vpop.permute.xlu0 %3568
    %3572 = vset.pattern.permute.xlu0 0
    %3573 = vperm.xlu0 %3572, %v3063
    %v3574 = vpop.permute.xlu0 %3573
    %3577 = vset.pattern.permute.xlu0 0
    %3578 = vperm.xlu0 %3577, %v3064
    %v3579 = vpop.permute.xlu0 %3578
    %3582 = vset.pattern.permute.xlu0 0
    %3583 = vperm.xlu0 %3582, %v3065
    %v3584 = vpop.permute.xlu0 %3583
    %3587 = vset.pattern.permute.xlu0 0
    %3588 = vperm.xlu0 %3587, %v3066
    %v3589 = vpop.permute.xlu0 %3588
    %3592 = vset.pattern.permute.xlu0 0
    %3593 = vperm.xlu0 %3592, %v3067
    %v3594 = vpop.permute.xlu0 %3593
    %3597 = vset.pattern.permute.xlu0 0
    %3598 = vperm.xlu0 %3597, %v3068
    %v3599 = vpop.permute.xlu0 %3598
    %3602 = vset.pattern.permute.xlu0 0
    %3603 = vperm.xlu0 %3602, %v3069
    %v3604 = vpop.permute.xlu0 %3603
    %3607 = vset.pattern.permute.xlu0 0
    %3608 = vperm.xlu0 %3607, %v3070
    %v3609 = vpop.permute.xlu0 %3608
    %3612 = vset.pattern.permute.xlu0 0
    %3613 = vperm.xlu0 %3612, %v3071
    %v3614 = vpop.permute.xlu0 %3613
    %3617 = vset.pattern.permute.xlu0 0
    %3618 = vperm.xlu0 %3617, %v3072
    %v3619 = vpop.permute.xlu0 %3618
    %3622 = vset.pattern.permute.xlu0 0
    %3623 = vperm.xlu0 %3622, %v3073
    %v3624 = vpop.permute.xlu0 %3623
    %3627 = vset.pattern.permute.xlu0 0
    %3628 = vperm.xlu0 %3627, %v3074
    %v3629 = vpop.permute.xlu0 %3628
    %3632 = vset.pattern.permute.xlu0 0
    %3633 = vperm.xlu0 %3632, %v3075
    %v3634 = vpop.permute.xlu0 %3633
    %3637 = vset.pattern.permute.xlu0 0
    %3638 = vperm.xlu0 %3637, %v3076
    %v3639 = vpop.permute.xlu0 %3638
    %3642 = vset.pattern.permute.xlu0 0
    %3643 = vperm.xlu0 %3642, %v3077
    %v3644 = vpop.permute.xlu0 %3643
    %3647 = vset.pattern.permute.xlu0 0
    %3648 = vperm.xlu0 %3647, %v3078
    %v3649 = vpop.permute.xlu0 %3648
    %3652 = vset.pattern.permute.xlu0 0
    %3653 = vperm.xlu0 %3652, %v3079
    %v3654 = vpop.permute.xlu0 %3653
    %3657 = vset.pattern.permute.xlu0 0
    %3658 = vperm.xlu0 %3657, %v3080
    %v3659 = vpop.permute.xlu0 %3658
    %3662 = vset.pattern.permute.xlu0 0
    %3663 = vperm.xlu0 %3662, %v3081
    %v3664 = vpop.permute.xlu0 %3663
    %3667 = vset.pattern.permute.xlu0 0
    %3668 = vperm.xlu0 %3667, %v3082
    %v3669 = vpop.permute.xlu0 %3668
    %3672 = vset.pattern.permute.xlu0 0
    %3673 = vperm.xlu0 %3672, %v3083
    %v3674 = vpop.permute.xlu0 %3673
    %3677 = vset.pattern.permute.xlu0 0
    %3678 = vperm.xlu0 %3677, %v3084
    %v3679 = vpop.permute.xlu0 %3678
    %3682 = vset.pattern.permute.xlu0 0
    %3683 = vperm.xlu0 %3682, %v3085
    %v3684 = vpop.permute.xlu0 %3683
    %3687 = vset.pattern.permute.xlu0 0
    %3688 = vperm.xlu0 %3687, %v3086
    %v3689 = vpop.permute.xlu0 %3688
    %3692 = vset.pattern.permute.xlu0 0
    %3693 = vperm.xlu0 %3692, %v3087
    %v3694 = vpop.permute.xlu0 %3693
    %3697 = vset.pattern.permute.xlu0 0
    %3698 = vperm.xlu0 %3697, %v3088
    %v3699 = vpop.permute.xlu0 %3698
    %3702 = vset.pattern.permute.xlu0 0
    %3703 = vperm.xlu0 %3702, %v3089
    %v3704 = vpop.permute.xlu0 %3703
    %3707 = vset.pattern.permute.xlu0 0
    %3708 = vperm.xlu0 %3707, %v3090
    %v3709 = vpop.permute.xlu0 %3708
    %3712 = vset.pattern.permute.xlu0 0
    %3713 = vperm.xlu0 %3712, %v3091
    %v3714 = vpop.permute.xlu0 %3713
    %3717 = vset.pattern.permute.xlu0 0
    %3718 = vperm.xlu0 %3717, %v3092
    %v3719 = vpop.permute.xlu0 %3718
    %3722 = vset.pattern.permute.xlu0 0
    %3723 = vperm.xlu0 %3722, %v3093
    %v3724 = vpop.permute.xlu0 %3723
    %3727 = vset.pattern.permute.xlu0 0
    %3728 = vperm.xlu0 %3727, %v3094
    %v3729 = vpop.permute.xlu0 %3728
    %3732 = vset.pattern.permute.xlu0 0
    %3733 = vperm.xlu0 %3732, %v3095
    %v3734 = vpop.permute.xlu0 %3733
    %v3736 = vmul.f32 %v2458, %v3099
    %v3737 = vmul.f32 %v2461, %v3104
    %v3738 = vmul.f32 %v2466, %v3109
    %v3739 = vmul.f32 %v2469, %v3114
    %v3740 = vmul.f32 %v2474, %v3119
    %v3741 = vmul.f32 %v2477, %v3124
    %v3742 = vmul.f32 %v2482, %v3129
    %v3743 = vmul.f32 %v2485, %v3134
    %v3744 = vmul.f32 %v2490, %v3139
    %v3745 = vmul.f32 %v2493, %v3144
    %v3746 = vmul.f32 %v2498, %v3149
    %v3747 = vmul.f32 %v2501, %v3154
    %v3748 = vmul.f32 %v2506, %v3159
    %v3749 = vmul.f32 %v2509, %v3164
    %v3750 = vmul.f32 %v2514, %v3169
    %v3751 = vmul.f32 %v2517, %v3174
    %v3752 = vmul.f32 %v2522, %v3179
    %v3753 = vmul.f32 %v2525, %v3184
    %v3754 = vmul.f32 %v2530, %v3189
    %v3755 = vmul.f32 %v2533, %v3194
    %v3756 = vmul.f32 %v2538, %v3199
    %v3757 = vmul.f32 %v2541, %v3204
    %v3758 = vmul.f32 %v2546, %v3209
    %v3759 = vmul.f32 %v2549, %v3214
    %v3760 = vmul.f32 %v2554, %v3219
    %v3761 = vmul.f32 %v2557, %v3224
    %v3762 = vmul.f32 %v2562, %v3229
    %v3763 = vmul.f32 %v2565, %v3234
    %v3764 = vmul.f32 %v2570, %v3239
    %v3765 = vmul.f32 %v2573, %v3244
    %v3766 = vmul.f32 %v2578, %v3249
    %v3767 = vmul.f32 %v2581, %v3254
    %v3768 = vmul.f32 %v2586, %v3259
    %v3769 = vmul.f32 %v2589, %v3264
    %v3770 = vmul.f32 %v2594, %v3269
    %v3771 = vmul.f32 %v2597, %v3274
    %v3772 = vmul.f32 %v2602, %v3279
    %v3773 = vmul.f32 %v2605, %v3284
    %v3774 = vmul.f32 %v2610, %v3289
    %v3775 = vmul.f32 %v2613, %v3294
    %v3776 = vmul.f32 %v2618, %v3299
    %v3777 = vmul.f32 %v2621, %v3304
    %v3778 = vmul.f32 %v2626, %v3309
    %v3779 = vmul.f32 %v2629, %v3314
    %v3780 = vmul.f32 %v2634, %v3319
    %v3781 = vmul.f32 %v2637, %v3324
    %v3782 = vmul.f32 %v2642, %v3329
    %v3783 = vmul.f32 %v2645, %v3334
    %v3784 = vmul.f32 %v2650, %v3339
    %v3785 = vmul.f32 %v2653, %v3344
    %v3786 = vmul.f32 %v2658, %v3349
    %v3787 = vmul.f32 %v2661, %v3354
    %v3788 = vmul.f32 %v2666, %v3359
    %v3789 = vmul.f32 %v2669, %v3364
    %v3790 = vmul.f32 %v2674, %v3369
    %v3791 = vmul.f32 %v2677, %v3374
    %v3792 = vmul.f32 %v2682, %v3379
    %v3793 = vmul.f32 %v2685, %v3384
    %v3794 = vmul.f32 %v2690, %v3389
    %v3795 = vmul.f32 %v2693, %v3394
    %v3796 = vmul.f32 %v2698, %v3399
    %v3797 = vmul.f32 %v2701, %v3404
    %v3798 = vmul.f32 %v2706, %v3409
    %v3799 = vmul.f32 %v2709, %v3414
    %v3800 = vmul.f32 %v2714, %v3419
    %v3801 = vmul.f32 %v2717, %v3424
    %v3802 = vmul.f32 %v2722, %v3429
    %v3803 = vmul.f32 %v2725, %v3434
    %v3804 = vmul.f32 %v2730, %v3439
    %v3805 = vmul.f32 %v2733, %v3444
    %v3806 = vmul.f32 %v2738, %v3449
    %v3807 = vmul.f32 %v2741, %v3454
    %v3808 = vmul.f32 %v2746, %v3459
    %v3809 = vmul.f32 %v2749, %v3464
    %v3810 = vmul.f32 %v2754, %v3469
    %v3811 = vmul.f32 %v2757, %v3474
    %v3812 = vmul.f32 %v2762, %v3479
    %v3813 = vmul.f32 %v2765, %v3484
    %v3814 = vmul.f32 %v2770, %v3489
    %v3815 = vmul.f32 %v2773, %v3494
    %v3816 = vmul.f32 %v2778, %v3499
    %v3817 = vmul.f32 %v2781, %v3504
    %v3818 = vmul.f32 %v2786, %v3509
    %v3819 = vmul.f32 %v2789, %v3514
    %v3820 = vmul.f32 %v2794, %v3519
    %v3821 = vmul.f32 %v2797, %v3524
    %v3822 = vmul.f32 %v2802, %v3529
    %v3823 = vmul.f32 %v2805, %v3534
    %v3824 = vmul.f32 %v2810, %v3539
    %v3825 = vmul.f32 %v2813, %v3544
    %v3826 = vmul.f32 %v2818, %v3549
    %v3827 = vmul.f32 %v2821, %v3554
    %v3828 = vmul.f32 %v2826, %v3559
    %v3829 = vmul.f32 %v2829, %v3564
    %v3830 = vmul.f32 %v2834, %v3569
    %v3831 = vmul.f32 %v2837, %v3574
    %v3832 = vmul.f32 %v2842, %v3579
    %v3833 = vmul.f32 %v2845, %v3584
    %v3834 = vmul.f32 %v2850, %v3589
    %v3835 = vmul.f32 %v2853, %v3594
    %v3836 = vmul.f32 %v2858, %v3599
    %v3837 = vmul.f32 %v2861, %v3604
    %v3838 = vmul.f32 %v2866, %v3609
    %v3839 = vmul.f32 %v2869, %v3614
    %v3840 = vmul.f32 %v2874, %v3619
    %v3841 = vmul.f32 %v2877, %v3624
    %v3842 = vmul.f32 %v2882, %v3629
    %v3843 = vmul.f32 %v2885, %v3634
    %v3844 = vmul.f32 %v2890, %v3639
    %v3845 = vmul.f32 %v2893, %v3644
    %v3846 = vmul.f32 %v2898, %v3649
    %v3847 = vmul.f32 %v2901, %v3654
    %v3848 = vmul.f32 %v2906, %v3659
    %v3849 = vmul.f32 %v2909, %v3664
    %v3850 = vmul.f32 %v2914, %v3669
    %v3851 = vmul.f32 %v2917, %v3674
    %v3852 = vmul.f32 %v2922, %v3679
    %v3853 = vmul.f32 %v2925, %v3684
    %v3854 = vmul.f32 %v2930, %v3689
    %v3855 = vmul.f32 %v2933, %v3694
    %v3856 = vmul.f32 %v2938, %v3699
    %v3857 = vmul.f32 %v2941, %v3704
    %v3858 = vmul.f32 %v2946, %v3709
    %v3859 = vmul.f32 %v2949, %v3714
    %v3860 = vmul.f32 %v2954, %v3719
    %v3861 = vmul.f32 %v2957, %v3724
    %v3862 = vmul.f32 %v2962, %v3729
    %v3863 = vmul.f32 %v2965, %v3734
    %v3864 = vsel %vm510, %v3736, 0.0
    %v3865 = vrot.slane %v3864, 4
    %v3866 = vadd.f32 %v3864, %v3865
    %v3867 = vrot.slane %v3866, 2
    %v3868 = vadd.f32 %v3866, %v3867
    %v3869 = vrot.slane %v3868, 1
    %v3870 = vadd.f32 %v3868, %v3869
    %v3871 = vsel %vm510, %v3737, 0.0
    %v3872 = vrot.slane %v3871, 4
    %v3873 = vadd.f32 %v3871, %v3872
    %v3874 = vrot.slane %v3873, 2
    %v3875 = vadd.f32 %v3873, %v3874
    %v3876 = vrot.slane %v3875, 1
    %v3877 = vadd.f32 %v3875, %v3876
    %v3878 = vsel %vm510, %v3738, 0.0
    %v3879 = vrot.slane %v3878, 4
    %v3880 = vadd.f32 %v3878, %v3879
    %v3881 = vrot.slane %v3880, 2
    %v3882 = vadd.f32 %v3880, %v3881
    %v3883 = vrot.slane %v3882, 1
    %v3884 = vadd.f32 %v3882, %v3883
    %v3885 = vsel %vm510, %v3739, 0.0
    %v3886 = vrot.slane %v3885, 4
    %v3887 = vadd.f32 %v3885, %v3886
    %v3888 = vrot.slane %v3887, 2
    %v3889 = vadd.f32 %v3887, %v3888
    %v3890 = vrot.slane %v3889, 1
    %v3891 = vadd.f32 %v3889, %v3890
    %v3892 = vsel %vm510, %v3740, 0.0
    %v3893 = vrot.slane %v3892, 4
    %v3894 = vadd.f32 %v3892, %v3893
    %v3895 = vrot.slane %v3894, 2
    %v3896 = vadd.f32 %v3894, %v3895
    %v3897 = vrot.slane %v3896, 1
    %v3898 = vadd.f32 %v3896, %v3897
    %v3899 = vsel %vm510, %v3741, 0.0
    %v3900 = vrot.slane %v3899, 4
    %v3901 = vadd.f32 %v3899, %v3900
    %v3902 = vrot.slane %v3901, 2
    %v3903 = vadd.f32 %v3901, %v3902
    %v3904 = vrot.slane %v3903, 1
    %v3905 = vadd.f32 %v3903, %v3904
    %v3906 = vsel %vm510, %v3742, 0.0
    %v3907 = vrot.slane %v3906, 4
    %v3908 = vadd.f32 %v3906, %v3907
    %v3909 = vrot.slane %v3908, 2
    %v3910 = vadd.f32 %v3908, %v3909
    %v3911 = vrot.slane %v3910, 1
    %v3912 = vadd.f32 %v3910, %v3911
    %v3913 = vsel %vm510, %v3743, 0.0
    %v3914 = vrot.slane %v3913, 4
    %v3915 = vadd.f32 %v3913, %v3914
    %v3916 = vrot.slane %v3915, 2
    %v3917 = vadd.f32 %v3915, %v3916
    %v3918 = vrot.slane %v3917, 1
    %v3919 = vadd.f32 %v3917, %v3918
    %v3920 = vsel %vm510, %v3744, 0.0
    %v3921 = vrot.slane %v3920, 4
    %v3922 = vadd.f32 %v3920, %v3921
    %v3923 = vrot.slane %v3922, 2
    %v3924 = vadd.f32 %v3922, %v3923
    %v3925 = vrot.slane %v3924, 1
    %v3926 = vadd.f32 %v3924, %v3925
    %v3927 = vsel %vm510, %v3745, 0.0
    %v3928 = vrot.slane %v3927, 4
    %v3929 = vadd.f32 %v3927, %v3928
    %v3930 = vrot.slane %v3929, 2
    %v3931 = vadd.f32 %v3929, %v3930
    %v3932 = vrot.slane %v3931, 1
    %v3933 = vadd.f32 %v3931, %v3932
    %v3934 = vsel %vm510, %v3746, 0.0
    %v3935 = vrot.slane %v3934, 4
    %v3936 = vadd.f32 %v3934, %v3935
    %v3937 = vrot.slane %v3936, 2
    %v3938 = vadd.f32 %v3936, %v3937
    %v3939 = vrot.slane %v3938, 1
    %v3940 = vadd.f32 %v3938, %v3939
    %v3941 = vsel %vm510, %v3747, 0.0
    %v3942 = vrot.slane %v3941, 4
    %v3943 = vadd.f32 %v3941, %v3942
    %v3944 = vrot.slane %v3943, 2
    %v3945 = vadd.f32 %v3943, %v3944
    %v3946 = vrot.slane %v3945, 1
    %v3947 = vadd.f32 %v3945, %v3946
    %v3948 = vsel %vm510, %v3748, 0.0
    %v3949 = vrot.slane %v3948, 4
    %v3950 = vadd.f32 %v3948, %v3949
    %v3951 = vrot.slane %v3950, 2
    %v3952 = vadd.f32 %v3950, %v3951
    %v3953 = vrot.slane %v3952, 1
    %v3954 = vadd.f32 %v3952, %v3953
    %v3955 = vsel %vm510, %v3749, 0.0
    %v3956 = vrot.slane %v3955, 4
    %v3957 = vadd.f32 %v3955, %v3956
    %v3958 = vrot.slane %v3957, 2
    %v3959 = vadd.f32 %v3957, %v3958
    %v3960 = vrot.slane %v3959, 1
    %v3961 = vadd.f32 %v3959, %v3960
    %v3962 = vsel %vm510, %v3750, 0.0
    %v3963 = vrot.slane %v3962, 4
    %v3964 = vadd.f32 %v3962, %v3963
    %v3965 = vrot.slane %v3964, 2
    %v3966 = vadd.f32 %v3964, %v3965
    %v3967 = vrot.slane %v3966, 1
    %v3968 = vadd.f32 %v3966, %v3967
    %v3969 = vsel %vm510, %v3751, 0.0
    %v3970 = vrot.slane %v3969, 4
    %v3971 = vadd.f32 %v3969, %v3970
    %v3972 = vrot.slane %v3971, 2
    %v3973 = vadd.f32 %v3971, %v3972
    %v3974 = vrot.slane %v3973, 1
    %v3975 = vadd.f32 %v3973, %v3974
    %v3976 = vsel %vm510, %v3752, 0.0
    %v3977 = vrot.slane %v3976, 4
    %v3978 = vadd.f32 %v3976, %v3977
    %v3979 = vrot.slane %v3978, 2
    %v3980 = vadd.f32 %v3978, %v3979
    %v3981 = vrot.slane %v3980, 1
    %v3982 = vadd.f32 %v3980, %v3981
    %v3983 = vsel %vm510, %v3753, 0.0
    %v3984 = vrot.slane %v3983, 4
    %v3985 = vadd.f32 %v3983, %v3984
    %v3986 = vrot.slane %v3985, 2
    %v3987 = vadd.f32 %v3985, %v3986
    %v3988 = vrot.slane %v3987, 1
    %v3989 = vadd.f32 %v3987, %v3988
    %v3990 = vsel %vm510, %v3754, 0.0
    %v3991 = vrot.slane %v3990, 4
    %v3992 = vadd.f32 %v3990, %v3991
    %v3993 = vrot.slane %v3992, 2
    %v3994 = vadd.f32 %v3992, %v3993
    %v3995 = vrot.slane %v3994, 1
    %v3996 = vadd.f32 %v3994, %v3995
    %v3997 = vsel %vm510, %v3755, 0.0
    %v3998 = vrot.slane %v3997, 4
    %v3999 = vadd.f32 %v3997, %v3998
    %v4000 = vrot.slane %v3999, 2
    %v4001 = vadd.f32 %v3999, %v4000
    %v4002 = vrot.slane %v4001, 1
    %v4003 = vadd.f32 %v4001, %v4002
    %v4004 = vsel %vm510, %v3756, 0.0
    %v4005 = vrot.slane %v4004, 4
    %v4006 = vadd.f32 %v4004, %v4005
    %v4007 = vrot.slane %v4006, 2
    %v4008 = vadd.f32 %v4006, %v4007
    %v4009 = vrot.slane %v4008, 1
    %v4010 = vadd.f32 %v4008, %v4009
    %v4011 = vsel %vm510, %v3757, 0.0
    %v4012 = vrot.slane %v4011, 4
    %v4013 = vadd.f32 %v4011, %v4012
    %v4014 = vrot.slane %v4013, 2
    %v4015 = vadd.f32 %v4013, %v4014
    %v4016 = vrot.slane %v4015, 1
    %v4017 = vadd.f32 %v4015, %v4016
    %v4018 = vsel %vm510, %v3758, 0.0
    %v4019 = vrot.slane %v4018, 4
    %v4020 = vadd.f32 %v4018, %v4019
    %v4021 = vrot.slane %v4020, 2
    %v4022 = vadd.f32 %v4020, %v4021
    %v4023 = vrot.slane %v4022, 1
    %v4024 = vadd.f32 %v4022, %v4023
    %v4025 = vsel %vm510, %v3759, 0.0
    %v4026 = vrot.slane %v4025, 4
    %v4027 = vadd.f32 %v4025, %v4026
    %v4028 = vrot.slane %v4027, 2
    %v4029 = vadd.f32 %v4027, %v4028
    %v4030 = vrot.slane %v4029, 1
    %v4031 = vadd.f32 %v4029, %v4030
    %v4032 = vsel %vm510, %v3760, 0.0
    %v4033 = vrot.slane %v4032, 4
    %v4034 = vadd.f32 %v4032, %v4033
    %v4035 = vrot.slane %v4034, 2
    %v4036 = vadd.f32 %v4034, %v4035
    %v4037 = vrot.slane %v4036, 1
    %v4038 = vadd.f32 %v4036, %v4037
    %v4039 = vsel %vm510, %v3761, 0.0
    %v4040 = vrot.slane %v4039, 4
    %v4041 = vadd.f32 %v4039, %v4040
    %v4042 = vrot.slane %v4041, 2
    %v4043 = vadd.f32 %v4041, %v4042
    %v4044 = vrot.slane %v4043, 1
    %v4045 = vadd.f32 %v4043, %v4044
    %v4046 = vsel %vm510, %v3762, 0.0
    %v4047 = vrot.slane %v4046, 4
    %v4048 = vadd.f32 %v4046, %v4047
    %v4049 = vrot.slane %v4048, 2
    %v4050 = vadd.f32 %v4048, %v4049
    %v4051 = vrot.slane %v4050, 1
    %v4052 = vadd.f32 %v4050, %v4051
    %v4053 = vsel %vm510, %v3763, 0.0
    %v4054 = vrot.slane %v4053, 4
    %v4055 = vadd.f32 %v4053, %v4054
    %v4056 = vrot.slane %v4055, 2
    %v4057 = vadd.f32 %v4055, %v4056
    %v4058 = vrot.slane %v4057, 1
    %v4059 = vadd.f32 %v4057, %v4058
    %v4060 = vsel %vm510, %v3764, 0.0
    %v4061 = vrot.slane %v4060, 4
    %v4062 = vadd.f32 %v4060, %v4061
    %v4063 = vrot.slane %v4062, 2
    %v4064 = vadd.f32 %v4062, %v4063
    %v4065 = vrot.slane %v4064, 1
    %v4066 = vadd.f32 %v4064, %v4065
    %v4067 = vsel %vm510, %v3765, 0.0
    %v4068 = vrot.slane %v4067, 4
    %v4069 = vadd.f32 %v4067, %v4068
    %v4070 = vrot.slane %v4069, 2
    %v4071 = vadd.f32 %v4069, %v4070
    %v4072 = vrot.slane %v4071, 1
    %v4073 = vadd.f32 %v4071, %v4072
    %v4074 = vsel %vm510, %v3766, 0.0
    %v4075 = vrot.slane %v4074, 4
    %v4076 = vadd.f32 %v4074, %v4075
    %v4077 = vrot.slane %v4076, 2
    %v4078 = vadd.f32 %v4076, %v4077
    %v4079 = vrot.slane %v4078, 1
    %v4080 = vadd.f32 %v4078, %v4079
    %v4081 = vsel %vm510, %v3767, 0.0
    %v4082 = vrot.slane %v4081, 4
    %v4083 = vadd.f32 %v4081, %v4082
    %v4084 = vrot.slane %v4083, 2
    %v4085 = vadd.f32 %v4083, %v4084
    %v4086 = vrot.slane %v4085, 1
    %v4087 = vadd.f32 %v4085, %v4086
    %v4088 = vsel %vm510, %v3768, 0.0
    %v4089 = vrot.slane %v4088, 4
    %v4090 = vadd.f32 %v4088, %v4089
    %v4091 = vrot.slane %v4090, 2
    %v4092 = vadd.f32 %v4090, %v4091
    %v4093 = vrot.slane %v4092, 1
    %v4094 = vadd.f32 %v4092, %v4093
    %v4095 = vsel %vm510, %v3769, 0.0
    %v4096 = vrot.slane %v4095, 4
    %v4097 = vadd.f32 %v4095, %v4096
    %v4098 = vrot.slane %v4097, 2
    %v4099 = vadd.f32 %v4097, %v4098
    %v4100 = vrot.slane %v4099, 1
    %v4101 = vadd.f32 %v4099, %v4100
    %v4102 = vsel %vm510, %v3770, 0.0
    %v4103 = vrot.slane %v4102, 4
    %v4104 = vadd.f32 %v4102, %v4103
    %v4105 = vrot.slane %v4104, 2
    %v4106 = vadd.f32 %v4104, %v4105
    %v4107 = vrot.slane %v4106, 1
    %v4108 = vadd.f32 %v4106, %v4107
    %v4109 = vsel %vm510, %v3771, 0.0
    %v4110 = vrot.slane %v4109, 4
    %v4111 = vadd.f32 %v4109, %v4110
    %v4112 = vrot.slane %v4111, 2
    %v4113 = vadd.f32 %v4111, %v4112
    %v4114 = vrot.slane %v4113, 1
    %v4115 = vadd.f32 %v4113, %v4114
    %v4116 = vsel %vm510, %v3772, 0.0
    %v4117 = vrot.slane %v4116, 4
    %v4118 = vadd.f32 %v4116, %v4117
    %v4119 = vrot.slane %v4118, 2
    %v4120 = vadd.f32 %v4118, %v4119
    %v4121 = vrot.slane %v4120, 1
    %v4122 = vadd.f32 %v4120, %v4121
    %v4123 = vsel %vm510, %v3773, 0.0
    %v4124 = vrot.slane %v4123, 4
    %v4125 = vadd.f32 %v4123, %v4124
    %v4126 = vrot.slane %v4125, 2
    %v4127 = vadd.f32 %v4125, %v4126
    %v4128 = vrot.slane %v4127, 1
    %v4129 = vadd.f32 %v4127, %v4128
    %v4130 = vsel %vm510, %v3774, 0.0
    %v4131 = vrot.slane %v4130, 4
    %v4132 = vadd.f32 %v4130, %v4131
    %v4133 = vrot.slane %v4132, 2
    %v4134 = vadd.f32 %v4132, %v4133
    %v4135 = vrot.slane %v4134, 1
    %v4136 = vadd.f32 %v4134, %v4135
    %v4137 = vsel %vm510, %v3775, 0.0
    %v4138 = vrot.slane %v4137, 4
    %v4139 = vadd.f32 %v4137, %v4138
    %v4140 = vrot.slane %v4139, 2
    %v4141 = vadd.f32 %v4139, %v4140
    %v4142 = vrot.slane %v4141, 1
    %v4143 = vadd.f32 %v4141, %v4142
    %v4144 = vsel %vm510, %v3776, 0.0
    %v4145 = vrot.slane %v4144, 4
    %v4146 = vadd.f32 %v4144, %v4145
    %v4147 = vrot.slane %v4146, 2
    %v4148 = vadd.f32 %v4146, %v4147
    %v4149 = vrot.slane %v4148, 1
    %v4150 = vadd.f32 %v4148, %v4149
    %v4151 = vsel %vm510, %v3777, 0.0
    %v4152 = vrot.slane %v4151, 4
    %v4153 = vadd.f32 %v4151, %v4152
    %v4154 = vrot.slane %v4153, 2
    %v4155 = vadd.f32 %v4153, %v4154
    %v4156 = vrot.slane %v4155, 1
    %v4157 = vadd.f32 %v4155, %v4156
    %v4158 = vsel %vm510, %v3778, 0.0
    %v4159 = vrot.slane %v4158, 4
    %v4160 = vadd.f32 %v4158, %v4159
    %v4161 = vrot.slane %v4160, 2
    %v4162 = vadd.f32 %v4160, %v4161
    %v4163 = vrot.slane %v4162, 1
    %v4164 = vadd.f32 %v4162, %v4163
    %v4165 = vsel %vm510, %v3779, 0.0
    %v4166 = vrot.slane %v4165, 4
    %v4167 = vadd.f32 %v4165, %v4166
    %v4168 = vrot.slane %v4167, 2
    %v4169 = vadd.f32 %v4167, %v4168
    %v4170 = vrot.slane %v4169, 1
    %v4171 = vadd.f32 %v4169, %v4170
    %v4172 = vsel %vm510, %v3780, 0.0
    %v4173 = vrot.slane %v4172, 4
    %v4174 = vadd.f32 %v4172, %v4173
    %v4175 = vrot.slane %v4174, 2
    %v4176 = vadd.f32 %v4174, %v4175
    %v4177 = vrot.slane %v4176, 1
    %v4178 = vadd.f32 %v4176, %v4177
    %v4179 = vsel %vm510, %v3781, 0.0
    %v4180 = vrot.slane %v4179, 4
    %v4181 = vadd.f32 %v4179, %v4180
    %v4182 = vrot.slane %v4181, 2
    %v4183 = vadd.f32 %v4181, %v4182
    %v4184 = vrot.slane %v4183, 1
    %v4185 = vadd.f32 %v4183, %v4184
    %v4186 = vsel %vm510, %v3782, 0.0
    %v4187 = vrot.slane %v4186, 4
    %v4188 = vadd.f32 %v4186, %v4187
    %v4189 = vrot.slane %v4188, 2
    %v4190 = vadd.f32 %v4188, %v4189
    %v4191 = vrot.slane %v4190, 1
    %v4192 = vadd.f32 %v4190, %v4191
    %v4193 = vsel %vm510, %v3783, 0.0
    %v4194 = vrot.slane %v4193, 4
    %v4195 = vadd.f32 %v4193, %v4194
    %v4196 = vrot.slane %v4195, 2
    %v4197 = vadd.f32 %v4195, %v4196
    %v4198 = vrot.slane %v4197, 1
    %v4199 = vadd.f32 %v4197, %v4198
    %v4200 = vsel %vm510, %v3784, 0.0
    %v4201 = vrot.slane %v4200, 4
    %v4202 = vadd.f32 %v4200, %v4201
    %v4203 = vrot.slane %v4202, 2
    %v4204 = vadd.f32 %v4202, %v4203
    %v4205 = vrot.slane %v4204, 1
    %v4206 = vadd.f32 %v4204, %v4205
    %v4207 = vsel %vm510, %v3785, 0.0
    %v4208 = vrot.slane %v4207, 4
    %v4209 = vadd.f32 %v4207, %v4208
    %v4210 = vrot.slane %v4209, 2
    %v4211 = vadd.f32 %v4209, %v4210
    %v4212 = vrot.slane %v4211, 1
    %v4213 = vadd.f32 %v4211, %v4212
    %v4214 = vsel %vm510, %v3786, 0.0
    %v4215 = vrot.slane %v4214, 4
    %v4216 = vadd.f32 %v4214, %v4215
    %v4217 = vrot.slane %v4216, 2
    %v4218 = vadd.f32 %v4216, %v4217
    %v4219 = vrot.slane %v4218, 1
    %v4220 = vadd.f32 %v4218, %v4219
    %v4221 = vsel %vm510, %v3787, 0.0
    %v4222 = vrot.slane %v4221, 4
    %v4223 = vadd.f32 %v4221, %v4222
    %v4224 = vrot.slane %v4223, 2
    %v4225 = vadd.f32 %v4223, %v4224
    %v4226 = vrot.slane %v4225, 1
    %v4227 = vadd.f32 %v4225, %v4226
    %v4228 = vsel %vm510, %v3788, 0.0
    %v4229 = vrot.slane %v4228, 4
    %v4230 = vadd.f32 %v4228, %v4229
    %v4231 = vrot.slane %v4230, 2
    %v4232 = vadd.f32 %v4230, %v4231
    %v4233 = vrot.slane %v4232, 1
    %v4234 = vadd.f32 %v4232, %v4233
    %v4235 = vsel %vm510, %v3789, 0.0
    %v4236 = vrot.slane %v4235, 4
    %v4237 = vadd.f32 %v4235, %v4236
    %v4238 = vrot.slane %v4237, 2
    %v4239 = vadd.f32 %v4237, %v4238
    %v4240 = vrot.slane %v4239, 1
    %v4241 = vadd.f32 %v4239, %v4240
    %v4242 = vsel %vm510, %v3790, 0.0
    %v4243 = vrot.slane %v4242, 4
    %v4244 = vadd.f32 %v4242, %v4243
    %v4245 = vrot.slane %v4244, 2
    %v4246 = vadd.f32 %v4244, %v4245
    %v4247 = vrot.slane %v4246, 1
    %v4248 = vadd.f32 %v4246, %v4247
    %v4249 = vsel %vm510, %v3791, 0.0
    %v4250 = vrot.slane %v4249, 4
    %v4251 = vadd.f32 %v4249, %v4250
    %v4252 = vrot.slane %v4251, 2
    %v4253 = vadd.f32 %v4251, %v4252
    %v4254 = vrot.slane %v4253, 1
    %v4255 = vadd.f32 %v4253, %v4254
    %v4256 = vsel %vm510, %v3792, 0.0
    %v4257 = vrot.slane %v4256, 4
    %v4258 = vadd.f32 %v4256, %v4257
    %v4259 = vrot.slane %v4258, 2
    %v4260 = vadd.f32 %v4258, %v4259
    %v4261 = vrot.slane %v4260, 1
    %v4262 = vadd.f32 %v4260, %v4261
    %v4263 = vsel %vm510, %v3793, 0.0
    %v4264 = vrot.slane %v4263, 4
    %v4265 = vadd.f32 %v4263, %v4264
    %v4266 = vrot.slane %v4265, 2
    %v4267 = vadd.f32 %v4265, %v4266
    %v4268 = vrot.slane %v4267, 1
    %v4269 = vadd.f32 %v4267, %v4268
    %v4270 = vsel %vm510, %v3794, 0.0
    %v4271 = vrot.slane %v4270, 4
    %v4272 = vadd.f32 %v4270, %v4271
    %v4273 = vrot.slane %v4272, 2
    %v4274 = vadd.f32 %v4272, %v4273
    %v4275 = vrot.slane %v4274, 1
    %v4276 = vadd.f32 %v4274, %v4275
    %v4277 = vsel %vm510, %v3795, 0.0
    %v4278 = vrot.slane %v4277, 4
    %v4279 = vadd.f32 %v4277, %v4278
    %v4280 = vrot.slane %v4279, 2
    %v4281 = vadd.f32 %v4279, %v4280
    %v4282 = vrot.slane %v4281, 1
    %v4283 = vadd.f32 %v4281, %v4282
    %v4284 = vsel %vm510, %v3796, 0.0
    %v4285 = vrot.slane %v4284, 4
    %v4286 = vadd.f32 %v4284, %v4285
    %v4287 = vrot.slane %v4286, 2
    %v4288 = vadd.f32 %v4286, %v4287
    %v4289 = vrot.slane %v4288, 1
    %v4290 = vadd.f32 %v4288, %v4289
    %v4291 = vsel %vm510, %v3797, 0.0
    %v4292 = vrot.slane %v4291, 4
    %v4293 = vadd.f32 %v4291, %v4292
    %v4294 = vrot.slane %v4293, 2
    %v4295 = vadd.f32 %v4293, %v4294
    %v4296 = vrot.slane %v4295, 1
    %v4297 = vadd.f32 %v4295, %v4296
    %v4298 = vsel %vm510, %v3798, 0.0
    %v4299 = vrot.slane %v4298, 4
    %v4300 = vadd.f32 %v4298, %v4299
    %v4301 = vrot.slane %v4300, 2
    %v4302 = vadd.f32 %v4300, %v4301
    %v4303 = vrot.slane %v4302, 1
    %v4304 = vadd.f32 %v4302, %v4303
    %v4305 = vsel %vm510, %v3799, 0.0
    %v4306 = vrot.slane %v4305, 4
    %v4307 = vadd.f32 %v4305, %v4306
    %v4308 = vrot.slane %v4307, 2
    %v4309 = vadd.f32 %v4307, %v4308
    %v4310 = vrot.slane %v4309, 1
    %v4311 = vadd.f32 %v4309, %v4310
    %v4312 = vsel %vm510, %v3800, 0.0
    %v4313 = vrot.slane %v4312, 4
    %v4314 = vadd.f32 %v4312, %v4313
    %v4315 = vrot.slane %v4314, 2
    %v4316 = vadd.f32 %v4314, %v4315
    %v4317 = vrot.slane %v4316, 1
    %v4318 = vadd.f32 %v4316, %v4317
    %v4319 = vsel %vm510, %v3801, 0.0
    %v4320 = vrot.slane %v4319, 4
    %v4321 = vadd.f32 %v4319, %v4320
    %v4322 = vrot.slane %v4321, 2
    %v4323 = vadd.f32 %v4321, %v4322
    %v4324 = vrot.slane %v4323, 1
    %v4325 = vadd.f32 %v4323, %v4324
    %v4326 = vsel %vm510, %v3802, 0.0
    %v4327 = vrot.slane %v4326, 4
    %v4328 = vadd.f32 %v4326, %v4327
    %v4329 = vrot.slane %v4328, 2
    %v4330 = vadd.f32 %v4328, %v4329
    %v4331 = vrot.slane %v4330, 1
    %v4332 = vadd.f32 %v4330, %v4331
    %v4333 = vsel %vm510, %v3803, 0.0
    %v4334 = vrot.slane %v4333, 4
    %v4335 = vadd.f32 %v4333, %v4334
    %v4336 = vrot.slane %v4335, 2
    %v4337 = vadd.f32 %v4335, %v4336
    %v4338 = vrot.slane %v4337, 1
    %v4339 = vadd.f32 %v4337, %v4338
    %v4340 = vsel %vm510, %v3804, 0.0
    %v4341 = vrot.slane %v4340, 4
    %v4342 = vadd.f32 %v4340, %v4341
    %v4343 = vrot.slane %v4342, 2
    %v4344 = vadd.f32 %v4342, %v4343
    %v4345 = vrot.slane %v4344, 1
    %v4346 = vadd.f32 %v4344, %v4345
    %v4347 = vsel %vm510, %v3805, 0.0
    %v4348 = vrot.slane %v4347, 4
    %v4349 = vadd.f32 %v4347, %v4348
    %v4350 = vrot.slane %v4349, 2
    %v4351 = vadd.f32 %v4349, %v4350
    %v4352 = vrot.slane %v4351, 1
    %v4353 = vadd.f32 %v4351, %v4352
    %v4354 = vsel %vm510, %v3806, 0.0
    %v4355 = vrot.slane %v4354, 4
    %v4356 = vadd.f32 %v4354, %v4355
    %v4357 = vrot.slane %v4356, 2
    %v4358 = vadd.f32 %v4356, %v4357
    %v4359 = vrot.slane %v4358, 1
    %v4360 = vadd.f32 %v4358, %v4359
    %v4361 = vsel %vm510, %v3807, 0.0
    %v4362 = vrot.slane %v4361, 4
    %v4363 = vadd.f32 %v4361, %v4362
    %v4364 = vrot.slane %v4363, 2
    %v4365 = vadd.f32 %v4363, %v4364
    %v4366 = vrot.slane %v4365, 1
    %v4367 = vadd.f32 %v4365, %v4366
    %v4368 = vsel %vm510, %v3808, 0.0
    %v4369 = vrot.slane %v4368, 4
    %v4370 = vadd.f32 %v4368, %v4369
    %v4371 = vrot.slane %v4370, 2
    %v4372 = vadd.f32 %v4370, %v4371
    %v4373 = vrot.slane %v4372, 1
    %v4374 = vadd.f32 %v4372, %v4373
    %v4375 = vsel %vm510, %v3809, 0.0
    %v4376 = vrot.slane %v4375, 4
    %v4377 = vadd.f32 %v4375, %v4376
    %v4378 = vrot.slane %v4377, 2
    %v4379 = vadd.f32 %v4377, %v4378
    %v4380 = vrot.slane %v4379, 1
    %v4381 = vadd.f32 %v4379, %v4380
    %v4382 = vsel %vm510, %v3810, 0.0
    %v4383 = vrot.slane %v4382, 4
    %v4384 = vadd.f32 %v4382, %v4383
    %v4385 = vrot.slane %v4384, 2
    %v4386 = vadd.f32 %v4384, %v4385
    %v4387 = vrot.slane %v4386, 1
    %v4388 = vadd.f32 %v4386, %v4387
    %v4389 = vsel %vm510, %v3811, 0.0
    %v4390 = vrot.slane %v4389, 4
    %v4391 = vadd.f32 %v4389, %v4390
    %v4392 = vrot.slane %v4391, 2
    %v4393 = vadd.f32 %v4391, %v4392
    %v4394 = vrot.slane %v4393, 1
    %v4395 = vadd.f32 %v4393, %v4394
    %v4396 = vsel %vm510, %v3812, 0.0
    %v4397 = vrot.slane %v4396, 4
    %v4398 = vadd.f32 %v4396, %v4397
    %v4399 = vrot.slane %v4398, 2
    %v4400 = vadd.f32 %v4398, %v4399
    %v4401 = vrot.slane %v4400, 1
    %v4402 = vadd.f32 %v4400, %v4401
    %v4403 = vsel %vm510, %v3813, 0.0
    %v4404 = vrot.slane %v4403, 4
    %v4405 = vadd.f32 %v4403, %v4404
    %v4406 = vrot.slane %v4405, 2
    %v4407 = vadd.f32 %v4405, %v4406
    %v4408 = vrot.slane %v4407, 1
    %v4409 = vadd.f32 %v4407, %v4408
    %v4410 = vsel %vm510, %v3814, 0.0
    %v4411 = vrot.slane %v4410, 4
    %v4412 = vadd.f32 %v4410, %v4411
    %v4413 = vrot.slane %v4412, 2
    %v4414 = vadd.f32 %v4412, %v4413
    %v4415 = vrot.slane %v4414, 1
    %v4416 = vadd.f32 %v4414, %v4415
    %v4417 = vsel %vm510, %v3815, 0.0
    %v4418 = vrot.slane %v4417, 4
    %v4419 = vadd.f32 %v4417, %v4418
    %v4420 = vrot.slane %v4419, 2
    %v4421 = vadd.f32 %v4419, %v4420
    %v4422 = vrot.slane %v4421, 1
    %v4423 = vadd.f32 %v4421, %v4422
    %v4424 = vsel %vm510, %v3816, 0.0
    %v4425 = vrot.slane %v4424, 4
    %v4426 = vadd.f32 %v4424, %v4425
    %v4427 = vrot.slane %v4426, 2
    %v4428 = vadd.f32 %v4426, %v4427
    %v4429 = vrot.slane %v4428, 1
    %v4430 = vadd.f32 %v4428, %v4429
    %v4431 = vsel %vm510, %v3817, 0.0
    %v4432 = vrot.slane %v4431, 4
    %v4433 = vadd.f32 %v4431, %v4432
    %v4434 = vrot.slane %v4433, 2
    %v4435 = vadd.f32 %v4433, %v4434
    %v4436 = vrot.slane %v4435, 1
    %v4437 = vadd.f32 %v4435, %v4436
    %v4438 = vsel %vm510, %v3818, 0.0
    %v4439 = vrot.slane %v4438, 4
    %v4440 = vadd.f32 %v4438, %v4439
    %v4441 = vrot.slane %v4440, 2
    %v4442 = vadd.f32 %v4440, %v4441
    %v4443 = vrot.slane %v4442, 1
    %v4444 = vadd.f32 %v4442, %v4443
    %v4445 = vsel %vm510, %v3819, 0.0
    %v4446 = vrot.slane %v4445, 4
    %v4447 = vadd.f32 %v4445, %v4446
    %v4448 = vrot.slane %v4447, 2
    %v4449 = vadd.f32 %v4447, %v4448
    %v4450 = vrot.slane %v4449, 1
    %v4451 = vadd.f32 %v4449, %v4450
    %v4452 = vsel %vm510, %v3820, 0.0
    %v4453 = vrot.slane %v4452, 4
    %v4454 = vadd.f32 %v4452, %v4453
    %v4455 = vrot.slane %v4454, 2
    %v4456 = vadd.f32 %v4454, %v4455
    %v4457 = vrot.slane %v4456, 1
    %v4458 = vadd.f32 %v4456, %v4457
    %v4459 = vsel %vm510, %v3821, 0.0
    %v4460 = vrot.slane %v4459, 4
    %v4461 = vadd.f32 %v4459, %v4460
    %v4462 = vrot.slane %v4461, 2
    %v4463 = vadd.f32 %v4461, %v4462
    %v4464 = vrot.slane %v4463, 1
    %v4465 = vadd.f32 %v4463, %v4464
    %v4466 = vsel %vm510, %v3822, 0.0
    %v4467 = vrot.slane %v4466, 4
    %v4468 = vadd.f32 %v4466, %v4467
    %v4469 = vrot.slane %v4468, 2
    %v4470 = vadd.f32 %v4468, %v4469
    %v4471 = vrot.slane %v4470, 1
    %v4472 = vadd.f32 %v4470, %v4471
    %v4473 = vsel %vm510, %v3823, 0.0
    %v4474 = vrot.slane %v4473, 4
    %v4475 = vadd.f32 %v4473, %v4474
    %v4476 = vrot.slane %v4475, 2
    %v4477 = vadd.f32 %v4475, %v4476
    %v4478 = vrot.slane %v4477, 1
    %v4479 = vadd.f32 %v4477, %v4478
    %v4480 = vsel %vm510, %v3824, 0.0
    %v4481 = vrot.slane %v4480, 4
    %v4482 = vadd.f32 %v4480, %v4481
    %v4483 = vrot.slane %v4482, 2
    %v4484 = vadd.f32 %v4482, %v4483
    %v4485 = vrot.slane %v4484, 1
    %v4486 = vadd.f32 %v4484, %v4485
    %v4487 = vsel %vm510, %v3825, 0.0
    %v4488 = vrot.slane %v4487, 4
    %v4489 = vadd.f32 %v4487, %v4488
    %v4490 = vrot.slane %v4489, 2
    %v4491 = vadd.f32 %v4489, %v4490
    %v4492 = vrot.slane %v4491, 1
    %v4493 = vadd.f32 %v4491, %v4492
    %v4494 = vsel %vm510, %v3826, 0.0
    %v4495 = vrot.slane %v4494, 4
    %v4496 = vadd.f32 %v4494, %v4495
    %v4497 = vrot.slane %v4496, 2
    %v4498 = vadd.f32 %v4496, %v4497
    %v4499 = vrot.slane %v4498, 1
    %v4500 = vadd.f32 %v4498, %v4499
    %v4501 = vsel %vm510, %v3827, 0.0
    %v4502 = vrot.slane %v4501, 4
    %v4503 = vadd.f32 %v4501, %v4502
    %v4504 = vrot.slane %v4503, 2
    %v4505 = vadd.f32 %v4503, %v4504
    %v4506 = vrot.slane %v4505, 1
    %v4507 = vadd.f32 %v4505, %v4506
    %v4508 = vsel %vm510, %v3828, 0.0
    %v4509 = vrot.slane %v4508, 4
    %v4510 = vadd.f32 %v4508, %v4509
    %v4511 = vrot.slane %v4510, 2
    %v4512 = vadd.f32 %v4510, %v4511
    %v4513 = vrot.slane %v4512, 1
    %v4514 = vadd.f32 %v4512, %v4513
    %v4515 = vsel %vm510, %v3829, 0.0
    %v4516 = vrot.slane %v4515, 4
    %v4517 = vadd.f32 %v4515, %v4516
    %v4518 = vrot.slane %v4517, 2
    %v4519 = vadd.f32 %v4517, %v4518
    %v4520 = vrot.slane %v4519, 1
    %v4521 = vadd.f32 %v4519, %v4520
    %v4522 = vsel %vm510, %v3830, 0.0
    %v4523 = vrot.slane %v4522, 4
    %v4524 = vadd.f32 %v4522, %v4523
    %v4525 = vrot.slane %v4524, 2
    %v4526 = vadd.f32 %v4524, %v4525
    %v4527 = vrot.slane %v4526, 1
    %v4528 = vadd.f32 %v4526, %v4527
    %v4529 = vsel %vm510, %v3831, 0.0
    %v4530 = vrot.slane %v4529, 4
    %v4531 = vadd.f32 %v4529, %v4530
    %v4532 = vrot.slane %v4531, 2
    %v4533 = vadd.f32 %v4531, %v4532
    %v4534 = vrot.slane %v4533, 1
    %v4535 = vadd.f32 %v4533, %v4534
    %v4536 = vsel %vm510, %v3832, 0.0
    %v4537 = vrot.slane %v4536, 4
    %v4538 = vadd.f32 %v4536, %v4537
    %v4539 = vrot.slane %v4538, 2
    %v4540 = vadd.f32 %v4538, %v4539
    %v4541 = vrot.slane %v4540, 1
    %v4542 = vadd.f32 %v4540, %v4541
    %v4543 = vsel %vm510, %v3833, 0.0
    %v4544 = vrot.slane %v4543, 4
    %v4545 = vadd.f32 %v4543, %v4544
    %v4546 = vrot.slane %v4545, 2
    %v4547 = vadd.f32 %v4545, %v4546
    %v4548 = vrot.slane %v4547, 1
    %v4549 = vadd.f32 %v4547, %v4548
    %v4550 = vsel %vm510, %v3834, 0.0
    %v4551 = vrot.slane %v4550, 4
    %v4552 = vadd.f32 %v4550, %v4551
    %v4553 = vrot.slane %v4552, 2
    %v4554 = vadd.f32 %v4552, %v4553
    %v4555 = vrot.slane %v4554, 1
    %v4556 = vadd.f32 %v4554, %v4555
    %v4557 = vsel %vm510, %v3835, 0.0
    %v4558 = vrot.slane %v4557, 4
    %v4559 = vadd.f32 %v4557, %v4558
    %v4560 = vrot.slane %v4559, 2
    %v4561 = vadd.f32 %v4559, %v4560
    %v4562 = vrot.slane %v4561, 1
    %v4563 = vadd.f32 %v4561, %v4562
    %v4564 = vsel %vm510, %v3836, 0.0
    %v4565 = vrot.slane %v4564, 4
    %v4566 = vadd.f32 %v4564, %v4565
    %v4567 = vrot.slane %v4566, 2
    %v4568 = vadd.f32 %v4566, %v4567
    %v4569 = vrot.slane %v4568, 1
    %v4570 = vadd.f32 %v4568, %v4569
    %v4571 = vsel %vm510, %v3837, 0.0
    %v4572 = vrot.slane %v4571, 4
    %v4573 = vadd.f32 %v4571, %v4572
    %v4574 = vrot.slane %v4573, 2
    %v4575 = vadd.f32 %v4573, %v4574
    %v4576 = vrot.slane %v4575, 1
    %v4577 = vadd.f32 %v4575, %v4576
    %v4578 = vsel %vm510, %v3838, 0.0
    %v4579 = vrot.slane %v4578, 4
    %v4580 = vadd.f32 %v4578, %v4579
    %v4581 = vrot.slane %v4580, 2
    %v4582 = vadd.f32 %v4580, %v4581
    %v4583 = vrot.slane %v4582, 1
    %v4584 = vadd.f32 %v4582, %v4583
    %v4585 = vsel %vm510, %v3839, 0.0
    %v4586 = vrot.slane %v4585, 4
    %v4587 = vadd.f32 %v4585, %v4586
    %v4588 = vrot.slane %v4587, 2
    %v4589 = vadd.f32 %v4587, %v4588
    %v4590 = vrot.slane %v4589, 1
    %v4591 = vadd.f32 %v4589, %v4590
    %v4592 = vsel %vm510, %v3840, 0.0
    %v4593 = vrot.slane %v4592, 4
    %v4594 = vadd.f32 %v4592, %v4593
    %v4595 = vrot.slane %v4594, 2
    %v4596 = vadd.f32 %v4594, %v4595
    %v4597 = vrot.slane %v4596, 1
    %v4598 = vadd.f32 %v4596, %v4597
    %v4599 = vsel %vm510, %v3841, 0.0
    %v4600 = vrot.slane %v4599, 4
    %v4601 = vadd.f32 %v4599, %v4600
    %v4602 = vrot.slane %v4601, 2
    %v4603 = vadd.f32 %v4601, %v4602
    %v4604 = vrot.slane %v4603, 1
    %v4605 = vadd.f32 %v4603, %v4604
    %v4606 = vsel %vm510, %v3842, 0.0
    %v4607 = vrot.slane %v4606, 4
    %v4608 = vadd.f32 %v4606, %v4607
    %v4609 = vrot.slane %v4608, 2
    %v4610 = vadd.f32 %v4608, %v4609
    %v4611 = vrot.slane %v4610, 1
    %v4612 = vadd.f32 %v4610, %v4611
    %v4613 = vsel %vm510, %v3843, 0.0
    %v4614 = vrot.slane %v4613, 4
    %v4615 = vadd.f32 %v4613, %v4614
    %v4616 = vrot.slane %v4615, 2
    %v4617 = vadd.f32 %v4615, %v4616
    %v4618 = vrot.slane %v4617, 1
    %v4619 = vadd.f32 %v4617, %v4618
    %v4620 = vsel %vm510, %v3844, 0.0
    %v4621 = vrot.slane %v4620, 4
    %v4622 = vadd.f32 %v4620, %v4621
    %v4623 = vrot.slane %v4622, 2
    %v4624 = vadd.f32 %v4622, %v4623
    %v4625 = vrot.slane %v4624, 1
    %v4626 = vadd.f32 %v4624, %v4625
    %v4627 = vsel %vm510, %v3845, 0.0
    %v4628 = vrot.slane %v4627, 4
    %v4629 = vadd.f32 %v4627, %v4628
    %v4630 = vrot.slane %v4629, 2
    %v4631 = vadd.f32 %v4629, %v4630
    %v4632 = vrot.slane %v4631, 1
    %v4633 = vadd.f32 %v4631, %v4632
    %v4634 = vsel %vm510, %v3846, 0.0
    %v4635 = vrot.slane %v4634, 4
    %v4636 = vadd.f32 %v4634, %v4635
    %v4637 = vrot.slane %v4636, 2
    %v4638 = vadd.f32 %v4636, %v4637
    %v4639 = vrot.slane %v4638, 1
    %v4640 = vadd.f32 %v4638, %v4639
    %v4641 = vsel %vm510, %v3847, 0.0
    %v4642 = vrot.slane %v4641, 4
    %v4643 = vadd.f32 %v4641, %v4642
    %v4644 = vrot.slane %v4643, 2
    %v4645 = vadd.f32 %v4643, %v4644
    %v4646 = vrot.slane %v4645, 1
    %v4647 = vadd.f32 %v4645, %v4646
    %v4648 = vsel %vm510, %v3848, 0.0
    %v4649 = vrot.slane %v4648, 4
    %v4650 = vadd.f32 %v4648, %v4649
    %v4651 = vrot.slane %v4650, 2
    %v4652 = vadd.f32 %v4650, %v4651
    %v4653 = vrot.slane %v4652, 1
    %v4654 = vadd.f32 %v4652, %v4653
    %v4655 = vsel %vm510, %v3849, 0.0
    %v4656 = vrot.slane %v4655, 4
    %v4657 = vadd.f32 %v4655, %v4656
    %v4658 = vrot.slane %v4657, 2
    %v4659 = vadd.f32 %v4657, %v4658
    %v4660 = vrot.slane %v4659, 1
    %v4661 = vadd.f32 %v4659, %v4660
    %v4662 = vsel %vm510, %v3850, 0.0
    %v4663 = vrot.slane %v4662, 4
    %v4664 = vadd.f32 %v4662, %v4663
    %v4665 = vrot.slane %v4664, 2
    %v4666 = vadd.f32 %v4664, %v4665
    %v4667 = vrot.slane %v4666, 1
    %v4668 = vadd.f32 %v4666, %v4667
    %v4669 = vsel %vm510, %v3851, 0.0
    %v4670 = vrot.slane %v4669, 4
    %v4671 = vadd.f32 %v4669, %v4670
    %v4672 = vrot.slane %v4671, 2
    %v4673 = vadd.f32 %v4671, %v4672
    %v4674 = vrot.slane %v4673, 1
    %v4675 = vadd.f32 %v4673, %v4674
    %v4676 = vsel %vm510, %v3852, 0.0
    %v4677 = vrot.slane %v4676, 4
    %v4678 = vadd.f32 %v4676, %v4677
    %v4679 = vrot.slane %v4678, 2
    %v4680 = vadd.f32 %v4678, %v4679
    %v4681 = vrot.slane %v4680, 1
    %v4682 = vadd.f32 %v4680, %v4681
    %v4683 = vsel %vm510, %v3853, 0.0
    %v4684 = vrot.slane %v4683, 4
    %v4685 = vadd.f32 %v4683, %v4684
    %v4686 = vrot.slane %v4685, 2
    %v4687 = vadd.f32 %v4685, %v4686
    %v4688 = vrot.slane %v4687, 1
    %v4689 = vadd.f32 %v4687, %v4688
    %v4690 = vsel %vm510, %v3854, 0.0
    %v4691 = vrot.slane %v4690, 4
    %v4692 = vadd.f32 %v4690, %v4691
    %v4693 = vrot.slane %v4692, 2
    %v4694 = vadd.f32 %v4692, %v4693
    %v4695 = vrot.slane %v4694, 1
    %v4696 = vadd.f32 %v4694, %v4695
    %v4697 = vsel %vm510, %v3855, 0.0
    %v4698 = vrot.slane %v4697, 4
    %v4699 = vadd.f32 %v4697, %v4698
    %v4700 = vrot.slane %v4699, 2
    %v4701 = vadd.f32 %v4699, %v4700
    %v4702 = vrot.slane %v4701, 1
    %v4703 = vadd.f32 %v4701, %v4702
    %v4704 = vsel %vm510, %v3856, 0.0
    %v4705 = vrot.slane %v4704, 4
    %v4706 = vadd.f32 %v4704, %v4705
    %v4707 = vrot.slane %v4706, 2
    %v4708 = vadd.f32 %v4706, %v4707
    %v4709 = vrot.slane %v4708, 1
    %v4710 = vadd.f32 %v4708, %v4709
    %v4711 = vsel %vm510, %v3857, 0.0
    %v4712 = vrot.slane %v4711, 4
    %v4713 = vadd.f32 %v4711, %v4712
    %v4714 = vrot.slane %v4713, 2
    %v4715 = vadd.f32 %v4713, %v4714
    %v4716 = vrot.slane %v4715, 1
    %v4717 = vadd.f32 %v4715, %v4716
    %v4718 = vsel %vm510, %v3858, 0.0
    %v4719 = vrot.slane %v4718, 4
    %v4720 = vadd.f32 %v4718, %v4719
    %v4721 = vrot.slane %v4720, 2
    %v4722 = vadd.f32 %v4720, %v4721
    %v4723 = vrot.slane %v4722, 1
    %v4724 = vadd.f32 %v4722, %v4723
    %v4725 = vsel %vm510, %v3859, 0.0
    %v4726 = vrot.slane %v4725, 4
    %v4727 = vadd.f32 %v4725, %v4726
    %v4728 = vrot.slane %v4727, 2
    %v4729 = vadd.f32 %v4727, %v4728
    %v4730 = vrot.slane %v4729, 1
    %v4731 = vadd.f32 %v4729, %v4730
    %v4732 = vsel %vm510, %v3860, 0.0
    %v4733 = vrot.slane %v4732, 4
    %v4734 = vadd.f32 %v4732, %v4733
    %v4735 = vrot.slane %v4734, 2
    %v4736 = vadd.f32 %v4734, %v4735
    %v4737 = vrot.slane %v4736, 1
    %v4738 = vadd.f32 %v4736, %v4737
    %v4739 = vsel %vm510, %v3861, 0.0
    %v4740 = vrot.slane %v4739, 4
    %v4741 = vadd.f32 %v4739, %v4740
    %v4742 = vrot.slane %v4741, 2
    %v4743 = vadd.f32 %v4741, %v4742
    %v4744 = vrot.slane %v4743, 1
    %v4745 = vadd.f32 %v4743, %v4744
    %v4746 = vsel %vm510, %v3862, 0.0
    %v4747 = vrot.slane %v4746, 4
    %v4748 = vadd.f32 %v4746, %v4747
    %v4749 = vrot.slane %v4748, 2
    %v4750 = vadd.f32 %v4748, %v4749
    %v4751 = vrot.slane %v4750, 1
    %v4752 = vadd.f32 %v4750, %v4751
    %v4753 = vsel %vm510, %v3863, 0.0
    %v4754 = vrot.slane %v4753, 4
    %v4755 = vadd.f32 %v4753, %v4754
    %v4756 = vrot.slane %v4755, 2
    %v4757 = vadd.f32 %v4755, %v4756
    %v4758 = vrot.slane %v4757, 1
    %v4759 = vadd.f32 %v4757, %v4758
    %v4760 = vpack.c.bf16 %v3870, %v3870
    %v4761 = vpack.c.bf16 %v3877, %v3877
    %v4762 = vpack.c.bf16 %v3884, %v3884
    %v4763 = vpack.c.bf16 %v3891, %v3891
    %v4764 = vpack.c.bf16 %v3898, %v3898
    %v4765 = vpack.c.bf16 %v3905, %v3905
    %v4766 = vpack.c.bf16 %v3912, %v3912
    %v4767 = vpack.c.bf16 %v3919, %v3919
    %v4768 = vpack.c.bf16 %v3926, %v3926
    %v4769 = vpack.c.bf16 %v3933, %v3933
    %v4770 = vpack.c.bf16 %v3940, %v3940
    %v4771 = vpack.c.bf16 %v3947, %v3947
    %v4772 = vpack.c.bf16 %v3954, %v3954
    %v4773 = vpack.c.bf16 %v3961, %v3961
    %v4774 = vpack.c.bf16 %v3968, %v3968
    %v4775 = vpack.c.bf16 %v3975, %v3975
    %v4776 = vpack.c.bf16 %v3982, %v3982
    %v4777 = vpack.c.bf16 %v3989, %v3989
    %v4778 = vpack.c.bf16 %v3996, %v3996
    %v4779 = vpack.c.bf16 %v4003, %v4003
    %v4780 = vpack.c.bf16 %v4010, %v4010
    %v4781 = vpack.c.bf16 %v4017, %v4017
    %v4782 = vpack.c.bf16 %v4024, %v4024
    %v4783 = vpack.c.bf16 %v4031, %v4031
    %v4784 = vpack.c.bf16 %v4038, %v4038
    %v4785 = vpack.c.bf16 %v4045, %v4045
    %v4786 = vpack.c.bf16 %v4052, %v4052
    %v4787 = vpack.c.bf16 %v4059, %v4059
    %v4788 = vpack.c.bf16 %v4066, %v4066
    %v4789 = vpack.c.bf16 %v4073, %v4073
    %v4790 = vpack.c.bf16 %v4080, %v4080
    %v4791 = vpack.c.bf16 %v4087, %v4087
    %v4792 = vpack.c.bf16 %v4094, %v4094
    %v4793 = vpack.c.bf16 %v4101, %v4101
    %v4794 = vpack.c.bf16 %v4108, %v4108
    %v4795 = vpack.c.bf16 %v4115, %v4115
    %v4796 = vpack.c.bf16 %v4122, %v4122
    %v4797 = vpack.c.bf16 %v4129, %v4129
    %v4798 = vpack.c.bf16 %v4136, %v4136
    %v4799 = vpack.c.bf16 %v4143, %v4143
    %v4800 = vpack.c.bf16 %v4150, %v4150
    %v4801 = vpack.c.bf16 %v4157, %v4157
    %v4802 = vpack.c.bf16 %v4164, %v4164
    %v4803 = vpack.c.bf16 %v4171, %v4171
    %v4804 = vpack.c.bf16 %v4178, %v4178
    %v4805 = vpack.c.bf16 %v4185, %v4185
    %v4806 = vpack.c.bf16 %v4192, %v4192
    %v4807 = vpack.c.bf16 %v4199, %v4199
    %v4808 = vpack.c.bf16 %v4206, %v4206
    %v4809 = vpack.c.bf16 %v4213, %v4213
    %v4810 = vpack.c.bf16 %v4220, %v4220
    %v4811 = vpack.c.bf16 %v4227, %v4227
    %v4812 = vpack.c.bf16 %v4234, %v4234
    %v4813 = vpack.c.bf16 %v4241, %v4241
    %v4814 = vpack.c.bf16 %v4248, %v4248
    %v4815 = vpack.c.bf16 %v4255, %v4255
    %v4816 = vpack.c.bf16 %v4262, %v4262
    %v4817 = vpack.c.bf16 %v4269, %v4269
    %v4818 = vpack.c.bf16 %v4276, %v4276
    %v4819 = vpack.c.bf16 %v4283, %v4283
    %v4820 = vpack.c.bf16 %v4290, %v4290
    %v4821 = vpack.c.bf16 %v4297, %v4297
    %v4822 = vpack.c.bf16 %v4304, %v4304
    %v4823 = vpack.c.bf16 %v4311, %v4311
    %v4824 = vpack.c.bf16 %v4318, %v4318
    %v4825 = vpack.c.bf16 %v4325, %v4325
    %v4826 = vpack.c.bf16 %v4332, %v4332
    %v4827 = vpack.c.bf16 %v4339, %v4339
    %v4828 = vpack.c.bf16 %v4346, %v4346
    %v4829 = vpack.c.bf16 %v4353, %v4353
    %v4830 = vpack.c.bf16 %v4360, %v4360
    %v4831 = vpack.c.bf16 %v4367, %v4367
    %v4832 = vpack.c.bf16 %v4374, %v4374
    %v4833 = vpack.c.bf16 %v4381, %v4381
    %v4834 = vpack.c.bf16 %v4388, %v4388
    %v4835 = vpack.c.bf16 %v4395, %v4395
    %v4836 = vpack.c.bf16 %v4402, %v4402
    %v4837 = vpack.c.bf16 %v4409, %v4409
    %v4838 = vpack.c.bf16 %v4416, %v4416
    %v4839 = vpack.c.bf16 %v4423, %v4423
    %v4840 = vpack.c.bf16 %v4430, %v4430
    %v4841 = vpack.c.bf16 %v4437, %v4437
    %v4842 = vpack.c.bf16 %v4444, %v4444
    %v4843 = vpack.c.bf16 %v4451, %v4451
    %v4844 = vpack.c.bf16 %v4458, %v4458
    %v4845 = vpack.c.bf16 %v4465, %v4465
    %v4846 = vpack.c.bf16 %v4472, %v4472
    %v4847 = vpack.c.bf16 %v4479, %v4479
    %v4848 = vpack.c.bf16 %v4486, %v4486
    %v4849 = vpack.c.bf16 %v4493, %v4493
    %v4850 = vpack.c.bf16 %v4500, %v4500
    %v4851 = vpack.c.bf16 %v4507, %v4507
    %v4852 = vpack.c.bf16 %v4514, %v4514
    %v4853 = vpack.c.bf16 %v4521, %v4521
    %v4854 = vpack.c.bf16 %v4528, %v4528
    %v4855 = vpack.c.bf16 %v4535, %v4535
    %v4856 = vpack.c.bf16 %v4542, %v4542
    %v4857 = vpack.c.bf16 %v4549, %v4549
    %v4858 = vpack.c.bf16 %v4556, %v4556
    %v4859 = vpack.c.bf16 %v4563, %v4563
    %v4860 = vpack.c.bf16 %v4570, %v4570
    %v4861 = vpack.c.bf16 %v4577, %v4577
    %v4862 = vpack.c.bf16 %v4584, %v4584
    %v4863 = vpack.c.bf16 %v4591, %v4591
    %v4864 = vpack.c.bf16 %v4598, %v4598
    %v4865 = vpack.c.bf16 %v4605, %v4605
    %v4866 = vpack.c.bf16 %v4612, %v4612
    %v4867 = vpack.c.bf16 %v4619, %v4619
    %v4868 = vpack.c.bf16 %v4626, %v4626
    %v4869 = vpack.c.bf16 %v4633, %v4633
    %v4870 = vpack.c.bf16 %v4640, %v4640
    %v4871 = vpack.c.bf16 %v4647, %v4647
    %v4872 = vpack.c.bf16 %v4654, %v4654
    %v4873 = vpack.c.bf16 %v4661, %v4661
    %v4874 = vpack.c.bf16 %v4668, %v4668
    %v4875 = vpack.c.bf16 %v4675, %v4675
    %v4876 = vpack.c.bf16 %v4682, %v4682
    %v4877 = vpack.c.bf16 %v4689, %v4689
    %v4878 = vpack.c.bf16 %v4696, %v4696
    %v4879 = vpack.c.bf16 %v4703, %v4703
    %v4880 = vpack.c.bf16 %v4710, %v4710
    %v4881 = vpack.c.bf16 %v4717, %v4717
    %v4882 = vpack.c.bf16 %v4724, %v4724
    %v4883 = vpack.c.bf16 %v4731, %v4731
    %v4884 = vpack.c.bf16 %v4738, %v4738
    %v4885 = vpack.c.bf16 %v4745, %v4745
    %v4886 = vpack.c.bf16 %v4752, %v4752
    %v4887 = vpack.c.bf16 %v4759, %v4759
    %v4888 = vld [vmem:[%s6] sm:$0xf]
    %v4889 = vld [vmem:[%s6 + $0x4] sm:$0xf]
    %v4890 = vld [vmem:[%s6 + $0x8] sm:$0xf]
    %v4891 = vld [vmem:[%s6 + $0xc] sm:$0xf]
    %v4892 = vld [vmem:[%s7] sm:$0x1]
    %v4894 = vlaneseq
    %v4895 = vshrl.u32 %v4894, 7
    %v4896 = vsub.s32 0, %v4895
    %v4897 = vrot.slane %v4892, %v4896
    %v5027 = vunpack.c.l.b16 %v4760
    %v5028 = vunpack.c.l.b16 %v4761
    %v5029 = vunpack.c.l.b16 %v4762
    %v5030 = vunpack.c.l.b16 %v4763
    %v5031 = vunpack.c.l.b16 %v4764
    %v5032 = vunpack.c.l.b16 %v4765
    %v5033 = vunpack.c.l.b16 %v4766
    %v5034 = vunpack.c.l.b16 %v4767
    %v5035 = vunpack.c.l.b16 %v4768
    %v5036 = vunpack.c.l.b16 %v4769
    %v5037 = vunpack.c.l.b16 %v4770
    %v5038 = vunpack.c.l.b16 %v4771
    %v5039 = vunpack.c.l.b16 %v4772
    %v5040 = vunpack.c.l.b16 %v4773
    %v5041 = vunpack.c.l.b16 %v4774
    %v5042 = vunpack.c.l.b16 %v4775
    %v5043 = vunpack.c.l.b16 %v4776
    %v5044 = vunpack.c.l.b16 %v4777
    %v5045 = vunpack.c.l.b16 %v4778
    %v5046 = vunpack.c.l.b16 %v4779
    %v5047 = vunpack.c.l.b16 %v4780
    %v5048 = vunpack.c.l.b16 %v4781
    %v5049 = vunpack.c.l.b16 %v4782
    %v5050 = vunpack.c.l.b16 %v4783
    %v5051 = vunpack.c.l.b16 %v4784
    %v5052 = vunpack.c.l.b16 %v4785
    %v5053 = vunpack.c.l.b16 %v4786
    %v5054 = vunpack.c.l.b16 %v4787
    %v5055 = vunpack.c.l.b16 %v4788
    %v5056 = vunpack.c.l.b16 %v4789
    %v5057 = vunpack.c.l.b16 %v4790
    %v5058 = vunpack.c.l.b16 %v4791
    %v5059 = vunpack.c.l.b16 %v4792
    %v5060 = vunpack.c.l.b16 %v4793
    %v5061 = vunpack.c.l.b16 %v4794
    %v5062 = vunpack.c.l.b16 %v4795
    %v5063 = vunpack.c.l.b16 %v4796
    %v5064 = vunpack.c.l.b16 %v4797
    %v5065 = vunpack.c.l.b16 %v4798
    %v5066 = vunpack.c.l.b16 %v4799
    %v5067 = vunpack.c.l.b16 %v4800
    %v5068 = vunpack.c.l.b16 %v4801
    %v5069 = vunpack.c.l.b16 %v4802
    %v5070 = vunpack.c.l.b16 %v4803
    %v5071 = vunpack.c.l.b16 %v4804
    %v5072 = vunpack.c.l.b16 %v4805
    %v5073 = vunpack.c.l.b16 %v4806
    %v5074 = vunpack.c.l.b16 %v4807
    %v5075 = vunpack.c.l.b16 %v4808
    %v5076 = vunpack.c.l.b16 %v4809
    %v5077 = vunpack.c.l.b16 %v4810
    %v5078 = vunpack.c.l.b16 %v4811
    %v5079 = vunpack.c.l.b16 %v4812
    %v5080 = vunpack.c.l.b16 %v4813
    %v5081 = vunpack.c.l.b16 %v4814
    %v5082 = vunpack.c.l.b16 %v4815
    %v5083 = vunpack.c.l.b16 %v4816
    %v5084 = vunpack.c.l.b16 %v4817
    %v5085 = vunpack.c.l.b16 %v4818
    %v5086 = vunpack.c.l.b16 %v4819
    %v5087 = vunpack.c.l.b16 %v4820
    %v5088 = vunpack.c.l.b16 %v4821
    %v5089 = vunpack.c.l.b16 %v4822
    %v5090 = vunpack.c.l.b16 %v4823
    %v5091 = vunpack.c.l.b16 %v4824
    %v5092 = vunpack.c.l.b16 %v4825
    %v5093 = vunpack.c.l.b16 %v4826
    %v5094 = vunpack.c.l.b16 %v4827
    %v5095 = vunpack.c.l.b16 %v4828
    %v5096 = vunpack.c.l.b16 %v4829
    %v5097 = vunpack.c.l.b16 %v4830
    %v5098 = vunpack.c.l.b16 %v4831
    %v5099 = vunpack.c.l.b16 %v4832
    %v5100 = vunpack.c.l.b16 %v4833
    %v5101 = vunpack.c.l.b16 %v4834
    %v5102 = vunpack.c.l.b16 %v4835
    %v5103 = vunpack.c.l.b16 %v4836
    %v5104 = vunpack.c.l.b16 %v4837
    %v5105 = vunpack.c.l.b16 %v4838
    %v5106 = vunpack.c.l.b16 %v4839
    %v5107 = vunpack.c.l.b16 %v4840
    %v5108 = vunpack.c.l.b16 %v4841
    %v5109 = vunpack.c.l.b16 %v4842
    %v5110 = vunpack.c.l.b16 %v4843
    %v5111 = vunpack.c.l.b16 %v4844
    %v5112 = vunpack.c.l.b16 %v4845
    %v5113 = vunpack.c.l.b16 %v4846
    %v5114 = vunpack.c.l.b16 %v4847
    %v5115 = vunpack.c.l.b16 %v4848
    %v5116 = vunpack.c.l.b16 %v4849
    %v5117 = vunpack.c.l.b16 %v4850
    %v5118 = vunpack.c.l.b16 %v4851
    %v5119 = vunpack.c.l.b16 %v4852
    %v5120 = vunpack.c.l.b16 %v4853
    %v5121 = vunpack.c.l.b16 %v4854
    %v5122 = vunpack.c.l.b16 %v4855
    %v5123 = vunpack.c.l.b16 %v4856
    %v5124 = vunpack.c.l.b16 %v4857
    %v5125 = vunpack.c.l.b16 %v4858
    %v5126 = vunpack.c.l.b16 %v4859
    %v5127 = vunpack.c.l.b16 %v4860
    %v5128 = vunpack.c.l.b16 %v4861
    %v5129 = vunpack.c.l.b16 %v4862
    %v5130 = vunpack.c.l.b16 %v4863
    %v5131 = vunpack.c.l.b16 %v4864
    %v5132 = vunpack.c.l.b16 %v4865
    %v5133 = vunpack.c.l.b16 %v4866
    %v5134 = vunpack.c.l.b16 %v4867
    %v5135 = vunpack.c.l.b16 %v4868
    %v5136 = vunpack.c.l.b16 %v4869
    %v5137 = vunpack.c.l.b16 %v4870
    %v5138 = vunpack.c.l.b16 %v4871
    %v5139 = vunpack.c.l.b16 %v4872
    %v5140 = vunpack.c.l.b16 %v4873
    %v5141 = vunpack.c.l.b16 %v4874
    %v5142 = vunpack.c.l.b16 %v4875
    %v5143 = vunpack.c.l.b16 %v4876
    %v5144 = vunpack.c.l.b16 %v4877
    %v5145 = vunpack.c.l.b16 %v4878
    %v5146 = vunpack.c.l.b16 %v4879
    %v5147 = vunpack.c.l.b16 %v4880
    %v5148 = vunpack.c.l.b16 %v4881
    %v5149 = vunpack.c.l.b16 %v4882
    %v5150 = vunpack.c.l.b16 %v4883
    %v5151 = vunpack.c.l.b16 %v4884
    %v5152 = vunpack.c.l.b16 %v4885
    %v5153 = vunpack.c.l.b16 %v4886
    %v5154 = vunpack.c.l.b16 %v4887
    %vm5155 = vcmask 1041409
    %v5156 = vsel %vm5155, %v5028, %v5027
    %vm5157 = vcmask 1042434
    %v5158 = vsel %vm5157, %v5029, %v5156
    %vm5159 = vcmask 1043459
    %v5160 = vsel %vm5159, %v5030, %v5158
    %vm5161 = vcmask 1044484
    %v5162 = vsel %vm5161, %v5031, %v5160
    %vm5163 = vcmask 1045509
    %v5164 = vsel %vm5163, %v5032, %v5162
    %vm5165 = vcmask 1046534
    %v5166 = vsel %vm5165, %v5033, %v5164
    %vm5167 = vcmask 1047559
    %v5168 = vsel %vm5167, %v5034, %v5166
    %v5169 = vsel %vm5155, %v5036, %v5035
    %v5170 = vsel %vm5157, %v5037, %v5169
    %v5171 = vsel %vm5159, %v5038, %v5170
    %v5172 = vsel %vm5161, %v5039, %v5171
    %v5173 = vsel %vm5163, %v5040, %v5172
    %v5174 = vsel %vm5165, %v5041, %v5173
    %v5175 = vsel %vm5167, %v5042, %v5174
    %v5176 = vsel %vm5155, %v5044, %v5043
    %v5177 = vsel %vm5157, %v5045, %v5176
    %v5178 = vsel %vm5159, %v5046, %v5177
    %v5179 = vsel %vm5161, %v5047, %v5178
    %v5180 = vsel %vm5163, %v5048, %v5179
    %v5181 = vsel %vm5165, %v5049, %v5180
    %v5182 = vsel %vm5167, %v5050, %v5181
    %v5183 = vsel %vm5155, %v5052, %v5051
    %v5184 = vsel %vm5157, %v5053, %v5183
    %v5185 = vsel %vm5159, %v5054, %v5184
    %v5186 = vsel %vm5161, %v5055, %v5185
    %v5187 = vsel %vm5163, %v5056, %v5186
    %v5188 = vsel %vm5165, %v5057, %v5187
    %v5189 = vsel %vm5167, %v5058, %v5188
    %v5190 = vsel %vm5155, %v5060, %v5059
    %v5191 = vsel %vm5157, %v5061, %v5190
    %v5192 = vsel %vm5159, %v5062, %v5191
    %v5193 = vsel %vm5161, %v5063, %v5192
    %v5194 = vsel %vm5163, %v5064, %v5193
    %v5195 = vsel %vm5165, %v5065, %v5194
    %v5196 = vsel %vm5167, %v5066, %v5195
    %v5197 = vsel %vm5155, %v5068, %v5067
    %v5198 = vsel %vm5157, %v5069, %v5197
    %v5199 = vsel %vm5159, %v5070, %v5198
    %v5200 = vsel %vm5161, %v5071, %v5199
    %v5201 = vsel %vm5163, %v5072, %v5200
    %v5202 = vsel %vm5165, %v5073, %v5201
    %v5203 = vsel %vm5167, %v5074, %v5202
    %v5204 = vsel %vm5155, %v5076, %v5075
    %v5205 = vsel %vm5157, %v5077, %v5204
    %v5206 = vsel %vm5159, %v5078, %v5205
    %v5207 = vsel %vm5161, %v5079, %v5206
    %v5208 = vsel %vm5163, %v5080, %v5207
    %v5209 = vsel %vm5165, %v5081, %v5208
    %v5210 = vsel %vm5167, %v5082, %v5209
    %v5211 = vsel %vm5155, %v5084, %v5083
    %v5212 = vsel %vm5157, %v5085, %v5211
    %v5213 = vsel %vm5159, %v5086, %v5212
    %v5214 = vsel %vm5161, %v5087, %v5213
    %v5215 = vsel %vm5163, %v5088, %v5214
    %v5216 = vsel %vm5165, %v5089, %v5215
    %v5217 = vsel %vm5167, %v5090, %v5216
    %v5218 = vsel %vm5155, %v5092, %v5091
    %v5219 = vsel %vm5157, %v5093, %v5218
    %v5220 = vsel %vm5159, %v5094, %v5219
    %v5221 = vsel %vm5161, %v5095, %v5220
    %v5222 = vsel %vm5163, %v5096, %v5221
    %v5223 = vsel %vm5165, %v5097, %v5222
    %v5224 = vsel %vm5167, %v5098, %v5223
    %v5225 = vsel %vm5155, %v5100, %v5099
    %v5226 = vsel %vm5157, %v5101, %v5225
    %v5227 = vsel %vm5159, %v5102, %v5226
    %v5228 = vsel %vm5161, %v5103, %v5227
    %v5229 = vsel %vm5163, %v5104, %v5228
    %v5230 = vsel %vm5165, %v5105, %v5229
    %v5231 = vsel %vm5167, %v5106, %v5230
    %v5232 = vsel %vm5155, %v5108, %v5107
    %v5233 = vsel %vm5157, %v5109, %v5232
    %v5234 = vsel %vm5159, %v5110, %v5233
    %v5235 = vsel %vm5161, %v5111, %v5234
    %v5236 = vsel %vm5163, %v5112, %v5235
    %v5237 = vsel %vm5165, %v5113, %v5236
    %v5238 = vsel %vm5167, %v5114, %v5237
    %v5239 = vsel %vm5155, %v5116, %v5115
    %v5240 = vsel %vm5157, %v5117, %v5239
    %v5241 = vsel %vm5159, %v5118, %v5240
    %v5242 = vsel %vm5161, %v5119, %v5241
    %v5243 = vsel %vm5163, %v5120, %v5242
    %v5244 = vsel %vm5165, %v5121, %v5243
    %v5245 = vsel %vm5167, %v5122, %v5244
    %v5246 = vsel %vm5155, %v5124, %v5123
    %v5247 = vsel %vm5157, %v5125, %v5246
    %v5248 = vsel %vm5159, %v5126, %v5247
    %v5249 = vsel %vm5161, %v5127, %v5248
    %v5250 = vsel %vm5163, %v5128, %v5249
    %v5251 = vsel %vm5165, %v5129, %v5250
    %v5252 = vsel %vm5167, %v5130, %v5251
    %v5253 = vsel %vm5155, %v5132, %v5131
    %v5254 = vsel %vm5157, %v5133, %v5253
    %v5255 = vsel %vm5159, %v5134, %v5254
    %v5256 = vsel %vm5161, %v5135, %v5255
    %v5257 = vsel %vm5163, %v5136, %v5256
    %v5258 = vsel %vm5165, %v5137, %v5257
    %v5259 = vsel %vm5167, %v5138, %v5258
    %v5260 = vsel %vm5155, %v5140, %v5139
    %v5261 = vsel %vm5157, %v5141, %v5260
    %v5262 = vsel %vm5159, %v5142, %v5261
    %v5263 = vsel %vm5161, %v5143, %v5262
    %v5264 = vsel %vm5163, %v5144, %v5263
    %v5265 = vsel %vm5165, %v5145, %v5264
    %v5266 = vsel %vm5167, %v5146, %v5265
    %v5267 = vsel %vm5155, %v5148, %v5147
    %v5268 = vsel %vm5157, %v5149, %v5267
    %v5269 = vsel %vm5159, %v5150, %v5268
    %v5270 = vsel %vm5161, %v5151, %v5269
    %v5271 = vsel %vm5163, %v5152, %v5270
    %v5272 = vsel %vm5165, %v5153, %v5271
    %v5273 = vsel %vm5167, %v5154, %v5272
    %v5274 = vpack.c.b16 %v5175, %v5168
    %v5275 = vpack.c.b16 %v5189, %v5182
    %v5276 = vpack.c.b16 %v5203, %v5196
    %v5277 = vpack.c.b16 %v5217, %v5210
    %v5278 = vpack.c.b16 %v5231, %v5224
    %v5279 = vpack.c.b16 %v5245, %v5238
    %v5280 = vpack.c.b16 %v5259, %v5252
    %v5281 = vpack.c.b16 %v5273, %v5266
    %v5286 = vunpack.c.l.b16 %v4888
    %v5287 = vunpack.c.l.b16 %v4889
    %v5288 = vunpack.c.l.b16 %v4890
    %v5289 = vunpack.c.l.b16 %v4891
    %v5290 = vpack.c.b16 %v5287, %v5286
    %v5291 = vpack.c.b16 %v5289, %v5288
    %v5295 = vsel %vm510, %v5274, 0
    %v5298 = vsel %vm510, %v5275, 0
    %v5301 = vsel %vm510, %v5276, 0
    %v5304 = vsel %vm510, %v5277, 0
    %v5307 = vsel %vm510, %v5278, 0
    %v5310 = vsel %vm510, %v5279, 0
    %v5313 = vsel %vm510, %v5280, 0
    %v5316 = vsel %vm510, %v5281, 0
    %5318 = vmatprep.subr.bf16.mxu0 0
    %5319 = vmatpush1.bf16.msra.mxu0 0
    %5320 = vmatprep.subr.bf16.mxu0 0
    %5321 = vmatpush1.bf16.msra.mxu0 0
    %5322 = vmatprep.subr.bf16.mxu0 0
    %5323 = vmatpush1.bf16.msra.mxu0 0
    %5324 = vmatprep.subr.bf16.mxu0 0
    %5325 = vmatpush1.bf16.msra.mxu0 0
    %5326 = vmatprep.subr.bf16.mxu0 0
    %5327 = vmatpush1.bf16.msra.mxu0 0
    %5328 = vmatprep.subr.bf16.mxu0 0
    %5329 = vmatpush1.bf16.msra.mxu0 0
    %5330 = vmatprep.subr.bf16.mxu0 0
    %5331 = vmatpush1.bf16.msra.mxu0 %v5291
    %5332 = vmatprep.subr.bf16.mxu0 0
    %5333 = vmatpush1.bf16.msra.mxu0 %v5290
    %5334 = vmatprep.subr.bf16.mxu0 0
    %5335 = vmatpush2.bf16.msra.mxu0 0
    %5336 = vmatprep.subr.bf16.mxu0 0
    %5337 = vmatpush2.bf16.msra.mxu0 0
    %5338 = vmatprep.subr.bf16.mxu0 0
    %5339 = vmatpush2.bf16.msra.mxu0 0
    %5340 = vmatprep.subr.bf16.mxu0 0
    %5341 = vmatpush2.bf16.msra.mxu0 0
    %5342 = vmatprep.subr.bf16.mxu0 0
    %5343 = vmatpush2.bf16.msra.mxu0 0
    %5344 = vmatprep.subr.bf16.mxu0 0
    %5345 = vmatpush2.bf16.msra.mxu0 0
    %5346 = vmatprep.subr.bf16.mxu0 0
    %5347 = vmatpush2.bf16.msra.mxu0 0
    %5348 = vmatprep.subr.bf16.mxu0 0
    %5349 = vmatpush2.bf16.msra.mxu0 0
    %5350 = vmatprep.mubr.bf16.mxu0 0
    %5351 = vmatmul.mubr.bf16.gmra.mxu0 %v5295
    %v5352 = vpop.f32.mrf.mxu0
    %v5353 = vadd.f32 %v4897, %v5352
    %v5354 = vpop.f32.mrf.mxu0
    %v5355 = vpop.f32.mrf.mxu0
    %v5356 = vadd.f32 %v4897, %v5355
    %v5357 = vpop.f32.mrf.mxu0
    %5358 = vmatprep.mubr.bf16.mxu0 0
    %5359 = vmatmul.mubr.bf16.gmra.mxu0 %v5298
    %v5360 = vpop.f32.mrf.mxu0
    %v5361 = vadd.f32 %v4897, %v5360
    %v5362 = vpop.f32.mrf.mxu0
    %v5363 = vpop.f32.mrf.mxu0
    %v5364 = vadd.f32 %v4897, %v5363
    %v5365 = vpop.f32.mrf.mxu0
    %5366 = vmatprep.mubr.bf16.mxu0 0
    %5367 = vmatmul.mubr.bf16.gmra.mxu0 %v5301
    %v5368 = vpop.f32.mrf.mxu0
    %v5369 = vadd.f32 %v4897, %v5368
    %v5370 = vpop.f32.mrf.mxu0
    %v5371 = vpop.f32.mrf.mxu0
    %v5372 = vadd.f32 %v4897, %v5371
    %v5373 = vpop.f32.mrf.mxu0
    %5374 = vmatprep.mubr.bf16.mxu0 0
    %5375 = vmatmul.mubr.bf16.gmra.mxu0 %v5304
    %v5376 = vpop.f32.mrf.mxu0
    %v5377 = vadd.f32 %v4897, %v5376
    %v5378 = vpop.f32.mrf.mxu0
    %v5379 = vpop.f32.mrf.mxu0
    %v5380 = vadd.f32 %v4897, %v5379
    %v5381 = vpop.f32.mrf.mxu0
    %5382 = vmatprep.mubr.bf16.mxu0 0
    %5383 = vmatmul.mubr.bf16.gmra.mxu0 %v5307
    %v5384 = vpop.f32.mrf.mxu0
    %v5385 = vadd.f32 %v4897, %v5384
    %v5386 = vpop.f32.mrf.mxu0
    %v5387 = vpop.f32.mrf.mxu0
    %v5388 = vadd.f32 %v4897, %v5387
    %v5389 = vpop.f32.mrf.mxu0
    %5390 = vmatprep.mubr.bf16.mxu0 0
    %5391 = vmatmul.mubr.bf16.gmra.mxu0 %v5310
    %v5392 = vpop.f32.mrf.mxu0
    %v5393 = vadd.f32 %v4897, %v5392
    %v5394 = vpop.f32.mrf.mxu0
    %v5395 = vpop.f32.mrf.mxu0
    %v5396 = vadd.f32 %v4897, %v5395
    %v5397 = vpop.f32.mrf.mxu0
    %5398 = vmatprep.mubr.bf16.mxu0 0
    %5399 = vmatmul.mubr.bf16.gmra.mxu0 %v5313
    %v5400 = vpop.f32.mrf.mxu0
    %v5401 = vadd.f32 %v4897, %v5400
    %v5402 = vpop.f32.mrf.mxu0
    %v5403 = vpop.f32.mrf.mxu0
    %v5404 = vadd.f32 %v4897, %v5403
    %v5405 = vpop.f32.mrf.mxu0
    %5406 = vmatprep.mubr.bf16.mxu0 0
    %5407 = vmatmul.mubr.bf16.gmra.mxu0 %v5316
    %v5408 = vpop.f32.mrf.mxu0
    %v5409 = vadd.f32 %v4897, %v5408
    %v5410 = vpop.f32.mrf.mxu0
    %v5411 = vpop.f32.mrf.mxu0
    %v5412 = vadd.f32 %v4897, %v5411
    %v5413 = vpop.f32.mrf.mxu0
    %5414 = vdwg.mxu0
    %v5415 = vxor.u32 %v5353, 2147483648
    %v5416 = vxor.u32 %v5356, 2147483648
    %v5417 = vxor.u32 %v5361, 2147483648
    %v5418 = vxor.u32 %v5364, 2147483648
    %v5419 = vxor.u32 %v5369, 2147483648
    %v5420 = vxor.u32 %v5372, 2147483648
    %v5421 = vxor.u32 %v5377, 2147483648
    %v5422 = vxor.u32 %v5380, 2147483648
    %v5423 = vxor.u32 %v5385, 2147483648
    %v5424 = vxor.u32 %v5388, 2147483648
    %v5425 = vxor.u32 %v5393, 2147483648
    %v5426 = vxor.u32 %v5396, 2147483648
    %v5427 = vxor.u32 %v5401, 2147483648
    %v5428 = vxor.u32 %v5404, 2147483648
    %v5429 = vxor.u32 %v5409, 2147483648
    %v5430 = vxor.u32 %v5412, 2147483648
    %v5431 = vmul.f32 %v5415, 1.442695
    %v5432 = vpow.pop %v5431
    %v5433 = vmul.f32 %v5416, 1.442695
    %v5434 = vpow.pop %v5433
    %v5435 = vmul.f32 %v5417, 1.442695
    %v5436 = vpow.pop %v5435
    %v5437 = vmul.f32 %v5418, 1.442695
    %v5438 = vpow.pop %v5437
    %v5439 = vmul.f32 %v5419, 1.442695
    %v5440 = vpow.pop %v5439
    %v5441 = vmul.f32 %v5420, 1.442695
    %v5442 = vpow.pop %v5441
    %v5443 = vmul.f32 %v5421, 1.442695
    %v5444 = vpow.pop %v5443
    %v5445 = vmul.f32 %v5422, 1.442695
    %v5446 = vpow.pop %v5445
    %v5447 = vmul.f32 %v5423, 1.442695
    %v5448 = vpow.pop %v5447
    %v5449 = vmul.f32 %v5424, 1.442695
    %v5450 = vpow.pop %v5449
    %v5451 = vmul.f32 %v5425, 1.442695
    %v5452 = vpow.pop %v5451
    %v5453 = vmul.f32 %v5426, 1.442695
    %v5454 = vpow.pop %v5453
    %v5455 = vmul.f32 %v5427, 1.442695
    %v5456 = vpow.pop %v5455
    %v5457 = vmul.f32 %v5428, 1.442695
    %v5458 = vpow.pop %v5457
    %v5459 = vmul.f32 %v5429, 1.442695
    %v5460 = vpow.pop %v5459
    %v5461 = vmul.f32 %v5430, 1.442695
    %v5462 = vpow.pop %v5461
    %v5463 = vadd.f32 %v5432, 1.0
    %v5464 = vadd.f32 %v5434, 1.0
    %v5465 = vadd.f32 %v5436, 1.0
    %v5466 = vadd.f32 %v5438, 1.0
    %v5467 = vadd.f32 %v5440, 1.0
    %v5468 = vadd.f32 %v5442, 1.0
    %v5469 = vadd.f32 %v5444, 1.0
    %v5470 = vadd.f32 %v5446, 1.0
    %v5471 = vadd.f32 %v5448, 1.0
    %v5472 = vadd.f32 %v5450, 1.0
    %v5473 = vadd.f32 %v5452, 1.0
    %v5474 = vadd.f32 %v5454, 1.0
    %v5475 = vadd.f32 %v5456, 1.0
    %v5476 = vadd.f32 %v5458, 1.0
    %v5477 = vadd.f32 %v5460, 1.0
    %v5478 = vadd.f32 %v5462, 1.0
    %v5479 = vrcp.pop %v5463
    %v5480 = vmul.f32 1.0, %v5479
    %v5481 = vrcp.pop %v5464
    %v5482 = vmul.f32 1.0, %v5481
    %v5483 = vrcp.pop %v5465
    %v5484 = vmul.f32 1.0, %v5483
    %v5485 = vrcp.pop %v5466
    %v5486 = vmul.f32 1.0, %v5485
    %v5487 = vrcp.pop %v5467
    %v5488 = vmul.f32 1.0, %v5487
    %v5489 = vrcp.pop %v5468
    %v5490 = vmul.f32 1.0, %v5489
    %v5491 = vrcp.pop %v5469
    %v5492 = vmul.f32 1.0, %v5491
    %v5493 = vrcp.pop %v5470
    %v5494 = vmul.f32 1.0, %v5493
    %v5495 = vrcp.pop %v5471
    %v5496 = vmul.f32 1.0, %v5495
    %v5497 = vrcp.pop %v5472
    %v5498 = vmul.f32 1.0, %v5497
    %v5499 = vrcp.pop %v5473
    %v5500 = vmul.f32 1.0, %v5499
    %v5501 = vrcp.pop %v5474
    %v5502 = vmul.f32 1.0, %v5501
    %v5503 = vrcp.pop %v5475
    %v5504 = vmul.f32 1.0, %v5503
    %v5505 = vrcp.pop %v5476
    %v5506 = vmul.f32 1.0, %v5505
    %v5507 = vrcp.pop %v5477
    %v5508 = vmul.f32 1.0, %v5507
    %v5509 = vrcp.pop %v5478
    %v5510 = vmul.f32 1.0, %v5509
    %v5511 = vmul.f32 %v5353, %v5480
    %v5512 = vmul.f32 %v5356, %v5482
    %v5513 = vmul.f32 %v5361, %v5484
    %v5514 = vmul.f32 %v5364, %v5486
    %v5515 = vmul.f32 %v5369, %v5488
    %v5516 = vmul.f32 %v5372, %v5490
    %v5517 = vmul.f32 %v5377, %v5492
    %v5518 = vmul.f32 %v5380, %v5494
    %v5519 = vmul.f32 %v5385, %v5496
    %v5520 = vmul.f32 %v5388, %v5498
    %v5521 = vmul.f32 %v5393, %v5500
    %v5522 = vmul.f32 %v5396, %v5502
    %v5523 = vmul.f32 %v5401, %v5504
    %v5524 = vmul.f32 %v5404, %v5506
    %v5525 = vmul.f32 %v5409, %v5508
    %v5526 = vmul.f32 %v5412, %v5510
    %v5527 = vld [vmem:[%s8] sm:$0x1]
    %v5529 = vlaneseq
    %v5530 = vshrl.u32 %v5529, 7
    %v5531 = vsub.s32 0, %v5530
    %v5532 = vrot.slane %v5527, %v5531
    %v5534 = vmul.f32 %v5511, %v5532
    %v5535 = vmul.f32 %v5512, %v5532
    %v5536 = vmul.f32 %v5513, %v5532
    %v5537 = vmul.f32 %v5514, %v5532
    %v5538 = vmul.f32 %v5515, %v5532
    %v5539 = vmul.f32 %v5516, %v5532
    %v5540 = vmul.f32 %v5517, %v5532
    %v5541 = vmul.f32 %v5518, %v5532
    %v5542 = vmul.f32 %v5519, %v5532
    %v5543 = vmul.f32 %v5520, %v5532
    %v5544 = vmul.f32 %v5521, %v5532
    %v5545 = vmul.f32 %v5522, %v5532
    %v5546 = vmul.f32 %v5523, %v5532
    %v5547 = vmul.f32 %v5524, %v5532
    %v5548 = vmul.f32 %v5525, %v5532
    %v5549 = vmul.f32 %v5526, %v5532
    %v5550 = vsel %vm510, %v5534, 0.0
    %5551 = vadd.xlane.f32.xlu0 %v5550
    %v5552 = vpop.xlane.xlu0 %5551
    %v5553 = vsel %vm510, %v5535, 0.0
    %5554 = vadd.xlane.f32.xlu0 %v5553
    %v5555 = vpop.xlane.xlu0 %5554
    %v5556 = vsel %vm510, %v5536, 0.0
    %5557 = vadd.xlane.f32.xlu0 %v5556
    %v5558 = vpop.xlane.xlu0 %5557
    %v5559 = vsel %vm510, %v5537, 0.0
    %5560 = vadd.xlane.f32.xlu0 %v5559
    %v5561 = vpop.xlane.xlu0 %5560
    %v5562 = vsel %vm510, %v5538, 0.0
    %5563 = vadd.xlane.f32.xlu0 %v5562
    %v5564 = vpop.xlane.xlu0 %5563
    %v5565 = vsel %vm510, %v5539, 0.0
    %5566 = vadd.xlane.f32.xlu0 %v5565
    %v5567 = vpop.xlane.xlu0 %5566
    %v5568 = vsel %vm510, %v5540, 0.0
    %5569 = vadd.xlane.f32.xlu0 %v5568
    %v5570 = vpop.xlane.xlu0 %5569
    %v5571 = vsel %vm510, %v5541, 0.0
    %5572 = vadd.xlane.f32.xlu0 %v5571
    %v5573 = vpop.xlane.xlu0 %5572
    %v5574 = vsel %vm510, %v5542, 0.0
    %5575 = vadd.xlane.f32.xlu0 %v5574
    %v5576 = vpop.xlane.xlu0 %5575
    %v5577 = vsel %vm510, %v5543, 0.0
    %5578 = vadd.xlane.f32.xlu0 %v5577
    %v5579 = vpop.xlane.xlu0 %5578
    %v5580 = vsel %vm510, %v5544, 0.0
    %5581 = vadd.xlane.f32.xlu0 %v5580
    %v5582 = vpop.xlane.xlu0 %5581
    %v5583 = vsel %vm510, %v5545, 0.0
    %5584 = vadd.xlane.f32.xlu0 %v5583
    %v5585 = vpop.xlane.xlu0 %5584
    %v5586 = vsel %vm510, %v5546, 0.0
    %5587 = vadd.xlane.f32.xlu0 %v5586
    %v5588 = vpop.xlane.xlu0 %5587
    %v5589 = vsel %vm510, %v5547, 0.0
    %5590 = vadd.xlane.f32.xlu0 %v5589
    %v5591 = vpop.xlane.xlu0 %5590
    %v5592 = vsel %vm510, %v5548, 0.0
    %5593 = vadd.xlane.f32.xlu0 %v5592
    %v5594 = vpop.xlane.xlu0 %5593
    %v5595 = vsel %vm510, %v5549, 0.0
    %5596 = vadd.xlane.f32.xlu0 %v5595
    %v5597 = vpop.xlane.xlu0 %5596
    %v5598 = vld [vmem:[#allocation2] sm:$0x1]
    %5600 = vset.pattern.permute.xlu0 0
    %5601 = vperm.xlu0 %5600, %v5598
    %v5602 = vpop.permute.xlu0 %5601
    %v5604 = vlaneseq
    %v5605 = vshrl.u32 %v5604, 7
    %v5606 = vsub.s32 0, %v5605
    %v5607 = vrot.slane %v5602, %v5606
    %v5608 = vadd.f32 %v5552, %v5607
    %v5609 = vadd.f32 %v5555, %v5607
    %v5610 = vadd.f32 %v5558, %v5607
    %v5611 = vadd.f32 %v5561, %v5607
    %v5612 = vadd.f32 %v5564, %v5607
    %v5613 = vadd.f32 %v5567, %v5607
    %v5614 = vadd.f32 %v5570, %v5607
    %v5615 = vadd.f32 %v5573, %v5607
    %v5616 = vadd.f32 %v5576, %v5607
    %v5617 = vadd.f32 %v5579, %v5607
    %v5618 = vadd.f32 %v5582, %v5607
    %v5619 = vadd.f32 %v5585, %v5607
    %v5620 = vadd.f32 %v5588, %v5607
    %v5621 = vadd.f32 %v5591, %v5607
    %v5622 = vadd.f32 %v5594, %v5607
    %v5623 = vadd.f32 %v5597, %v5607
    %v5640 = vlaneseq
    %v5641 = vand.u32 %v5640, 127
    %v5642 = vlaneseq
    %v5643 = vshrl.u32 %v5642, 7
    %v5644 = vsub.s32 %v5641, %v5643
    %v5645 = vrot.slane %v5608, %v5644
    %v5646 = vadd.s32 %v5641, 4294967288
    %v5647 = vlaneseq
    %v5648 = vshrl.u32 %v5647, 7
    %v5649 = vsub.s32 %v5646, %v5648
    %v5650 = vrot.slane %v5609, %v5649
    %vm5651 = vcmask 130112
    %v5652 = vsel %vm5651, %v5650, %v5645
    %v5653 = vadd.s32 %v5641, 4294967280
    %v5654 = vlaneseq
    %v5655 = vshrl.u32 %v5654, 7
    %v5656 = vsub.s32 %v5653, %v5655
    %v5657 = vrot.slane %v5610, %v5656
    %vm5658 = vcmask 195712
    %v5659 = vsel %vm5658, %v5657, %v5652
    %v5660 = vadd.s32 %v5641, 4294967272
    %v5661 = vlaneseq
    %v5662 = vshrl.u32 %v5661, 7
    %v5663 = vsub.s32 %v5660, %v5662
    %v5664 = vrot.slane %v5611, %v5663
    %vm5665 = vcmask 261312
    %v5666 = vsel %vm5665, %v5664, %v5659
    %v5667 = vadd.s32 %v5641, 4294967264
    %v5668 = vlaneseq
    %v5669 = vshrl.u32 %v5668, 7
    %v5670 = vsub.s32 %v5667, %v5669
    %v5671 = vrot.slane %v5612, %v5670
    %vm5672 = vcmask 326912
    %v5673 = vsel %vm5672, %v5671, %v5666
    %v5674 = vadd.s32 %v5641, 4294967256
    %v5675 = vlaneseq
    %v5676 = vshrl.u32 %v5675, 7
    %v5677 = vsub.s32 %v5674, %v5676
    %v5678 = vrot.slane %v5613, %v5677
    %vm5679 = vcmask 392512
    %v5680 = vsel %vm5679, %v5678, %v5673
    %v5681 = vadd.s32 %v5641, 4294967248
    %v5682 = vlaneseq
    %v5683 = vshrl.u32 %v5682, 7
    %v5684 = vsub.s32 %v5681, %v5683
    %v5685 = vrot.slane %v5614, %v5684
    %vm5686 = vcmask 458112
    %v5687 = vsel %vm5686, %v5685, %v5680
    %v5688 = vadd.s32 %v5641, 4294967240
    %v5689 = vlaneseq
    %v5690 = vshrl.u32 %v5689, 7
    %v5691 = vsub.s32 %v5688, %v5690
    %v5692 = vrot.slane %v5615, %v5691
    %vm5693 = vcmask 523712
    %v5694 = vsel %vm5693, %v5692, %v5687
    %v5695 = vadd.s32 %v5641, 4294967232
    %v5696 = vlaneseq
    %v5697 = vshrl.u32 %v5696, 7
    %v5698 = vsub.s32 %v5695, %v5697
    %v5699 = vrot.slane %v5616, %v5698
    %vm5700 = vcmask 589312
    %v5701 = vsel %vm5700, %v5699, %v5694
    %v5702 = vadd.s32 %v5641, 4294967224
    %v5703 = vlaneseq
    %v5704 = vshrl.u32 %v5703, 7
    %v5705 = vsub.s32 %v5702, %v5704
    %v5706 = vrot.slane %v5617, %v5705
    %vm5707 = vcmask 654912
    %v5708 = vsel %vm5707, %v5706, %v5701
    %v5709 = vadd.s32 %v5641, 4294967216
    %v5710 = vlaneseq
    %v5711 = vshrl.u32 %v5710, 7
    %v5712 = vsub.s32 %v5709, %v5711
    %v5713 = vrot.slane %v5618, %v5712
    %vm5714 = vcmask 720512
    %v5715 = vsel %vm5714, %v5713, %v5708
    %v5716 = vadd.s32 %v5641, 4294967208
    %v5717 = vlaneseq
    %v5718 = vshrl.u32 %v5717, 7
    %v5719 = vsub.s32 %v5716, %v5718
    %v5720 = vrot.slane %v5619, %v5719
    %vm5721 = vcmask 786112
    %v5722 = vsel %vm5721, %v5720, %v5715
    %v5723 = vadd.s32 %v5641, 4294967200
    %v5724 = vlaneseq
    %v5725 = vshrl.u32 %v5724, 7
    %v5726 = vsub.s32 %v5723, %v5725
    %v5727 = vrot.slane %v5620, %v5726
    %vm5728 = vcmask 851712
    %v5729 = vsel %vm5728, %v5727, %v5722
    %v5730 = vadd.s32 %v5641, 4294967192
    %v5731 = vlaneseq
    %v5732 = vshrl.u32 %v5731, 7
    %v5733 = vsub.s32 %v5730, %v5732
    %v5734 = vrot.slane %v5621, %v5733
    %vm5735 = vcmask 917312
    %v5736 = vsel %vm5735, %v5734, %v5729
    %v5737 = vadd.s32 %v5641, 4294967184
    %v5738 = vlaneseq
    %v5739 = vshrl.u32 %v5738, 7
    %v5740 = vsub.s32 %v5737, %v5739
    %v5741 = vrot.slane %v5622, %v5740
    %vm5742 = vcmask 982912
    %v5743 = vsel %vm5742, %v5741, %v5736
    %v5744 = vadd.s32 %v5641, 4294967176
    %v5745 = vlaneseq
    %v5746 = vshrl.u32 %v5745, 7
    %v5747 = vsub.s32 %v5744, %v5746
    %v5748 = vrot.slane %v5623, %v5747
    %vm5749 = vcmask 1048512
    %v5750 = vsel %vm5749, %v5748, %v5743
    %5752 = vst [vmem:[#allocation3] sm:$0x1] %v5750
    // Predicated region
    $region42: #{tpu_custom_call.1} parent=1 // pred_check
      _
    $region43: #{tpu_custom_call.1} parent=1 // pred_check_branch
      %5754 = sbr.rel (0) target = $region45
    $region44: #{tpu_custom_call.1} parent=1 // pred_region
      %s5756 = ssub.s32 16, 16
      %5757 = vsyncadd [#allocation4], %s5756
      %s5759 = sshll.u32 [#allocation3], 4
      %s5760 = int_to_ptr.vmem [resolvable:$true] %s5759
      %5762 = dma.vmem_to_hbm [thread:$0]  %s5760, 16, %s10, [#allocation4]
    $region45: #{tpu_custom_call.1} parent=1 // pred_fallthru
      _
    // Predicated region
    $region46: #{tpu_custom_call.1} parent=1 // pred_check
      _
    $region47: #{tpu_custom_call.1} parent=1 // pred_check_branch
      %5764 = sbr.rel (0) target = $region49
    $region48: #{tpu_custom_call.1} parent=1 // pred_region
      %5765 = dma.done [#allocation4], 16
    $region49: #{tpu_custom_call.1} parent=1 // pred_fallthru
      _
    %5766 = vsyncpa [#allocation4], 1

</llo_original>
